<compile_context>
chip_gen: v6e
topology: v6e:2x2x1
jax: 0.10.0
libtpu: 0.0.40
codegen_flags: <defaults>
</compile_context>

<pallas_src>
import numpy as np
import jax
import jax.numpy as jnp
from jax.experimental import pallas as pl
from jax.experimental.pallas import tpu as pltpu

_F32 = jnp.float32


# ---------------------------------------------------------------------------
# Fused forward kernel (one batch sample per grid step)
# ---------------------------------------------------------------------------

def _conv_rows(get_rows, band_ref, bias_ref):
    """sum_kh get_rows(kh) @ band[kh], then bias + ReLU.  All matmuls are 2D."""
    z = jnp.dot(get_rows(0), band_ref[0], preferred_element_type=_F32)
    for kh in range(1, 5):
        z = z + jnp.dot(get_rows(kh), band_ref[kh], preferred_element_type=_F32)
    return jnp.maximum(z + bias_ref[...], 0.0)


def _maxpool2(z, wsel_ref, hsel_ref):
    """Exact 2x2 / stride-2 max pool on an (H, W*C) slab via one-hot gathers."""
    zw = jnp.maximum(jnp.dot(z, wsel_ref[0], preferred_element_type=_F32),
                     jnp.dot(z, wsel_ref[1], preferred_element_type=_F32))
    return jnp.maximum(jnp.dot(hsel_ref[0], zw, preferred_element_type=_F32),
                       jnp.dot(hsel_ref[1], zw, preferred_element_type=_F32))


def _model_c_kernel(x_ref,
                    w1b_ref, b1t_ref, ws1_ref, hs1_ref,
                    w2b_ref, b2t_ref, ws2_ref, hs2_ref,
                    w3b_ref, b3t_ref,
                    wf1_ref, bf1_ref, wf2_ref, bf2_ref, wf3_ref, bf3_ref,
                    o_ref,
                    a1p_ref, a2p_ref):
    # ---------------- features ----------------
    # conv1 (1->16, k5, valid) + ReLU : (28, 28) -> (24, 24*16)
    z1 = _conv_rows(lambda kh: x_ref[0, 0, kh:kh + 24, :], w1b_ref, b1t_ref)
    # maxpool 2x2 -> (12, 12*16); stash with conv2's H padding (pad=2) in rows
    a1p_ref[...] = jnp.zeros(a1p_ref.shape, _F32)
    a1p_ref[2:14, :] = _maxpool2(z1, ws1_ref, hs1_ref)

    # conv2 (16->32, k5, pad=2) + ReLU : -> (12, 12*32)
    z2 = _conv_rows(lambda kh: a1p_ref[kh:kh + 12, :], w2b_ref, b2t_ref)
    # maxpool 2x2 -> (6, 6*32); stash with conv3's H padding (pad=1) in rows
    a2p_ref[...] = jnp.zeros(a2p_ref.shape, _F32)
    a2p_ref[1:7, :] = _maxpool2(z2, ws2_ref, hs2_ref)

    # conv3 (32->12, k5, pad=1) + Dropout2d(identity) + ReLU : -> (4, 4*12)
    a3 = _conv_rows(lambda kh: a2p_ref[kh:kh + 4, :], w3b_ref, b3t_ref)

    # ---------------- classifier ----------------
    # Linear(192, 50): the NCHW flatten is absorbed into the packed wf1 layout.
    z = jnp.dot(a3[0:1, :], wf1_ref[0], preferred_element_type=_F32)
    for h in range(1, 4):
        z = z + jnp.dot(a3[h:h + 1, :], wf1_ref[h], preferred_element_type=_F32)
    z = jnp.maximum(z + bf1_ref[...], 0.0)
    z = jnp.maximum(jnp.dot(z, wf2_ref[...], preferred_element_type=_F32)
                    + bf2_ref[...], 0.0)
    # Dropout = identity (inference)
    z = jnp.dot(z, wf3_ref[...], preferred_element_type=_F32) + bf3_ref[...]
    o_ref[0] = z                                   # (1, 10)


# ---------------------------------------------------------------------------
# pallas_call wrapper
# ---------------------------------------------------------------------------

_PACK_ORDER = ("w1b", "b1t", "ws1", "hs1",
               "w2b", "b2t", "ws2", "hs2",
               "w3b", "b3t",
               "wf1", "bf1", "wf2", "bf2", "wf3", "bf3")


def _const_index_map(ndim):
    def imap(b):
        return (0,) * ndim
    return imap


def _const_spec(shape):
    return pl.BlockSpec(shape, _const_index_map(len(shape)))


def model_c_forward(x_nchw, packed):
    """x_nchw: (B, 1, 28, 28) float32 -> logits (B, 10)."""
    B = x_nchw.shape[0]
    args = [packed[k] for k in _PACK_ORDER]

    in_specs = ([pl.BlockSpec((1, 1, 28, 28), lambda b: (b, 0, 0, 0))]
                + [_const_spec(a.shape) for a in args])

    out = pl.pallas_call(
        _model_c_kernel,
        out_shape=jax.ShapeDtypeStruct((B, 1, 10), jnp.float32),
        grid=(B,),
        in_specs=in_specs,
        out_specs=pl.BlockSpec((1, 1, 10), lambda b: (b, 0, 0)),
        scratch_shapes=[pltpu.VMEM((16, 12 * 16), jnp.float32),   # H-padded pool1
                        pltpu.VMEM((8, 6 * 32), jnp.float32)],    # H-padded pool2
        compiler_params=pltpu.CompilerParams(
            dimension_semantics=("parallel",)),                   # megacore on v7x
    )(x_nchw.astype(jnp.float32), *args)
    return out[:, 0, :]


# ---------------------------------------------------------------------------
# Host-side weight packing (runs once, pure numpy)
# ---------------------------------------------------------------------------

def _band_weights(w, w_in, w_out, pad):
    """Fold the (kw, Cin) taps of a (5,5,Cin,Cout) conv weight into per-kh
    block-banded matrices of shape (5, w_in*Cin, w_out*Cout) that operate on
    (H, W*Cin) activation slabs.  Width zero-padding = drop out-of-range taps."""
    cin, cout = w.shape[2], w.shape[3]
    band = np.zeros((5, w_in * cin, w_out * cout), np.float32)
    for kh in range(5):
        for wo in range(w_out):
            for kw in range(5):
                wi = wo + kw - pad
                if 0 <= wi < w_in:
                    band[kh, wi * cin:(wi + 1) * cin,
                         wo * cout:(wo + 1) * cout] = w[kh, kw]
    return band


def _pool_selectors(w_in, chan):
    """One-hot column-gather matrices picking even / odd W positions."""
    w_out = w_in // 2
    sel = np.zeros((2, w_in * chan, w_out * chan), np.float32)
    for par in range(2):
        for v in range(w_out):
            for c in range(chan):
                sel[par, (2 * v + par) * chan + c, v * chan + c] = 1.0
    return sel


def _row_selectors(h_in):
    """One-hot row-gather matrices picking even / odd H positions."""
    h_out = h_in // 2
    sel = np.zeros((2, h_out, h_in), np.float32)
    for par in range(2):
        for v in range(h_out):
            sel[par, v, 2 * v + par] = 1.0
    return sel


def pack_params(p):
    """Pack 'math layout' weights into the operands the fused kernel consumes.

    Correspondence with the PyTorch module's parameters:
      w1[kh,kw,n]   == conv1.weight[n, 0, kh, kw]
      w2[kh,kw,c,n] == conv2.weight[n, c, kh, kw]
      w3[kh,kw,c,n] == conv3.weight[n, c, kh, kw]
      wf1[h,w,c,n]  == fc1.weight[n, c*16 + h*4 + w]   (absorbs the NCHW flatten)
      wf2[k,n]      == fc2.weight[n, k],  wf3[k,n] == fc3.weight[n, k]
    """
    a = lambda v: np.asarray(v, np.float32)
    w1, w2, w3 = a(p["w1"]), a(p["w2"]), a(p["w3"])
    packed = {
        "w1b": _band_weights(w1[:, :, None, :], 28, 24, 0),   # (5, 28, 384)
        "b1t": np.tile(a(p["b1"]), 24)[None, :],              # (1, 384)
        "ws1": _pool_selectors(24, 16),                       # (2, 384, 192)
        "hs1": _row_selectors(24),                            # (2, 12, 24)
        "w2b": _band_weights(w2, 12, 12, 2),                  # (5, 192, 384)
        "b2t": np.tile(a(p["b2"]), 12)[None, :],              # (1, 384)
        "ws2": _pool_selectors(12, 32),                       # (2, 384, 192)
        "hs2": _row_selectors(12),                            # (2, 6, 12)
        "w3b": _band_weights(w3, 6, 4, 1),                    # (5, 192, 48)
        "b3t": np.tile(a(p["b3"]), 4)[None, :],               # (1, 48)
        "wf1": a(p["wf1"]).reshape(4, 48, 50),                # (4, 48, 50)
        "bf1": a(p["bf1"])[None, :],
        "wf2": a(p["wf2"]),
        "bf2": a(p["bf2"])[None, :],
        "wf3": a(p["wf3"]),
        "bf3": a(p["bf3"])[None, :],
    }
    return {k: jnp.asarray(v) for k, v in packed.items()}


def init_params(key):
    """Deterministic synthetic parameters in 'math' layout (see pack_params)."""
    ks = jax.random.split(key, 12)

    def w(k, shape, fan_in):
        return jax.random.normal(k, shape, jnp.float32) / np.sqrt(fan_in)

    return {
        "w1": w(ks[0], (5, 5, 16), 25.0),       "b1": w(ks[1], (16,), 25.0),
        "w2": w(ks[2], (5, 5, 16, 32), 400.0),  "b2": w(ks[3], (32,), 400.0),
        "w3": w(ks[4], (5, 5, 32, 12), 800.0),  "b3": w(ks[5], (12,), 800.0),
        "wf1": w(ks[6], (4, 4, 12, 50), 192.0), "bf1": w(ks[7], (50,), 192.0),
        "wf2": w(ks[8], (50, 100), 50.0),       "bf2": w(ks[9], (100,), 50.0),
        "wf3": w(ks[10], (100, 10), 100.0),     "bf3": w(ks[11], (10,), 100.0),
    }


# ---------------------------------------------------------------------------
# Pure-JAX (XLA) reference with the same parameters, for a sanity check
# ---------------------------------------------------------------------------

def reference_forward(x_nchw, p):
    hi = jax.lax.Precision.HIGHEST
    x = jnp.transpose(x_nchw, (0, 2, 3, 1)).astype(jnp.float32)   # NHWC

    def conv(t, w, b, pad):
        y = jax.lax.conv_general_dilated(
            t, w, window_strides=(1, 1), padding=[(pad, pad), (pad, pad)],
            dimension_numbers=("NHWC", "HWIO", "NHWC"), precision=hi)
        return y + b

    def pool(t):
        B, H, W, C = t.shape
        return t.reshape(B, H // 2, 2, W // 2, 2, C).max(axis=(2, 4))

    t = pool(jax.nn.relu(conv(x, p["w1"][:, :, None, :], p["b1"], 0)))
    t = pool(jax.nn.relu(conv(t, p["w2"], p["b2"], 2)))
    t = jax.nn.relu(conv(t, p["w3"], p["b3"], 1))          # (B, 4, 4, 12)
    f = t.reshape(t.shape[0], -1)                          # (h, w, c) flatten order
    f = jax.nn.relu(jnp.dot(f, p["wf1"].reshape(192, 50), precision=hi) + p["bf1"])
    f = jax.nn.relu(jnp.dot(f, p["wf2"], precision=hi) + p["bf2"])
    return jnp.dot(f, p["wf3"], precision=hi) + p["bf3"]


# ---------------------------------------------------------------------------

if __name__ == "__main__":
    # The classifier's Linear(12*4*4, ...) forces a 28x28 single-channel input.
    x = jax.random.normal(jax.random.PRNGKey(0), (2, 1, 28, 28), jnp.float32)
    params = init_params(jax.random.PRNGKey(42))
    packed = pack_params(params)

    fwd = jax.jit(model_c_forward)
    out = jax.block_until_ready(fwd(x, packed))
    assert out.shape == (2, 10), out.shape
    assert out.dtype == jnp.float32

    ref = jax.block_until_ready(jax.jit(reference_forward)(x, params))
    err = float(jnp.max(jnp.abs(out - ref)))
    assert err < 3e-2, f"kernel/reference mismatch: max abs err = {err}"
    print("KERNEL_OK")
</pallas_src>

<mosaic_0001>
module attributes {stable_mosaic.version = 11 : i64} {
  func.func @_model_c_kernel(%arg0: i32, %arg1: memref<1x1x28x28xf32, #tpu.memory_space<vmem>>, %arg2: memref<5x28x384xf32, #tpu.memory_space<vmem>>, %arg3: memref<1x384xf32, #tpu.memory_space<vmem>>, %arg4: memref<2x384x192xf32, #tpu.memory_space<vmem>>, %arg5: memref<2x12x24xf32, #tpu.memory_space<vmem>>, %arg6: memref<5x192x384xf32, #tpu.memory_space<vmem>>, %arg7: memref<1x384xf32, #tpu.memory_space<vmem>>, %arg8: memref<2x384x192xf32, #tpu.memory_space<vmem>>, %arg9: memref<2x6x12xf32, #tpu.memory_space<vmem>>, %arg10: memref<5x192x48xf32, #tpu.memory_space<vmem>>, %arg11: memref<1x48xf32, #tpu.memory_space<vmem>>, %arg12: memref<4x48x50xf32, #tpu.memory_space<vmem>>, %arg13: memref<1x50xf32, #tpu.memory_space<vmem>>, %arg14: memref<50x100xf32, #tpu.memory_space<vmem>>, %arg15: memref<1x100xf32, #tpu.memory_space<vmem>>, %arg16: memref<100x10xf32, #tpu.memory_space<vmem>>, %arg17: memref<1x10xf32, #tpu.memory_space<vmem>>, %arg18: memref<1x1x10xf32, #tpu.memory_space<vmem>>, %arg19: memref<16x192xf32, #tpu.memory_space<vmem>>, %arg20: memref<8x192xf32, #tpu.memory_space<vmem>>) attributes {dimension_semantics = [#tpu.dimension_semantics<parallel>], iteration_bounds = array<i64: 2>, scalar_prefetch = 0 : i64, scratch_operands = 2 : i64, tpu.core_type = #tpu.core_type<tc>, window_params = [{transform_indices = @transform_0, window_bounds = array<i64: 1, 1, 28, 28>}, {pipeline_mode = #tpu.pipeline_mode<synchronous>, transform_indices = @transform_1, window_bounds = array<i64: 5, 28, 384>}, {pipeline_mode = #tpu.pipeline_mode<synchronous>, transform_indices = @transform_2, window_bounds = array<i64: 1, 384>}, {pipeline_mode = #tpu.pipeline_mode<synchronous>, transform_indices = @transform_3, window_bounds = array<i64: 2, 384, 192>}, {pipeline_mode = #tpu.pipeline_mode<synchronous>, transform_indices = @transform_4, window_bounds = array<i64: 2, 12, 24>}, {pipeline_mode = #tpu.pipeline_mode<synchronous>, transform_indices = @transform_5, window_bounds = array<i64: 5, 192, 384>}, {pipeline_mode = #tpu.pipeline_mode<synchronous>, transform_indices = @transform_6, window_bounds = array<i64: 1, 384>}, {pipeline_mode = #tpu.pipeline_mode<synchronous>, transform_indices = @transform_7, window_bounds = array<i64: 2, 384, 192>}, {pipeline_mode = #tpu.pipeline_mode<synchronous>, transform_indices = @transform_8, window_bounds = array<i64: 2, 6, 12>}, {pipeline_mode = #tpu.pipeline_mode<synchronous>, transform_indices = @transform_9, window_bounds = array<i64: 5, 192, 48>}, {pipeline_mode = #tpu.pipeline_mode<synchronous>, transform_indices = @transform_10, window_bounds = array<i64: 1, 48>}, {pipeline_mode = #tpu.pipeline_mode<synchronous>, transform_indices = @transform_11, window_bounds = array<i64: 4, 48, 50>}, {pipeline_mode = #tpu.pipeline_mode<synchronous>, transform_indices = @transform_12, window_bounds = array<i64: 1, 50>}, {pipeline_mode = #tpu.pipeline_mode<synchronous>, transform_indices = @transform_13, window_bounds = array<i64: 50, 100>}, {pipeline_mode = #tpu.pipeline_mode<synchronous>, transform_indices = @transform_14, window_bounds = array<i64: 1, 100>}, {pipeline_mode = #tpu.pipeline_mode<synchronous>, transform_indices = @transform_15, window_bounds = array<i64: 100, 10>}, {pipeline_mode = #tpu.pipeline_mode<synchronous>, transform_indices = @transform_16, window_bounds = array<i64: 1, 10>}, {transform_indices = @transform_17, window_bounds = array<i64: 1, 1, 10>}]} {
    %c0 = arith.constant 0 : index
    %c0_0 = arith.constant 0 : index
    %c0_1 = arith.constant 0 : index
    %c0_2 = arith.constant 0 : index
    %0 = vector.load %arg1[%c0, %c0_0, %c0_1, %c0_2] : memref<1x1x28x28xf32, #tpu.memory_space<vmem>>, vector<1x1x24x28xf32>
    %1 = vector.shape_cast %0 : vector<1x1x24x28xf32> to vector<24x28xf32>
    %c0_3 = arith.constant 0 : index
    %c0_4 = arith.constant 0 : index
    %c0_5 = arith.constant 0 : index
    %2 = vector.load %arg2[%c0_3, %c0_4, %c0_5] : memref<5x28x384xf32, #tpu.memory_space<vmem>>, vector<1x28x384xf32>
    %3 = vector.shape_cast %2 : vector<1x28x384xf32> to vector<28x384xf32>
    %cst = arith.constant dense<0.000000e+00> : vector<24x384xf32>
    %4 = tpu.matmul %1, %3, %cst {dimension_numbers = #tpu.dot_dimension_numbers<[1], [0], [0], [1], [0, 0, 1, 1], [], []>} : vector<24x28xf32>, vector<28x384xf32>, vector<24x384xf32> -> vector<24x384xf32>
    %c0_6 = arith.constant 0 : index
    %c0_7 = arith.constant 0 : index
    %c1 = arith.constant 1 : index
    %c0_8 = arith.constant 0 : index
    %5 = vector.load %arg1[%c0_6, %c0_7, %c1, %c0_8] : memref<1x1x28x28xf32, #tpu.memory_space<vmem>>, vector<1x1x24x28xf32>
    %6 = vector.shape_cast %5 : vector<1x1x24x28xf32> to vector<24x28xf32>
    %c1_9 = arith.constant 1 : index
    %c0_10 = arith.constant 0 : index
    %c0_11 = arith.constant 0 : index
    %7 = vector.load %arg2[%c1_9, %c0_10, %c0_11] : memref<5x28x384xf32, #tpu.memory_space<vmem>>, vector<1x28x384xf32>
    %8 = vector.shape_cast %7 : vector<1x28x384xf32> to vector<28x384xf32>
    %cst_12 = arith.constant dense<0.000000e+00> : vector<24x384xf32>
    %9 = tpu.matmul %6, %8, %cst_12 {dimension_numbers = #tpu.dot_dimension_numbers<[1], [0], [0], [1], [0, 0, 1, 1], [], []>} : vector<24x28xf32>, vector<28x384xf32>, vector<24x384xf32> -> vector<24x384xf32>
    %10 = arith.addf %4, %9 : vector<24x384xf32>
    %c0_13 = arith.constant 0 : index
    %c0_14 = arith.constant 0 : index
    %c2 = arith.constant 2 : index
    %c0_15 = arith.constant 0 : index
    %11 = vector.load %arg1[%c0_13, %c0_14, %c2, %c0_15] : memref<1x1x28x28xf32, #tpu.memory_space<vmem>>, vector<1x1x24x28xf32>
    %12 = vector.shape_cast %11 : vector<1x1x24x28xf32> to vector<24x28xf32>
    %c2_16 = arith.constant 2 : index
    %c0_17 = arith.constant 0 : index
    %c0_18 = arith.constant 0 : index
    %13 = vector.load %arg2[%c2_16, %c0_17, %c0_18] : memref<5x28x384xf32, #tpu.memory_space<vmem>>, vector<1x28x384xf32>
    %14 = vector.shape_cast %13 : vector<1x28x384xf32> to vector<28x384xf32>
    %cst_19 = arith.constant dense<0.000000e+00> : vector<24x384xf32>
    %15 = tpu.matmul %12, %14, %cst_19 {dimension_numbers = #tpu.dot_dimension_numbers<[1], [0], [0], [1], [0, 0, 1, 1], [], []>} : vector<24x28xf32>, vector<28x384xf32>, vector<24x384xf32> -> vector<24x384xf32>
    %16 = arith.addf %10, %15 : vector<24x384xf32>
    %c0_20 = arith.constant 0 : index
    %c0_21 = arith.constant 0 : index
    %c3 = arith.constant 3 : index
    %c0_22 = arith.constant 0 : index
    %17 = vector.load %arg1[%c0_20, %c0_21, %c3, %c0_22] : memref<1x1x28x28xf32, #tpu.memory_space<vmem>>, vector<1x1x24x28xf32>
    %18 = vector.shape_cast %17 : vector<1x1x24x28xf32> to vector<24x28xf32>
    %c3_23 = arith.constant 3 : index
    %c0_24 = arith.constant 0 : index
    %c0_25 = arith.constant 0 : index
    %19 = vector.load %arg2[%c3_23, %c0_24, %c0_25] : memref<5x28x384xf32, #tpu.memory_space<vmem>>, vector<1x28x384xf32>
    %20 = vector.shape_cast %19 : vector<1x28x384xf32> to vector<28x384xf32>
    %cst_26 = arith.constant dense<0.000000e+00> : vector<24x384xf32>
    %21 = tpu.matmul %18, %20, %cst_26 {dimension_numbers = #tpu.dot_dimension_numbers<[1], [0], [0], [1], [0, 0, 1, 1], [], []>} : vector<24x28xf32>, vector<28x384xf32>, vector<24x384xf32> -> vector<24x384xf32>
    %22 = arith.addf %16, %21 : vector<24x384xf32>
    %c0_27 = arith.constant 0 : index
    %c0_28 = arith.constant 0 : index
    %c4 = arith.constant 4 : index
    %c0_29 = arith.constant 0 : index
    %23 = vector.load %arg1[%c0_27, %c0_28, %c4, %c0_29] : memref<1x1x28x28xf32, #tpu.memory_space<vmem>>, vector<1x1x24x28xf32>
    %24 = vector.shape_cast %23 : vector<1x1x24x28xf32> to vector<24x28xf32>
    %c4_30 = arith.constant 4 : index
    %c0_31 = arith.constant 0 : index
    %c0_32 = arith.constant 0 : index
    %25 = vector.load %arg2[%c4_30, %c0_31, %c0_32] : memref<5x28x384xf32, #tpu.memory_space<vmem>>, vector<1x28x384xf32>
    %26 = vector.shape_cast %25 : vector<1x28x384xf32> to vector<28x384xf32>
    %cst_33 = arith.constant dense<0.000000e+00> : vector<24x384xf32>
    %27 = tpu.matmul %24, %26, %cst_33 {dimension_numbers = #tpu.dot_dimension_numbers<[1], [0], [0], [1], [0, 0, 1, 1], [], []>} : vector<24x28xf32>, vector<28x384xf32>, vector<24x384xf32> -> vector<24x384xf32>
    %28 = arith.addf %22, %27 : vector<24x384xf32>
    %c0_34 = arith.constant 0 : index
    %c0_35 = arith.constant 0 : index
    %29 = vector.load %arg3[%c0_34, %c0_35] : memref<1x384xf32, #tpu.memory_space<vmem>>, vector<1x384xf32>
    %30 = vector.broadcast %29 : vector<1x384xf32> to vector<24x384xf32>
    %31 = arith.addf %28, %30 : vector<24x384xf32>
    %cst_36 = arith.constant 0.000000e+00 : f32
    %32 = vector.broadcast %cst_36 : f32 to vector<24x384xf32>
    %33 = arith.maximumf %31, %32 : vector<24x384xf32>
    %cst_37 = arith.constant 0.000000e+00 : f32
    %34 = vector.broadcast %cst_37 : f32 to vector<16x192xf32>
    %c0_38 = arith.constant 0 : index
    %c0_39 = arith.constant 0 : index
    %35 = vector.load %arg19[%c0_38, %c0_39] : memref<16x192xf32, #tpu.memory_space<vmem>>, vector<16x192xf32>
    tpu.vector_store %arg19[%c0_38, %c0_39], %34 {strides = array<i32>} : memref<16x192xf32, #tpu.memory_space<vmem>>, vector<16x192xf32>,
    %c0_40 = arith.constant 0 : index
    %c0_41 = arith.constant 0 : index
    %c0_42 = arith.constant 0 : index
    %36 = vector.load %arg4[%c0_40, %c0_41, %c0_42] : memref<2x384x192xf32, #tpu.memory_space<vmem>>, vector<1x384x192xf32>
    %37 = vector.shape_cast %36 : vector<1x384x192xf32> to vector<384x192xf32>
    %cst_43 = arith.constant dense<0.000000e+00> : vector<24x192xf32>
    %38 = tpu.matmul %33, %37, %cst_43 {dimension_numbers = #tpu.dot_dimension_numbers<[1], [0], [0], [1], [0, 0, 1, 1], [], []>} : vector<24x384xf32>, vector<384x192xf32>, vector<24x192xf32> -> vector<24x192xf32>
    %c1_44 = arith.constant 1 : index
    %c0_45 = arith.constant 0 : index
    %c0_46 = arith.constant 0 : index
    %39 = vector.load %arg4[%c1_44, %c0_45, %c0_46] : memref<2x384x192xf32, #tpu.memory_space<vmem>>, vector<1x384x192xf32>
    %40 = vector.shape_cast %39 : vector<1x384x192xf32> to vector<384x192xf32>
    %cst_47 = arith.constant dense<0.000000e+00> : vector<24x192xf32>
    %41 = tpu.matmul %33, %40, %cst_47 {dimension_numbers = #tpu.dot_dimension_numbers<[1], [0], [0], [1], [0, 0, 1, 1], [], []>} : vector<24x384xf32>, vector<384x192xf32>, vector<24x192xf32> -> vector<24x192xf32>
    %42 = arith.maximumf %38, %41 : vector<24x192xf32>
    %c0_48 = arith.constant 0 : index
    %c0_49 = arith.constant 0 : index
    %c0_50 = arith.constant 0 : index
    %43 = vector.load %arg5[%c0_48, %c0_49, %c0_50] : memref<2x12x24xf32, #tpu.memory_space<vmem>>, vector<1x12x24xf32>
    %44 = vector.shape_cast %43 : vector<1x12x24xf32> to vector<12x24xf32>
    %cst_51 = arith.constant dense<0.000000e+00> : vector<12x192xf32>
    %45 = tpu.matmul %44, %42, %cst_51 {dimension_numbers = #tpu.dot_dimension_numbers<[1], [0], [0], [1], [0, 0, 1, 1], [], []>} : vector<12x24xf32>, vector<24x192xf32>, vector<12x192xf32> -> vector<12x192xf32>
    %c1_52 = arith.constant 1 : index
    %c0_53 = arith.constant 0 : index
    %c0_54 = arith.constant 0 : index
    %46 = vector.load %arg5[%c1_52, %c0_53, %c0_54] : memref<2x12x24xf32, #tpu.memory_space<vmem>>, vector<1x12x24xf32>
    %47 = vector.shape_cast %46 : vector<1x12x24xf32> to vector<12x24xf32>
    %cst_55 = arith.constant dense<0.000000e+00> : vector<12x192xf32>
    %48 = tpu.matmul %47, %42, %cst_55 {dimension_numbers = #tpu.dot_dimension_numbers<[1], [0], [0], [1], [0, 0, 1, 1], [], []>} : vector<12x24xf32>, vector<24x192xf32>, vector<12x192xf32> -> vector<12x192xf32>
    %49 = arith.maximumf %45, %48 : vector<12x192xf32>
    %c2_56 = arith.constant 2 : index
    %c0_57 = arith.constant 0 : index
    %50 = vector.load %arg19[%c2_56, %c0_57] : memref<16x192xf32, #tpu.memory_space<vmem>>, vector<12x192xf32>
    tpu.vector_store %arg19[%c2_56, %c0_57], %49 {strides = array<i32>} : memref<16x192xf32, #tpu.memory_space<vmem>>, vector<12x192xf32>,
    %c0_58 = arith.constant 0 : index
    %c0_59 = arith.constant 0 : index
    %51 = vector.load %arg19[%c0_58, %c0_59] : memref<16x192xf32, #tpu.memory_space<vmem>>, vector<12x192xf32>
    %c0_60 = arith.constant 0 : index
    %c0_61 = arith.constant 0 : index
    %c0_62 = arith.constant 0 : index
    %52 = vector.load %arg6[%c0_60, %c0_61, %c0_62] : memref<5x192x384xf32, #tpu.memory_space<vmem>>, vector<1x192x384xf32>
    %53 = vector.shape_cast %52 : vector<1x192x384xf32> to vector<192x384xf32>
    %cst_63 = arith.constant dense<0.000000e+00> : vector<12x384xf32>
    %54 = tpu.matmul %51, %53, %cst_63 {dimension_numbers = #tpu.dot_dimension_numbers<[1], [0], [0], [1], [0, 0, 1, 1], [], []>} : vector<12x192xf32>, vector<192x384xf32>, vector<12x384xf32> -> vector<12x384xf32>
    %c1_64 = arith.constant 1 : index
    %c0_65 = arith.constant 0 : index
    %55 = vector.load %arg19[%c1_64, %c0_65] : memref<16x192xf32, #tpu.memory_space<vmem>>, vector<12x192xf32>
    %c1_66 = arith.constant 1 : index
    %c0_67 = arith.constant 0 : index
    %c0_68 = arith.constant 0 : index
    %56 = vector.load %arg6[%c1_66, %c0_67, %c0_68] : memref<5x192x384xf32, #tpu.memory_space<vmem>>, vector<1x192x384xf32>
    %57 = vector.shape_cast %56 : vector<1x192x384xf32> to vector<192x384xf32>
    %cst_69 = arith.constant dense<0.000000e+00> : vector<12x384xf32>
    %58 = tpu.matmul %55, %57, %cst_69 {dimension_numbers = #tpu.dot_dimension_numbers<[1], [0], [0], [1], [0, 0, 1, 1], [], []>} : vector<12x192xf32>, vector<192x384xf32>, vector<12x384xf32> -> vector<12x384xf32>
    %59 = arith.addf %54, %58 : vector<12x384xf32>
    %c2_70 = arith.constant 2 : index
    %c0_71 = arith.constant 0 : index
    %60 = vector.load %arg19[%c2_70, %c0_71] : memref<16x192xf32, #tpu.memory_space<vmem>>, vector<12x192xf32>
    %c2_72 = arith.constant 2 : index
    %c0_73 = arith.constant 0 : index
    %c0_74 = arith.constant 0 : index
    %61 = vector.load %arg6[%c2_72, %c0_73, %c0_74] : memref<5x192x384xf32, #tpu.memory_space<vmem>>, vector<1x192x384xf32>
    %62 = vector.shape_cast %61 : vector<1x192x384xf32> to vector<192x384xf32>
    %cst_75 = arith.constant dense<0.000000e+00> : vector<12x384xf32>
    %63 = tpu.matmul %60, %62, %cst_75 {dimension_numbers = #tpu.dot_dimension_numbers<[1], [0], [0], [1], [0, 0, 1, 1], [], []>} : vector<12x192xf32>, vector<192x384xf32>, vector<12x384xf32> -> vector<12x384xf32>
    %64 = arith.addf %59, %63 : vector<12x384xf32>
    %c3_76 = arith.constant 3 : index
    %c0_77 = arith.constant 0 : index
    %65 = vector.load %arg19[%c3_76, %c0_77] : memref<16x192xf32, #tpu.memory_space<vmem>>, vector<12x192xf32>
    %c3_78 = arith.constant 3 : index
    %c0_79 = arith.constant 0 : index
    %c0_80 = arith.constant 0 : index
    %66 = vector.load %arg6[%c3_78, %c0_79, %c0_80] : memref<5x192x384xf32, #tpu.memory_space<vmem>>, vector<1x192x384xf32>
    %67 = vector.shape_cast %66 : vector<1x192x384xf32> to vector<192x384xf32>
    %cst_81 = arith.constant dense<0.000000e+00> : vector<12x384xf32>
    %68 = tpu.matmul %65, %67, %cst_81 {dimension_numbers = #tpu.dot_dimension_numbers<[1], [0], [0], [1], [0, 0, 1, 1], [], []>} : vector<12x192xf32>, vector<192x384xf32>, vector<12x384xf32> -> vector<12x384xf32>
    %69 = arith.addf %64, %68 : vector<12x384xf32>
    %c4_82 = arith.constant 4 : index
    %c0_83 = arith.constant 0 : index
    %70 = vector.load %arg19[%c4_82, %c0_83] : memref<16x192xf32, #tpu.memory_space<vmem>>, vector<12x192xf32>
    %c4_84 = arith.constant 4 : index
    %c0_85 = arith.constant 0 : index
    %c0_86 = arith.constant 0 : index
    %71 = vector.load %arg6[%c4_84, %c0_85, %c0_86] : memref<5x192x384xf32, #tpu.memory_space<vmem>>, vector<1x192x384xf32>
    %72 = vector.shape_cast %71 : vector<1x192x384xf32> to vector<192x384xf32>
    %cst_87 = arith.constant dense<0.000000e+00> : vector<12x384xf32>
    %73 = tpu.matmul %70, %72, %cst_87 {dimension_numbers = #tpu.dot_dimension_numbers<[1], [0], [0], [1], [0, 0, 1, 1], [], []>} : vector<12x192xf32>, vector<192x384xf32>, vector<12x384xf32> -> vector<12x384xf32>
    %74 = arith.addf %69, %73 : vector<12x384xf32>
    %c0_88 = arith.constant 0 : index
    %c0_89 = arith.constant 0 : index
    %75 = vector.load %arg7[%c0_88, %c0_89] : memref<1x384xf32, #tpu.memory_space<vmem>>, vector<1x384xf32>
    %76 = vector.broadcast %75 : vector<1x384xf32> to vector<12x384xf32>
    %77 = arith.addf %74, %76 : vector<12x384xf32>
    %cst_90 = arith.constant 0.000000e+00 : f32
    %78 = vector.broadcast %cst_90 : f32 to vector<12x384xf32>
    %79 = arith.maximumf %77, %78 : vector<12x384xf32>
    %cst_91 = arith.constant 0.000000e+00 : f32
    %80 = vector.broadcast %cst_91 : f32 to vector<8x192xf32>
    %c0_92 = arith.constant 0 : index
    %c0_93 = arith.constant 0 : index
    %81 = vector.load %arg20[%c0_92, %c0_93] : memref<8x192xf32, #tpu.memory_space<vmem>>, vector<8x192xf32>
    tpu.vector_store %arg20[%c0_92, %c0_93], %80 {strides = array<i32>} : memref<8x192xf32, #tpu.memory_space<vmem>>, vector<8x192xf32>,
    %c0_94 = arith.constant 0 : index
    %c0_95 = arith.constant 0 : index
    %c0_96 = arith.constant 0 : index
    %82 = vector.load %arg8[%c0_94, %c0_95, %c0_96] : memref<2x384x192xf32, #tpu.memory_space<vmem>>, vector<1x384x192xf32>
    %83 = vector.shape_cast %82 : vector<1x384x192xf32> to vector<384x192xf32>
    %cst_97 = arith.constant dense<0.000000e+00> : vector<12x192xf32>
    %84 = tpu.matmul %79, %83, %cst_97 {dimension_numbers = #tpu.dot_dimension_numbers<[1], [0], [0], [1], [0, 0, 1, 1], [], []>} : vector<12x384xf32>, vector<384x192xf32>, vector<12x192xf32> -> vector<12x192xf32>
    %c1_98 = arith.constant 1 : index
    %c0_99 = arith.constant 0 : index
    %c0_100 = arith.constant 0 : index
    %85 = vector.load %arg8[%c1_98, %c0_99, %c0_100] : memref<2x384x192xf32, #tpu.memory_space<vmem>>, vector<1x384x192xf32>
    %86 = vector.shape_cast %85 : vector<1x384x192xf32> to vector<384x192xf32>
    %cst_101 = arith.constant dense<0.000000e+00> : vector<12x192xf32>
    %87 = tpu.matmul %79, %86, %cst_101 {dimension_numbers = #tpu.dot_dimension_numbers<[1], [0], [0], [1], [0, 0, 1, 1], [], []>} : vector<12x384xf32>, vector<384x192xf32>, vector<12x192xf32> -> vector<12x192xf32>
    %88 = arith.maximumf %84, %87 : vector<12x192xf32>
    %c0_102 = arith.constant 0 : index
    %c0_103 = arith.constant 0 : index
    %c0_104 = arith.constant 0 : index
    %89 = vector.load %arg9[%c0_102, %c0_103, %c0_104] : memref<2x6x12xf32, #tpu.memory_space<vmem>>, vector<1x6x12xf32>
    %90 = vector.shape_cast %89 : vector<1x6x12xf32> to vector<6x12xf32>
    %cst_105 = arith.constant dense<0.000000e+00> : vector<6x192xf32>
    %91 = tpu.matmul %90, %88, %cst_105 {dimension_numbers = #tpu.dot_dimension_numbers<[1], [0], [0], [1], [0, 0, 1, 1], [], []>} : vector<6x12xf32>, vector<12x192xf32>, vector<6x192xf32> -> vector<6x192xf32>
    %c1_106 = arith.constant 1 : index
    %c0_107 = arith.constant 0 : index
    %c0_108 = arith.constant 0 : index
    %92 = vector.load %arg9[%c1_106, %c0_107, %c0_108] : memref<2x6x12xf32, #tpu.memory_space<vmem>>, vector<1x6x12xf32>
    %93 = vector.shape_cast %92 : vector<1x6x12xf32> to vector<6x12xf32>
    %cst_109 = arith.constant dense<0.000000e+00> : vector<6x192xf32>
    %94 = tpu.matmul %93, %88, %cst_109 {dimension_numbers = #tpu.dot_dimension_numbers<[1], [0], [0], [1], [0, 0, 1, 1], [], []>} : vector<6x12xf32>, vector<12x192xf32>, vector<6x192xf32> -> vector<6x192xf32>
    %95 = arith.maximumf %91, %94 : vector<6x192xf32>
    %c1_110 = arith.constant 1 : index
    %c0_111 = arith.constant 0 : index
    %96 = vector.load %arg20[%c1_110, %c0_111] : memref<8x192xf32, #tpu.memory_space<vmem>>, vector<6x192xf32>
    tpu.vector_store %arg20[%c1_110, %c0_111], %95 {strides = array<i32>} : memref<8x192xf32, #tpu.memory_space<vmem>>, vector<6x192xf32>,
    %c0_112 = arith.constant 0 : index
    %c0_113 = arith.constant 0 : index
    %97 = vector.load %arg20[%c0_112, %c0_113] : memref<8x192xf32, #tpu.memory_space<vmem>>, vector<4x192xf32>
    %c0_114 = arith.constant 0 : index
    %c0_115 = arith.constant 0 : index
    %c0_116 = arith.constant 0 : index
    %98 = vector.load %arg10[%c0_114, %c0_115, %c0_116] : memref<5x192x48xf32, #tpu.memory_space<vmem>>, vector<1x192x48xf32>
    %99 = vector.shape_cast %98 : vector<1x192x48xf32> to vector<192x48xf32>
    %cst_117 = arith.constant dense<0.000000e+00> : vector<4x48xf32>
    %100 = tpu.matmul %97, %99, %cst_117 {dimension_numbers = #tpu.dot_dimension_numbers<[1], [0], [0], [1], [0, 0, 1, 1], [], []>} : vector<4x192xf32>, vector<192x48xf32>, vector<4x48xf32> -> vector<4x48xf32>
    %c1_118 = arith.constant 1 : index
    %c0_119 = arith.constant 0 : index
    %101 = vector.load %arg20[%c1_118, %c0_119] : memref<8x192xf32, #tpu.memory_space<vmem>>, vector<4x192xf32>
    %c1_120 = arith.constant 1 : index
    %c0_121 = arith.constant 0 : index
    %c0_122 = arith.constant 0 : index
    %102 = vector.load %arg10[%c1_120, %c0_121, %c0_122] : memref<5x192x48xf32, #tpu.memory_space<vmem>>, vector<1x192x48xf32>
    %103 = vector.shape_cast %102 : vector<1x192x48xf32> to vector<192x48xf32>
    %cst_123 = arith.constant dense<0.000000e+00> : vector<4x48xf32>
    %104 = tpu.matmul %101, %103, %cst_123 {dimension_numbers = #tpu.dot_dimension_numbers<[1], [0], [0], [1], [0, 0, 1, 1], [], []>} : vector<4x192xf32>, vector<192x48xf32>, vector<4x48xf32> -> vector<4x48xf32>
    %105 = arith.addf %100, %104 : vector<4x48xf32>
    %c2_124 = arith.constant 2 : index
    %c0_125 = arith.constant 0 : index
    %106 = vector.load %arg20[%c2_124, %c0_125] : memref<8x192xf32, #tpu.memory_space<vmem>>, vector<4x192xf32>
    %c2_126 = arith.constant 2 : index
    %c0_127 = arith.constant 0 : index
    %c0_128 = arith.constant 0 : index
    %107 = vector.load %arg10[%c2_126, %c0_127, %c0_128] : memref<5x192x48xf32, #tpu.memory_space<vmem>>, vector<1x192x48xf32>
    %108 = vector.shape_cast %107 : vector<1x192x48xf32> to vector<192x48xf32>
    %cst_129 = arith.constant dense<0.000000e+00> : vector<4x48xf32>
    %109 = tpu.matmul %106, %108, %cst_129 {dimension_numbers = #tpu.dot_dimension_numbers<[1], [0], [0], [1], [0, 0, 1, 1], [], []>} : vector<4x192xf32>, vector<192x48xf32>, vector<4x48xf32> -> vector<4x48xf32>
    %110 = arith.addf %105, %109 : vector<4x48xf32>
    %c3_130 = arith.constant 3 : index
    %c0_131 = arith.constant 0 : index
    %111 = vector.load %arg20[%c3_130, %c0_131] : memref<8x192xf32, #tpu.memory_space<vmem>>, vector<4x192xf32>
    %c3_132 = arith.constant 3 : index
    %c0_133 = arith.constant 0 : index
    %c0_134 = arith.constant 0 : index
    %112 = vector.load %arg10[%c3_132, %c0_133, %c0_134] : memref<5x192x48xf32, #tpu.memory_space<vmem>>, vector<1x192x48xf32>
    %113 = vector.shape_cast %112 : vector<1x192x48xf32> to vector<192x48xf32>
    %cst_135 = arith.constant dense<0.000000e+00> : vector<4x48xf32>
    %114 = tpu.matmul %111, %113, %cst_135 {dimension_numbers = #tpu.dot_dimension_numbers<[1], [0], [0], [1], [0, 0, 1, 1], [], []>} : vector<4x192xf32>, vector<192x48xf32>, vector<4x48xf32> -> vector<4x48xf32>
    %115 = arith.addf %110, %114 : vector<4x48xf32>
    %c4_136 = arith.constant 4 : index
    %c0_137 = arith.constant 0 : index
    %116 = vector.load %arg20[%c4_136, %c0_137] : memref<8x192xf32, #tpu.memory_space<vmem>>, vector<4x192xf32>
    %c4_138 = arith.constant 4 : index
    %c0_139 = arith.constant 0 : index
    %c0_140 = arith.constant 0 : index
    %117 = vector.load %arg10[%c4_138, %c0_139, %c0_140] : memref<5x192x48xf32, #tpu.memory_space<vmem>>, vector<1x192x48xf32>
    %118 = vector.shape_cast %117 : vector<1x192x48xf32> to vector<192x48xf32>
    %cst_141 = arith.constant dense<0.000000e+00> : vector<4x48xf32>
    %119 = tpu.matmul %116, %118, %cst_141 {dimension_numbers = #tpu.dot_dimension_numbers<[1], [0], [0], [1], [0, 0, 1, 1], [], []>} : vector<4x192xf32>, vector<192x48xf32>, vector<4x48xf32> -> vector<4x48xf32>
    %120 = arith.addf %115, %119 : vector<4x48xf32>
    %c0_142 = arith.constant 0 : index
    %c0_143 = arith.constant 0 : index
    %121 = vector.load %arg11[%c0_142, %c0_143] : memref<1x48xf32, #tpu.memory_space<vmem>>, vector<1x48xf32>
    %122 = vector.broadcast %121 : vector<1x48xf32> to vector<4x48xf32>
    %123 = arith.addf %120, %122 : vector<4x48xf32>
    %cst_144 = arith.constant 0.000000e+00 : f32
    %124 = vector.broadcast %cst_144 : f32 to vector<4x48xf32>
    %125 = arith.maximumf %123, %124 : vector<4x48xf32>
    %126 = vector.extract_strided_slice %125 {offsets = [0, 0], sizes = [1, 48], strides = [1, 1]} : vector<4x48xf32> to vector<1x48xf32>
    %c0_145 = arith.constant 0 : index
    %c0_146 = arith.constant 0 : index
    %c0_147 = arith.constant 0 : index
    %127 = vector.load %arg12[%c0_145, %c0_146, %c0_147] : memref<4x48x50xf32, #tpu.memory_space<vmem>>, vector<1x48x50xf32>
    %128 = vector.shape_cast %127 : vector<1x48x50xf32> to vector<48x50xf32>
    %cst_148 = arith.constant dense<0.000000e+00> : vector<1x50xf32>
    %129 = tpu.matmul %126, %128, %cst_148 {dimension_numbers = #tpu.dot_dimension_numbers<[1], [0], [0], [1], [0, 0, 1, 1], [], []>} : vector<1x48xf32>, vector<48x50xf32>, vector<1x50xf32> -> vector<1x50xf32>
    %130 = vector.extract_strided_slice %125 {offsets = [1, 0], sizes = [1, 48], strides = [1, 1]} : vector<4x48xf32> to vector<1x48xf32>
    %c1_149 = arith.constant 1 : index
    %c0_150 = arith.constant 0 : index
    %c0_151 = arith.constant 0 : index
    %131 = vector.load %arg12[%c1_149, %c0_150, %c0_151] : memref<4x48x50xf32, #tpu.memory_space<vmem>>, vector<1x48x50xf32>
    %132 = vector.shape_cast %131 : vector<1x48x50xf32> to vector<48x50xf32>
    %cst_152 = arith.constant dense<0.000000e+00> : vector<1x50xf32>
    %133 = tpu.matmul %130, %132, %cst_152 {dimension_numbers = #tpu.dot_dimension_numbers<[1], [0], [0], [1], [0, 0, 1, 1], [], []>} : vector<1x48xf32>, vector<48x50xf32>, vector<1x50xf32> -> vector<1x50xf32>
    %134 = arith.addf %129, %133 : vector<1x50xf32>
    %135 = vector.extract_strided_slice %125 {offsets = [2, 0], sizes = [1, 48], strides = [1, 1]} : vector<4x48xf32> to vector<1x48xf32>
    %c2_153 = arith.constant 2 : index
    %c0_154 = arith.constant 0 : index
    %c0_155 = arith.constant 0 : index
    %136 = vector.load %arg12[%c2_153, %c0_154, %c0_155] : memref<4x48x50xf32, #tpu.memory_space<vmem>>, vector<1x48x50xf32>
    %137 = vector.shape_cast %136 : vector<1x48x50xf32> to vector<48x50xf32>
    %cst_156 = arith.constant dense<0.000000e+00> : vector<1x50xf32>
    %138 = tpu.matmul %135, %137, %cst_156 {dimension_numbers = #tpu.dot_dimension_numbers<[1], [0], [0], [1], [0, 0, 1, 1], [], []>} : vector<1x48xf32>, vector<48x50xf32>, vector<1x50xf32> -> vector<1x50xf32>
    %139 = arith.addf %134, %138 : vector<1x50xf32>
    %140 = vector.extract_strided_slice %125 {offsets = [3, 0], sizes = [1, 48], strides = [1, 1]} : vector<4x48xf32> to vector<1x48xf32>
    %c3_157 = arith.constant 3 : index
    %c0_158 = arith.constant 0 : index
    %c0_159 = arith.constant 0 : index
    %141 = vector.load %arg12[%c3_157, %c0_158, %c0_159] : memref<4x48x50xf32, #tpu.memory_space<vmem>>, vector<1x48x50xf32>
    %142 = vector.shape_cast %141 : vector<1x48x50xf32> to vector<48x50xf32>
    %cst_160 = arith.constant dense<0.000000e+00> : vector<1x50xf32>
    %143 = tpu.matmul %140, %142, %cst_160 {dimension_numbers = #tpu.dot_dimension_numbers<[1], [0], [0], [1], [0, 0, 1, 1], [], []>} : vector<1x48xf32>, vector<48x50xf32>, vector<1x50xf32> -> vector<1x50xf32>
    %144 = arith.addf %139, %143 : vector<1x50xf32>
    %c0_161 = arith.constant 0 : index
    %c0_162 = arith.constant 0 : index
    %145 = vector.load %arg13[%c0_161, %c0_162] : memref<1x50xf32, #tpu.memory_space<vmem>>, vector<1x50xf32>
    %146 = arith.addf %144, %145 : vector<1x50xf32>
    %cst_163 = arith.constant 0.000000e+00 : f32
    %147 = vector.broadcast %cst_163 : f32 to vector<1x50xf32>
    %148 = arith.maximumf %146, %147 : vector<1x50xf32>
    %c0_164 = arith.constant 0 : index
    %c0_165 = arith.constant 0 : index
    %149 = vector.load %arg14[%c0_164, %c0_165] : memref<50x100xf32, #tpu.memory_space<vmem>>, vector<50x100xf32>
    %cst_166 = arith.constant dense<0.000000e+00> : vector<1x100xf32>
    %150 = tpu.matmul %148, %149, %cst_166 {dimension_numbers = #tpu.dot_dimension_numbers<[1], [0], [0], [1], [0, 0, 1, 1], [], []>} : vector<1x50xf32>, vector<50x100xf32>, vector<1x100xf32> -> vector<1x100xf32>
    %c0_167 = arith.constant 0 : index
    %c0_168 = arith.constant 0 : index
    %151 = vector.load %arg15[%c0_167, %c0_168] : memref<1x100xf32, #tpu.memory_space<vmem>>, vector<1x100xf32>
    %152 = arith.addf %150, %151 : vector<1x100xf32>
    %cst_169 = arith.constant 0.000000e+00 : f32
    %153 = vector.broadcast %cst_169 : f32 to vector<1x100xf32>
    %154 = arith.maximumf %152, %153 : vector<1x100xf32>
    %c0_170 = arith.constant 0 : index
    %c0_171 = arith.constant 0 : index
    %155 = vector.load %arg16[%c0_170, %c0_171] : memref<100x10xf32, #tpu.memory_space<vmem>>, vector<100x10xf32>
    %cst_172 = arith.constant dense<0.000000e+00> : vector<1x10xf32>
    %156 = tpu.matmul %154, %155, %cst_172 {dimension_numbers = #tpu.dot_dimension_numbers<[1], [0], [0], [1], [0, 0, 1, 1], [], []>} : vector<1x100xf32>, vector<100x10xf32>, vector<1x10xf32> -> vector<1x10xf32>
    %c0_173 = arith.constant 0 : index
    %c0_174 = arith.constant 0 : index
    %157 = vector.load %arg17[%c0_173, %c0_174] : memref<1x10xf32, #tpu.memory_space<vmem>>, vector<1x10xf32>
    %158 = arith.addf %156, %157 : vector<1x10xf32>
    %c0_175 = arith.constant 0 : index
    %c0_176 = arith.constant 0 : index
    %c0_177 = arith.constant 0 : index
    %159 = vector.load %arg18[%c0_175, %c0_176, %c0_177] : memref<1x1x10xf32, #tpu.memory_space<vmem>>, vector<1x1x10xf32>
    %160 = vector.shape_cast %159 : vector<1x1x10xf32> to vector<1x10xf32>
    %161 = vector.shape_cast %158 : vector<1x10xf32> to vector<1x1x10xf32>
    tpu.vector_store %arg18[%c0_175, %c0_176, %c0_177], %161 {strides = array<i32>} : memref<1x1x10xf32, #tpu.memory_space<vmem>>, vector<1x1x10xf32>,
    return
  }
  func.func @transform_0(%arg0: i32) -> (i32, i32, i32, i32) {
    %c0_i32 = arith.constant 0 : i32
    %c0_i32_0 = arith.constant 0 : i32
    %c0_i32_1 = arith.constant 0 : i32
    %c0_i32_2 = arith.constant 0 : i32
    return %arg0, %c0_i32, %c0_i32_0, %c0_i32_1 : i32, i32, i32, i32
  }
  func.func @transform_1(%arg0: i32) -> (i32, i32, i32) {
    %c0_i32 = arith.constant 0 : i32
    %c0_i32_0 = arith.constant 0 : i32
    %c0_i32_1 = arith.constant 0 : i32
    %c0_i32_2 = arith.constant 0 : i32
    return %c0_i32, %c0_i32_0, %c0_i32_1 : i32, i32, i32
  }
  func.func @transform_2(%arg0: i32) -> (i32, i32) {
    %c0_i32 = arith.constant 0 : i32
    %c0_i32_0 = arith.constant 0 : i32
    %c0_i32_1 = arith.constant 0 : i32
    return %c0_i32, %c0_i32_0 : i32, i32
  }
  func.func @transform_3(%arg0: i32) -> (i32, i32, i32) {
    %c0_i32 = arith.constant 0 : i32
    %c0_i32_0 = arith.constant 0 : i32
    %c0_i32_1 = arith.constant 0 : i32
    %c0_i32_2 = arith.constant 0 : i32
    return %c0_i32, %c0_i32_0, %c0_i32_1 : i32, i32, i32
  }
  func.func @transform_4(%arg0: i32) -> (i32, i32, i32) {
    %c0_i32 = arith.constant 0 : i32
    %c0_i32_0 = arith.constant 0 : i32
    %c0_i32_1 = arith.constant 0 : i32
    %c0_i32_2 = arith.constant 0 : i32
    return %c0_i32, %c0_i32_0, %c0_i32_1 : i32, i32, i32
  }
  func.func @transform_5(%arg0: i32) -> (i32, i32, i32) {
    %c0_i32 = arith.constant 0 : i32
    %c0_i32_0 = arith.constant 0 : i32
    %c0_i32_1 = arith.constant 0 : i32
    %c0_i32_2 = arith.constant 0 : i32
    return %c0_i32, %c0_i32_0, %c0_i32_1 : i32, i32, i32
  }
  func.func @transform_6(%arg0: i32) -> (i32, i32) {
    %c0_i32 = arith.constant 0 : i32
    %c0_i32_0 = arith.constant 0 : i32
    %c0_i32_1 = arith.constant 0 : i32
    return %c0_i32, %c0_i32_0 : i32, i32
  }
  func.func @transform_7(%arg0: i32) -> (i32, i32, i32) {
    %c0_i32 = arith.constant 0 : i32
    %c0_i32_0 = arith.constant 0 : i32
    %c0_i32_1 = arith.constant 0 : i32
    %c0_i32_2 = arith.constant 0 : i32
    return %c0_i32, %c0_i32_0, %c0_i32_1 : i32, i32, i32
  }
  func.func @transform_8(%arg0: i32) -> (i32, i32, i32) {
    %c0_i32 = arith.constant 0 : i32
    %c0_i32_0 = arith.constant 0 : i32
    %c0_i32_1 = arith.constant 0 : i32
    %c0_i32_2 = arith.constant 0 : i32
    return %c0_i32, %c0_i32_0, %c0_i32_1 : i32, i32, i32
  }
  func.func @transform_9(%arg0: i32) -> (i32, i32, i32) {
    %c0_i32 = arith.constant 0 : i32
    %c0_i32_0 = arith.constant 0 : i32
    %c0_i32_1 = arith.constant 0 : i32
    %c0_i32_2 = arith.constant 0 : i32
    return %c0_i32, %c0_i32_0, %c0_i32_1 : i32, i32, i32
  }
  func.func @transform_10(%arg0: i32) -> (i32, i32) {
    %c0_i32 = arith.constant 0 : i32
    %c0_i32_0 = arith.constant 0 : i32
    %c0_i32_1 = arith.constant 0 : i32
    return %c0_i32, %c0_i32_0 : i32, i32
  }
  func.func @transform_11(%arg0: i32) -> (i32, i32, i32) {
    %c0_i32 = arith.constant 0 : i32
    %c0_i32_0 = arith.constant 0 : i32
    %c0_i32_1 = arith.constant 0 : i32
    %c0_i32_2 = arith.constant 0 : i32
    return %c0_i32, %c0_i32_0, %c0_i32_1 : i32, i32, i32
  }
  func.func @transform_12(%arg0: i32) -> (i32, i32) {
    %c0_i32 = arith.constant 0 : i32
    %c0_i32_0 = arith.constant 0 : i32
    %c0_i32_1 = arith.constant 0 : i32
    return %c0_i32, %c0_i32_0 : i32, i32
  }
  func.func @transform_13(%arg0: i32) -> (i32, i32) {
    %c0_i32 = arith.constant 0 : i32
    %c0_i32_0 = arith.constant 0 : i32
    %c0_i32_1 = arith.constant 0 : i32
    return %c0_i32, %c0_i32_0 : i32, i32
  }
  func.func @transform_14(%arg0: i32) -> (i32, i32) {
    %c0_i32 = arith.constant 0 : i32
    %c0_i32_0 = arith.constant 0 : i32
    %c0_i32_1 = arith.constant 0 : i32
    return %c0_i32, %c0_i32_0 : i32, i32
  }
  func.func @transform_15(%arg0: i32) -> (i32, i32) {
    %c0_i32 = arith.constant 0 : i32
    %c0_i32_0 = arith.constant 0 : i32
    %c0_i32_1 = arith.constant 0 : i32
    return %c0_i32, %c0_i32_0 : i32, i32
  }
  func.func @transform_16(%arg0: i32) -> (i32, i32) {
    %c0_i32 = arith.constant 0 : i32
    %c0_i32_0 = arith.constant 0 : i32
    %c0_i32_1 = arith.constant 0 : i32
    return %c0_i32, %c0_i32_0 : i32, i32
  }
  func.func @transform_17(%arg0: i32) -> (i32, i32, i32) {
    %c0_i32 = arith.constant 0 : i32
    %c0_i32_0 = arith.constant 0 : i32
    %c0_i32_1 = arith.constant 0 : i32
    return %arg0, %c0_i32, %c0_i32_0 : i32, i32, i32
  }
}

</mosaic_0001>

<llo_original>
// kernel: model_c_forward.1
$region0: #{model_c_forward.1}
  #allocation0 [shape = 'u32[]', space=smem, size = 0x4, offset = 0x4, fixed_abs, tag = 'smem constant byte address 0x4 - core index']
  #allocation1 [shape = 'u32[144,128]{1,0:T(1,128)}', space=vmem, size = 0x12000, scoped, tag = 'internal scratch']
  #allocation2 [shape = 'f32[16,192]{1,0:T(8,128)}', space=vmem, size = 0x4000, scoped, tag = 'scratch operand']
  #allocation3 [shape = 'f32[8,192]{1,0:T(8,128)}', space=vmem, size = 0x2000, scoped, tag = 'scratch operand']
  %s0 = inlined_call_operand.vmem [shape: f32[2,1,28,28], index: 0, kind: input, shape index: {}]
  %s1 = inlined_call_operand.vmem [shape: f32[5,28,384], index: 1, kind: input, shape index: {}]
  %s2 = inlined_call_operand.vmem [shape: f32[1,384], index: 2, kind: input, shape index: {}]
  %s3 = inlined_call_operand.vmem [shape: f32[2,384,192], index: 3, kind: input, shape index: {}]
  %s4 = inlined_call_operand.vmem [shape: f32[2,12,24], index: 4, kind: input, shape index: {}]
  %s5 = inlined_call_operand.vmem [shape: f32[5,192,384], index: 5, kind: input, shape index: {}]
  %s6 = inlined_call_operand.vmem [shape: f32[1,384], index: 6, kind: input, shape index: {}]
  %s7 = inlined_call_operand.vmem [shape: f32[2,384,192], index: 7, kind: input, shape index: {}]
  %s8 = inlined_call_operand.vmem [shape: f32[2,6,12], index: 8, kind: input, shape index: {}]
  %s9 = inlined_call_operand.vmem [shape: f32[5,192,48], index: 9, kind: input, shape index: {}]
  %s10 = inlined_call_operand.vmem [shape: f32[1,48], index: 10, kind: input, shape index: {}]
  %s11 = inlined_call_operand.vmem [shape: f32[4,48,50], index: 11, kind: input, shape index: {}]
  %s12 = inlined_call_operand.vmem [shape: f32[1,50], index: 12, kind: input, shape index: {}]
  %s13 = inlined_call_operand.vmem [shape: f32[50,100], index: 13, kind: input, shape index: {}]
  %s14 = inlined_call_operand.vmem [shape: f32[1,100], index: 14, kind: input, shape index: {}]
  %s15 = inlined_call_operand.vmem [shape: f32[100,10], index: 15, kind: input, shape index: {}]
  %s16 = inlined_call_operand.vmem [shape: f32[1,10], index: 16, kind: input, shape index: {}]
  %s17 = inlined_call_operand.hbm [shape: f32[2,1,10], index: 17, kind: output, shape index: {}]
  %s18 = sld [smem:[#allocation0]]
  $region101: #{model_c_forward.1} parent=0
    _
  %s20 = ssub.s32 1, %s18
  %s21 = scalar_select 0, %s20, %s18
  $region1: #{model_c_forward.1} parent=0
    #allocation4 [shape = 'u8[1024]{0}', space=vmem, size = 0x400, scoped, tag = 'output window, operand 0']
    #allocation5 [shape = 's32[2]{0}', space=sflag, size = 0x8, scoped, tag = 'scoped memory for model_c_forward.1']
    %22 = vsyncpa [#allocation5], 0
    %s23 = scalar_lea.sflag [#allocation5], 1
    %24 = vsyncpa %s23, 0
    loop: start=0, step=1, limit=4
    $region2: #{model_c_forward.1} parent=1 // loop_pre_header
      _
    $region3: #{model_c_forward.1} parent=1 // loop_header
      %s26 = sphi 0, %s30
      %p27 = scmp.ge.s32.totalorder %s26, 4
      %s36 = sphi 0, %s38
      %s39 = sphi 0, %s36
      %s40 = sphi 0, %s39
      %s56 = sphi 0, %s40
      %s60 = sphi 0, %s60
      %s62 = sphi 0, %s60
      %s63 = sphi 0, %s62
      %s77 = sphi 0, %s63
      %s81 = sphi 0, %s81
      %s83 = sphi 0, %s81
      %s84 = sphi 0, %s83
      %s98 = sphi 0, %s84
      %s102 = sphi 0, %s102
      %s104 = sphi 0, %s102
      %s105 = sphi 0, %s104
      %s119 = sphi 0, %s105
      %s123 = sphi 0, %s123
      %s125 = sphi 0, %s123
      %s126 = sphi 0, %s125
      %s140 = sphi 0, %s126
      %s144 = sphi 0, %s144
      %s146 = sphi 0, %s144
      %s147 = sphi 0, %s146
      %s161 = sphi 0, %s147
      %s165 = sphi 0, %s165
      %s167 = sphi 0, %s165
      %s168 = sphi 0, %s167
      %s182 = sphi 0, %s168
      %s186 = sphi 0, %s186
      %s188 = sphi 0, %s186
      %s189 = sphi 0, %s188
      %s203 = sphi 0, %s189
      %s207 = sphi 0, %s207
      %s209 = sphi 0, %s207
      %s210 = sphi 0, %s209
      %s224 = sphi 0, %s210
      %s228 = sphi 0, %s228
      %s230 = sphi 0, %s228
      %s231 = sphi 0, %s230
      %s245 = sphi 0, %s231
      %s249 = sphi 0, %s249
      %s251 = sphi 0, %s249
      %s252 = sphi 0, %s251
      %s266 = sphi 0, %s252
      %s270 = sphi 0, %s270
      %s272 = sphi 0, %s270
      %s273 = sphi 0, %s272
      %s287 = sphi 0, %s273
      %s291 = sphi 0, %s291
      %s293 = sphi 0, %s291
      %s294 = sphi 0, %s293
      %s308 = sphi 0, %s294
      %s312 = sphi 0, %s312
      %s314 = sphi 0, %s312
      %s315 = sphi 0, %s314
      %s329 = sphi 0, %s315
      %s333 = sphi 0, %s333
      %s335 = sphi 0, %s333
      %s336 = sphi 0, %s335
      %s350 = sphi 0, %s336
      %s354 = sphi 0, %s354
      %s356 = sphi 0, %s354
      %s357 = sphi 0, %s356
      %s371 = sphi 0, %s357
      %s375 = sphi 0, %s375
      %s377 = sphi 0, %s375
      %s378 = sphi 0, %s377
      %s392 = sphi 0, %s378
      %s398 = sphi 0, %s400
      %s401 = sphi 0, %s398
      %s402 = sphi 0, %s401
      %s418 = sphi 0, %s402
    $region4: #{model_c_forward.1} parent=1 // loop_header_branch
      %29 = sbr.rel (%p27) target = $region8
    $region5: #{model_c_forward.1} parent=1 // loop_body
      %s31 = ssub.s32 %s26, 1
      %s32 = ssub.s32 %s26, 2
      %s33 = sadd.s32 %s26, 1
      %s34 = ssub.s32 %s26, %s33
      %p35 = scmp.eq.s32.totalorder %s34, 0
      %s37 = sadd.s32 %s36, 1
      %s38 = scalar_select %p35, %s36, %s37
      %p41 = pneg %p35
      %p42 = scmp.eq.s32.totalorder %s26, 1
      %p43 = por %p41, %p42
      %p44 = scmp.ne.s32.totalorder %s36, %s39
      %p45 = scmp.eq.s32.totalorder %s26, 0
      %p46 = por %p44, %p45
      %p47 = scmp.ne.s32.totalorder %s36, %s39
      %p48 = scmp.eq.s32.totalorder %s31, 1
      %p49 = por %p47, %p48
      %p50 = scmp.ne.s32.totalorder %s39, %s40
      %p51 = scmp.eq.s32.totalorder %s31, 0
      %p52 = por %p50, %p51
      %p53 = scmp.ne.s32.totalorder %s39, %s40
      %p54 = scmp.eq.s32.totalorder %s32, 1
      %p55 = por %p53, %p54
      %p57 = scmp.ne.s32.totalorder %s40, %s56
      %p58 = scmp.eq.s32.totalorder %s32, 0
      %p59 = por %p57, %p58
      %s61 = sadd.s32 %s60, 1
      %p64 = scmp.eq.s32.totalorder %s26, 1
      %p65 = scmp.ne.s32.totalorder %s60, %s62
      %p66 = scmp.eq.s32.totalorder %s26, 0
      %p67 = por %p65, %p66
      %p68 = scmp.ne.s32.totalorder %s60, %s62
      %p69 = scmp.eq.s32.totalorder %s31, 1
      %p70 = por %p68, %p69
      %p71 = scmp.ne.s32.totalorder %s62, %s63
      %p72 = scmp.eq.s32.totalorder %s31, 0
      %p73 = por %p71, %p72
      %p74 = scmp.ne.s32.totalorder %s62, %s63
      %p75 = scmp.eq.s32.totalorder %s32, 1
      %p76 = por %p74, %p75
      %p78 = scmp.ne.s32.totalorder %s63, %s77
      %p79 = scmp.eq.s32.totalorder %s32, 0
      %p80 = por %p78, %p79
      %s82 = sadd.s32 %s81, 1
      %p85 = scmp.eq.s32.totalorder %s26, 1
      %p86 = scmp.ne.s32.totalorder %s81, %s83
      %p87 = scmp.eq.s32.totalorder %s26, 0
      %p88 = por %p86, %p87
      %p89 = scmp.ne.s32.totalorder %s81, %s83
      %p90 = scmp.eq.s32.totalorder %s31, 1
      %p91 = por %p89, %p90
      %p92 = scmp.ne.s32.totalorder %s83, %s84
      %p93 = scmp.eq.s32.totalorder %s31, 0
      %p94 = por %p92, %p93
      %p95 = scmp.ne.s32.totalorder %s83, %s84
      %p96 = scmp.eq.s32.totalorder %s32, 1
      %p97 = por %p95, %p96
      %p99 = scmp.ne.s32.totalorder %s84, %s98
      %p100 = scmp.eq.s32.totalorder %s32, 0
      %p101 = por %p99, %p100
      %s103 = sadd.s32 %s102, 1
      %p106 = scmp.eq.s32.totalorder %s26, 1
      %p107 = scmp.ne.s32.totalorder %s102, %s104
      %p108 = scmp.eq.s32.totalorder %s26, 0
      %p109 = por %p107, %p108
      %p110 = scmp.ne.s32.totalorder %s102, %s104
      %p111 = scmp.eq.s32.totalorder %s31, 1
      %p112 = por %p110, %p111
      %p113 = scmp.ne.s32.totalorder %s104, %s105
      %p114 = scmp.eq.s32.totalorder %s31, 0
      %p115 = por %p113, %p114
      %p116 = scmp.ne.s32.totalorder %s104, %s105
      %p117 = scmp.eq.s32.totalorder %s32, 1
      %p118 = por %p116, %p117
      %p120 = scmp.ne.s32.totalorder %s105, %s119
      %p121 = scmp.eq.s32.totalorder %s32, 0
      %p122 = por %p120, %p121
      %s124 = sadd.s32 %s123, 1
      %p127 = scmp.eq.s32.totalorder %s26, 1
      %p128 = scmp.ne.s32.totalorder %s123, %s125
      %p129 = scmp.eq.s32.totalorder %s26, 0
      %p130 = por %p128, %p129
      %p131 = scmp.ne.s32.totalorder %s123, %s125
      %p132 = scmp.eq.s32.totalorder %s31, 1
      %p133 = por %p131, %p132
      %p134 = scmp.ne.s32.totalorder %s125, %s126
      %p135 = scmp.eq.s32.totalorder %s31, 0
      %p136 = por %p134, %p135
      %p137 = scmp.ne.s32.totalorder %s125, %s126
      %p138 = scmp.eq.s32.totalorder %s32, 1
      %p139 = por %p137, %p138
      %p141 = scmp.ne.s32.totalorder %s126, %s140
      %p142 = scmp.eq.s32.totalorder %s32, 0
      %p143 = por %p141, %p142
      %s145 = sadd.s32 %s144, 1
      %p148 = scmp.eq.s32.totalorder %s26, 1
      %p149 = scmp.ne.s32.totalorder %s144, %s146
      %p150 = scmp.eq.s32.totalorder %s26, 0
      %p151 = por %p149, %p150
      %p152 = scmp.ne.s32.totalorder %s144, %s146
      %p153 = scmp.eq.s32.totalorder %s31, 1
      %p154 = por %p152, %p153
      %p155 = scmp.ne.s32.totalorder %s146, %s147
      %p156 = scmp.eq.s32.totalorder %s31, 0
      %p157 = por %p155, %p156
      %p158 = scmp.ne.s32.totalorder %s146, %s147
      %p159 = scmp.eq.s32.totalorder %s32, 1
      %p160 = por %p158, %p159
      %p162 = scmp.ne.s32.totalorder %s147, %s161
      %p163 = scmp.eq.s32.totalorder %s32, 0
      %p164 = por %p162, %p163
      %s166 = sadd.s32 %s165, 1
      %p169 = scmp.eq.s32.totalorder %s26, 1
      %p170 = scmp.ne.s32.totalorder %s165, %s167
      %p171 = scmp.eq.s32.totalorder %s26, 0
      %p172 = por %p170, %p171
      %p173 = scmp.ne.s32.totalorder %s165, %s167
      %p174 = scmp.eq.s32.totalorder %s31, 1
      %p175 = por %p173, %p174
      %p176 = scmp.ne.s32.totalorder %s167, %s168
      %p177 = scmp.eq.s32.totalorder %s31, 0
      %p178 = por %p176, %p177
      %p179 = scmp.ne.s32.totalorder %s167, %s168
      %p180 = scmp.eq.s32.totalorder %s32, 1
      %p181 = por %p179, %p180
      %p183 = scmp.ne.s32.totalorder %s168, %s182
      %p184 = scmp.eq.s32.totalorder %s32, 0
      %p185 = por %p183, %p184
      %s187 = sadd.s32 %s186, 1
      %p190 = scmp.eq.s32.totalorder %s26, 1
      %p191 = scmp.ne.s32.totalorder %s186, %s188
      %p192 = scmp.eq.s32.totalorder %s26, 0
      %p193 = por %p191, %p192
      %p194 = scmp.ne.s32.totalorder %s186, %s188
      %p195 = scmp.eq.s32.totalorder %s31, 1
      %p196 = por %p194, %p195
      %p197 = scmp.ne.s32.totalorder %s188, %s189
      %p198 = scmp.eq.s32.totalorder %s31, 0
      %p199 = por %p197, %p198
      %p200 = scmp.ne.s32.totalorder %s188, %s189
      %p201 = scmp.eq.s32.totalorder %s32, 1
      %p202 = por %p200, %p201
      %p204 = scmp.ne.s32.totalorder %s189, %s203
      %p205 = scmp.eq.s32.totalorder %s32, 0
      %p206 = por %p204, %p205
      %s208 = sadd.s32 %s207, 1
      %p211 = scmp.eq.s32.totalorder %s26, 1
      %p212 = scmp.ne.s32.totalorder %s207, %s209
      %p213 = scmp.eq.s32.totalorder %s26, 0
      %p214 = por %p212, %p213
      %p215 = scmp.ne.s32.totalorder %s207, %s209
      %p216 = scmp.eq.s32.totalorder %s31, 1
      %p217 = por %p215, %p216
      %p218 = scmp.ne.s32.totalorder %s209, %s210
      %p219 = scmp.eq.s32.totalorder %s31, 0
      %p220 = por %p218, %p219
      %p221 = scmp.ne.s32.totalorder %s209, %s210
      %p222 = scmp.eq.s32.totalorder %s32, 1
      %p223 = por %p221, %p222
      %p225 = scmp.ne.s32.totalorder %s210, %s224
      %p226 = scmp.eq.s32.totalorder %s32, 0
      %p227 = por %p225, %p226
      %s229 = sadd.s32 %s228, 1
      %p232 = scmp.eq.s32.totalorder %s26, 1
      %p233 = scmp.ne.s32.totalorder %s228, %s230
      %p234 = scmp.eq.s32.totalorder %s26, 0
      %p235 = por %p233, %p234
      %p236 = scmp.ne.s32.totalorder %s228, %s230
      %p237 = scmp.eq.s32.totalorder %s31, 1
      %p238 = por %p236, %p237
      %p239 = scmp.ne.s32.totalorder %s230, %s231
      %p240 = scmp.eq.s32.totalorder %s31, 0
      %p241 = por %p239, %p240
      %p242 = scmp.ne.s32.totalorder %s230, %s231
      %p243 = scmp.eq.s32.totalorder %s32, 1
      %p244 = por %p242, %p243
      %p246 = scmp.ne.s32.totalorder %s231, %s245
      %p247 = scmp.eq.s32.totalorder %s32, 0
      %p248 = por %p246, %p247
      %s250 = sadd.s32 %s249, 1
      %p253 = scmp.eq.s32.totalorder %s26, 1
      %p254 = scmp.ne.s32.totalorder %s249, %s251
      %p255 = scmp.eq.s32.totalorder %s26, 0
      %p256 = por %p254, %p255
      %p257 = scmp.ne.s32.totalorder %s249, %s251
      %p258 = scmp.eq.s32.totalorder %s31, 1
      %p259 = por %p257, %p258
      %p260 = scmp.ne.s32.totalorder %s251, %s252
      %p261 = scmp.eq.s32.totalorder %s31, 0
      %p262 = por %p260, %p261
      %p263 = scmp.ne.s32.totalorder %s251, %s252
      %p264 = scmp.eq.s32.totalorder %s32, 1
      %p265 = por %p263, %p264
      %p267 = scmp.ne.s32.totalorder %s252, %s266
      %p268 = scmp.eq.s32.totalorder %s32, 0
      %p269 = por %p267, %p268
      %s271 = sadd.s32 %s270, 1
      %p274 = scmp.eq.s32.totalorder %s26, 1
      %p275 = scmp.ne.s32.totalorder %s270, %s272
      %p276 = scmp.eq.s32.totalorder %s26, 0
      %p277 = por %p275, %p276
      %p278 = scmp.ne.s32.totalorder %s270, %s272
      %p279 = scmp.eq.s32.totalorder %s31, 1
      %p280 = por %p278, %p279
      %p281 = scmp.ne.s32.totalorder %s272, %s273
      %p282 = scmp.eq.s32.totalorder %s31, 0
      %p283 = por %p281, %p282
      %p284 = scmp.ne.s32.totalorder %s272, %s273
      %p285 = scmp.eq.s32.totalorder %s32, 1
      %p286 = por %p284, %p285
      %p288 = scmp.ne.s32.totalorder %s273, %s287
      %p289 = scmp.eq.s32.totalorder %s32, 0
      %p290 = por %p288, %p289
      %s292 = sadd.s32 %s291, 1
      %p295 = scmp.eq.s32.totalorder %s26, 1
      %p296 = scmp.ne.s32.totalorder %s291, %s293
      %p297 = scmp.eq.s32.totalorder %s26, 0
      %p298 = por %p296, %p297
      %p299 = scmp.ne.s32.totalorder %s291, %s293
      %p300 = scmp.eq.s32.totalorder %s31, 1
      %p301 = por %p299, %p300
      %p302 = scmp.ne.s32.totalorder %s293, %s294
      %p303 = scmp.eq.s32.totalorder %s31, 0
      %p304 = por %p302, %p303
      %p305 = scmp.ne.s32.totalorder %s293, %s294
      %p306 = scmp.eq.s32.totalorder %s32, 1
      %p307 = por %p305, %p306
      %p309 = scmp.ne.s32.totalorder %s294, %s308
      %p310 = scmp.eq.s32.totalorder %s32, 0
      %p311 = por %p309, %p310
      %s313 = sadd.s32 %s312, 1
      %p316 = scmp.eq.s32.totalorder %s26, 1
      %p317 = scmp.ne.s32.totalorder %s312, %s314
      %p318 = scmp.eq.s32.totalorder %s26, 0
      %p319 = por %p317, %p318
      %p320 = scmp.ne.s32.totalorder %s312, %s314
      %p321 = scmp.eq.s32.totalorder %s31, 1
      %p322 = por %p320, %p321
      %p323 = scmp.ne.s32.totalorder %s314, %s315
      %p324 = scmp.eq.s32.totalorder %s31, 0
      %p325 = por %p323, %p324
      %p326 = scmp.ne.s32.totalorder %s314, %s315
      %p327 = scmp.eq.s32.totalorder %s32, 1
      %p328 = por %p326, %p327
      %p330 = scmp.ne.s32.totalorder %s315, %s329
      %p331 = scmp.eq.s32.totalorder %s32, 0
      %p332 = por %p330, %p331
      %s334 = sadd.s32 %s333, 1
      %p337 = scmp.eq.s32.totalorder %s26, 1
      %p338 = scmp.ne.s32.totalorder %s333, %s335
      %p339 = scmp.eq.s32.totalorder %s26, 0
      %p340 = por %p338, %p339
      %p341 = scmp.ne.s32.totalorder %s333, %s335
      %p342 = scmp.eq.s32.totalorder %s31, 1
      %p343 = por %p341, %p342
      %p344 = scmp.ne.s32.totalorder %s335, %s336
      %p345 = scmp.eq.s32.totalorder %s31, 0
      %p346 = por %p344, %p345
      %p347 = scmp.ne.s32.totalorder %s335, %s336
      %p348 = scmp.eq.s32.totalorder %s32, 1
      %p349 = por %p347, %p348
      %p351 = scmp.ne.s32.totalorder %s336, %s350
      %p352 = scmp.eq.s32.totalorder %s32, 0
      %p353 = por %p351, %p352
      %s355 = sadd.s32 %s354, 1
      %p358 = scmp.eq.s32.totalorder %s26, 1
      %p359 = scmp.ne.s32.totalorder %s354, %s356
      %p360 = scmp.eq.s32.totalorder %s26, 0
      %p361 = por %p359, %p360
      %p362 = scmp.ne.s32.totalorder %s354, %s356
      %p363 = scmp.eq.s32.totalorder %s31, 1
      %p364 = por %p362, %p363
      %p365 = scmp.ne.s32.totalorder %s356, %s357
      %p366 = scmp.eq.s32.totalorder %s31, 0
      %p367 = por %p365, %p366
      %p368 = scmp.ne.s32.totalorder %s356, %s357
      %p369 = scmp.eq.s32.totalorder %s32, 1
      %p370 = por %p368, %p369
      %p372 = scmp.ne.s32.totalorder %s357, %s371
      %p373 = scmp.eq.s32.totalorder %s32, 0
      %p374 = por %p372, %p373
      %s376 = sadd.s32 %s375, 1
      %p379 = scmp.eq.s32.totalorder %s26, 1
      %p380 = scmp.ne.s32.totalorder %s375, %s377
      %p381 = scmp.eq.s32.totalorder %s26, 0
      %p382 = por %p380, %p381
      %p383 = scmp.ne.s32.totalorder %s375, %s377
      %p384 = scmp.eq.s32.totalorder %s31, 1
      %p385 = por %p383, %p384
      %p386 = scmp.ne.s32.totalorder %s377, %s378
      %p387 = scmp.eq.s32.totalorder %s31, 0
      %p388 = por %p386, %p387
      %p389 = scmp.ne.s32.totalorder %s377, %s378
      %p390 = scmp.eq.s32.totalorder %s32, 1
      %p391 = por %p389, %p390
      %p393 = scmp.ne.s32.totalorder %s378, %s392
      %p394 = scmp.eq.s32.totalorder %s32, 0
      %p395 = por %p393, %p394
      %s396 = ssub.s32 %s26, %s33
      %p397 = scmp.eq.s32.totalorder %s396, 0
      %s399 = sadd.s32 %s398, 1
      %s400 = scalar_select %p397, %s398, %s399
      %p403 = pneg %p397
      %p404 = scmp.eq.s32.totalorder %s26, 1
      %p405 = por %p403, %p404
      %p406 = scmp.ne.s32.totalorder %s398, %s401
      %p407 = scmp.eq.s32.totalorder %s26, 0
      %p408 = por %p406, %p407
      %p409 = scmp.ne.s32.totalorder %s398, %s401
      %p410 = scmp.eq.s32.totalorder %s31, 1
      %p411 = por %p409, %p410
      %p412 = scmp.ne.s32.totalorder %s401, %s402
      %p413 = scmp.eq.s32.totalorder %s31, 0
      %p414 = por %p412, %p413
      %p415 = scmp.ne.s32.totalorder %s401, %s402
      %p416 = scmp.eq.s32.totalorder %s32, 1
      %p417 = por %p415, %p416
      %p419 = scmp.ne.s32.totalorder %s402, %s418
      %p420 = scmp.eq.s32.totalorder %s32, 0
      %p421 = por %p419, %p420
      %p422 = scmp.le.s32.totalorder 1, %s26
      %p423 = scmp.lt.s32.totalorder %s26, 3
      %p424 = pnand %p422, %p423
      %p425 = pneg %p424
      // Predicated region
      $region9: #{model_c_forward.1} parent=5 // pred_check
        _
      $region10: #{model_c_forward.1} parent=5 // pred_check_branch
        %427 = sbr.rel (%p424) target = $region12
      $region11: #{model_c_forward.1} parent=5 // pred_region
        %s428 = ssub.s32 %s26, 1
        // Predicated region
        $region13: #{model_c_forward.1} parent=11 // pred_check
          %p429 = pneg %p73
        $region14: #{model_c_forward.1} parent=11 // pred_check_branch
          %431 = sbr.rel (%p429) target = $region16
        $region15: #{model_c_forward.1} parent=11 // pred_region
          _
        $region16: #{model_c_forward.1} parent=11 // pred_fallthru
          _
        // Predicated region
        $region17: #{model_c_forward.1} parent=11 // pred_check
          %p432 = pneg %p94
        $region18: #{model_c_forward.1} parent=11 // pred_check_branch
          %434 = sbr.rel (%p432) target = $region20
        $region19: #{model_c_forward.1} parent=11 // pred_region
          _
        $region20: #{model_c_forward.1} parent=11 // pred_fallthru
          _
        // Predicated region
        $region21: #{model_c_forward.1} parent=11 // pred_check
          %p435 = pneg %p115
        $region22: #{model_c_forward.1} parent=11 // pred_check_branch
          %437 = sbr.rel (%p435) target = $region24
        $region23: #{model_c_forward.1} parent=11 // pred_region
          _
        $region24: #{model_c_forward.1} parent=11 // pred_fallthru
          _
        // Predicated region
        $region25: #{model_c_forward.1} parent=11 // pred_check
          %p438 = pneg %p136
        $region26: #{model_c_forward.1} parent=11 // pred_check_branch
          %440 = sbr.rel (%p438) target = $region28
        $region27: #{model_c_forward.1} parent=11 // pred_region
          _
        $region28: #{model_c_forward.1} parent=11 // pred_fallthru
          _
        // Predicated region
        $region29: #{model_c_forward.1} parent=11 // pred_check
          %p441 = pneg %p157
        $region30: #{model_c_forward.1} parent=11 // pred_check_branch
          %443 = sbr.rel (%p441) target = $region32
        $region31: #{model_c_forward.1} parent=11 // pred_region
          _
        $region32: #{model_c_forward.1} parent=11 // pred_fallthru
          _
        // Predicated region
        $region33: #{model_c_forward.1} parent=11 // pred_check
          %p444 = pneg %p178
        $region34: #{model_c_forward.1} parent=11 // pred_check_branch
          %446 = sbr.rel (%p444) target = $region36
        $region35: #{model_c_forward.1} parent=11 // pred_region
          _
        $region36: #{model_c_forward.1} parent=11 // pred_fallthru
          _
        // Predicated region
        $region37: #{model_c_forward.1} parent=11 // pred_check
          %p447 = pneg %p199
        $region38: #{model_c_forward.1} parent=11 // pred_check_branch
          %449 = sbr.rel (%p447) target = $region40
        $region39: #{model_c_forward.1} parent=11 // pred_region
          _
        $region40: #{model_c_forward.1} parent=11 // pred_fallthru
          _
        // Predicated region
        $region41: #{model_c_forward.1} parent=11 // pred_check
          %p450 = pneg %p220
        $region42: #{model_c_forward.1} parent=11 // pred_check_branch
          %452 = sbr.rel (%p450) target = $region44
        $region43: #{model_c_forward.1} parent=11 // pred_region
          _
        $region44: #{model_c_forward.1} parent=11 // pred_fallthru
          _
        // Predicated region
        $region45: #{model_c_forward.1} parent=11 // pred_check
          %p453 = pneg %p241
        $region46: #{model_c_forward.1} parent=11 // pred_check_branch
          %455 = sbr.rel (%p453) target = $region48
        $region47: #{model_c_forward.1} parent=11 // pred_region
          _
        $region48: #{model_c_forward.1} parent=11 // pred_fallthru
          _
        // Predicated region
        $region49: #{model_c_forward.1} parent=11 // pred_check
          %p456 = pneg %p262
        $region50: #{model_c_forward.1} parent=11 // pred_check_branch
          %458 = sbr.rel (%p456) target = $region52
        $region51: #{model_c_forward.1} parent=11 // pred_region
          _
        $region52: #{model_c_forward.1} parent=11 // pred_fallthru
          _
        // Predicated region
        $region53: #{model_c_forward.1} parent=11 // pred_check
          %p459 = pneg %p283
        $region54: #{model_c_forward.1} parent=11 // pred_check_branch
          %461 = sbr.rel (%p459) target = $region56
        $region55: #{model_c_forward.1} parent=11 // pred_region
          _
        $region56: #{model_c_forward.1} parent=11 // pred_fallthru
          _
        // Predicated region
        $region57: #{model_c_forward.1} parent=11 // pred_check
          %p462 = pneg %p304
        $region58: #{model_c_forward.1} parent=11 // pred_check_branch
          %464 = sbr.rel (%p462) target = $region60
        $region59: #{model_c_forward.1} parent=11 // pred_region
          _
        $region60: #{model_c_forward.1} parent=11 // pred_fallthru
          _
        // Predicated region
        $region61: #{model_c_forward.1} parent=11 // pred_check
          %p465 = pneg %p325
        $region62: #{model_c_forward.1} parent=11 // pred_check_branch
          %467 = sbr.rel (%p465) target = $region64
        $region63: #{model_c_forward.1} parent=11 // pred_region
          _
        $region64: #{model_c_forward.1} parent=11 // pred_fallthru
          _
        // Predicated region
        $region65: #{model_c_forward.1} parent=11 // pred_check
          %p468 = pneg %p346
        $region66: #{model_c_forward.1} parent=11 // pred_check_branch
          %470 = sbr.rel (%p468) target = $region68
        $region67: #{model_c_forward.1} parent=11 // pred_region
          _
        $region68: #{model_c_forward.1} parent=11 // pred_fallthru
          _
        // Predicated region
        $region69: #{model_c_forward.1} parent=11 // pred_check
          %p471 = pneg %p367
        $region70: #{model_c_forward.1} parent=11 // pred_check_branch
          %473 = sbr.rel (%p471) target = $region72
        $region71: #{model_c_forward.1} parent=11 // pred_region
          _
        $region72: #{model_c_forward.1} parent=11 // pred_fallthru
          _
        // Predicated region
        $region73: #{model_c_forward.1} parent=11 // pred_check
          %p474 = pneg %p388
        $region74: #{model_c_forward.1} parent=11 // pred_check_branch
          %476 = sbr.rel (%p474) target = $region76
        $region75: #{model_c_forward.1} parent=11 // pred_region
          _
        $region76: #{model_c_forward.1} parent=11 // pred_fallthru
          _
      $region12: #{model_c_forward.1} parent=5 // pred_fallthru
        _
      %p477 = scmp.lt.s32.totalorder %s26, 2
      // Predicated region
      $region77: #{model_c_forward.1} parent=5 // pred_check
        %p478 = pneg %p477
      $region78: #{model_c_forward.1} parent=5 // pred_check_branch
        %480 = sbr.rel (%p478) target = $region80
      $region79: #{model_c_forward.1} parent=5 // pred_region
        // Predicated region
        $region81: #{model_c_forward.1} parent=79 // pred_check
          %p481 = pneg %p46
        $region82: #{model_c_forward.1} parent=79 // pred_check_branch
          %483 = sbr.rel (%p481) target = $region84
        $region83: #{model_c_forward.1} parent=79 // pred_region
          %p484 = scmp.lt.s32.totalorder %s26, 1
          %s485 = scalar_select %p484, %s26, 1
          %s486 = smul.addr %s485, 4
          %s487 = smul.addr %s486, 8
          %s488 = scalar_lea.vmem %s0, %s487
        $region84: #{model_c_forward.1} parent=79 // pred_fallthru
          _
      $region80: #{model_c_forward.1} parent=5 // pred_fallthru
        _
      %p489 = scmp.le.s32.totalorder 1, %s26
      %p490 = scmp.lt.s32.totalorder %s26, 3
      %p491 = pnand %p489, %p490
      %p492 = pneg %p491
      // Predicated region
      $region85: #{model_c_forward.1} parent=5 // pred_check
        _
      $region86: #{model_c_forward.1} parent=5 // pred_check_branch
        %494 = sbr.rel (%p491) target = $region88
      $region87: #{model_c_forward.1} parent=5 // pred_region
        %s495 = ssub.s32 %s26, 1
        %p496 = scmp.lt.s32.totalorder %s31, 1
        %s497 = scalar_select %p496, %s31, 1
        %s498 = smul.addr %s497, 4
        %s499 = smul.addr %s498, 8
        %s500 = scalar_lea.vmem %s0, %s499
        %p501 = pneg %p52
        %p502 = pneg %p49
        %p503 = pneg %p73
        %p504 = pneg %p70
        %p505 = pneg %p94
        %p506 = pneg %p91
        %p507 = pneg %p115
        %p508 = pneg %p112
        %p509 = pneg %p136
        %p510 = pneg %p133
        %p511 = pneg %p157
        %p512 = pneg %p154
        %p513 = pneg %p178
        %p514 = pneg %p175
        %p515 = pneg %p199
        %p516 = pneg %p196
        %p517 = pneg %p220
        %p518 = pneg %p217
        %p519 = pneg %p241
        %p520 = pneg %p238
        %p521 = pneg %p262
        %p522 = pneg %p259
        %p523 = pneg %p283
        %p524 = pneg %p280
        %p525 = pneg %p304
        %p526 = pneg %p301
        %p527 = pneg %p325
        %p528 = pneg %p322
        %p529 = pneg %p346
        %p530 = pneg %p343
        %p531 = pneg %p367
        %p532 = pneg %p364
        %p533 = pneg %p388
        %p534 = pneg %p385
        %p535 = pneg %p414
        %p536 = pneg %p411
        %s537 = sand.u32 %s401, 1
        %s538 = scalar_lea.sflag [#allocation5], %s537
        %s539 = sand.u32 %s401, 1
        %s540 = scalar_lea.vmem [#allocation4], %s539
        %p541 = scmp.lt.s32.totalorder %s31, 1
        %s542 = scalar_select %p541, %s31, 1
        %s543 = smul.addr %s542, 4
        %s544 = smul.addr %s543, 8
        %s545 = scalar_lea.vmem %s0, %s544
        %v546 = vld [vmem:[%s545] sm:$0xff]
        %v547 = vld [vmem:[%s545 + $0x8] sm:$0xff]
        %v548 = vld [vmem:[%s545 + $0x10] sm:$0xff]
        %v549 = vld [vmem:[%s1] sm:$0xff]
        %v550 = vld [vmem:[%s1 + $0x8] sm:$0xff]
        %v551 = vld [vmem:[%s1 + $0x10] sm:$0xff]
        %v552 = vld [vmem:[%s1 + $0x18] sm:$0xff]
        %v553 = vld [vmem:[%s1 + $0x20] sm:$0xff]
        %v554 = vld [vmem:[%s1 + $0x28] sm:$0xff]
        %v555 = vld [vmem:[%s1 + $0x30] sm:$0xff]
        %v556 = vld [vmem:[%s1 + $0x38] sm:$0xff]
        %v557 = vld [vmem:[%s1 + $0x40] sm:$0xff]
        %v558 = vld [vmem:[%s1 + $0x48] sm:$0xf]
        %v559 = vld [vmem:[%s1 + $0x50] sm:$0xf]
        %v560 = vld [vmem:[%s1 + $0x58] sm:$0xf]
        %v561 = vld [vmem:[%s545 + $0x1] sm:$0xff]
        %v562 = vld [vmem:[%s545 + $0x9] sm:$0xff]
        %v563 = vld [vmem:[%s545 + $0x11] sm:$0xff]
        %s564 = scalar_lea.vmem %s1, 96
        %v565 = vld [vmem:[%s564] sm:$0xff]
        %v566 = vld [vmem:[%s564 + $0x8] sm:$0xff]
        %v567 = vld [vmem:[%s564 + $0x10] sm:$0xff]
        %v568 = vld [vmem:[%s564 + $0x18] sm:$0xff]
        %v569 = vld [vmem:[%s564 + $0x20] sm:$0xff]
        %v570 = vld [vmem:[%s564 + $0x28] sm:$0xff]
        %v571 = vld [vmem:[%s564 + $0x30] sm:$0xff]
        %v572 = vld [vmem:[%s564 + $0x38] sm:$0xff]
        %v573 = vld [vmem:[%s564 + $0x40] sm:$0xff]
        %v574 = vld [vmem:[%s564 + $0x48] sm:$0xf]
        %v575 = vld [vmem:[%s564 + $0x50] sm:$0xf]
        %v576 = vld [vmem:[%s564 + $0x58] sm:$0xf]
        %vm577 = vcmask 228352
        %v579 = vsel %vm577, %v561, 0
        %v582 = vsel %vm577, %v562, 0
        %v585 = vsel %vm577, %v563, 0
        %vm587 = vcmask 1043456
        %v589 = vsel %vm587, %v574, 0
        %v592 = vsel %vm587, %v575, 0
        %v595 = vsel %vm587, %v576, 0
        %597 = vmatprep.subr.mxu0 0.0
        %598 = vmatpush1.msra.mxu0 0.0
        %599 = vmatprep.subr.mxu0 0.0
        %600 = vmatpush1.msra.mxu0 0.0
        %601 = vmatprep.subr.mxu0 0.0
        %602 = vmatpush1.msra.mxu0 0.0
        %603 = vmatprep.subr.mxu0 0.0
        %604 = vmatpush1.msra.mxu0 0.0
        %605 = vmatprep.subr.mxu0 0.0
        %606 = vmatpush1.msra.mxu0 0.0
        %607 = vmatprep.subr.mxu0 0.0
        %608 = vmatpush1.msra.mxu0 0.0
        %609 = vmatprep.subr.mxu0 0.0
        %610 = vmatpush1.msra.mxu0 0.0
        %611 = vmatprep.subr.mxu0 0.0
        %612 = vmatpush1.msra.mxu0 0.0
        %613 = vmatprep.subr.mxu0 0.0
        %614 = vmatpush1.msra.mxu0 0.0
        %615 = vmatprep.subr.mxu0 0.0
        %616 = vmatpush1.msra.mxu0 0.0
        %617 = vmatprep.subr.mxu0 0.0
        %618 = vmatpush1.msra.mxu0 0.0
        %619 = vmatprep.subr.mxu0 0.0
        %620 = vmatpush1.msra.mxu0 0.0
        %621 = vmatprep.subr.mxu0 %v592
        %622 = vmatpush1.msra.mxu0 %v589
        %623 = vmatprep.subr.mxu0 %v572
        %624 = vmatpush1.msra.mxu0 %v571
        %625 = vmatprep.subr.mxu0 %v569
        %626 = vmatpush1.msra.mxu0 %v568
        %627 = vmatprep.subr.mxu0 %v566
        %628 = vmatpush1.msra.mxu0 %v565
        %629 = vmatprep.subr.mxu0 0.0
        %630 = vmatpush2.msra.mxu0 0.0
        %631 = vmatprep.subr.mxu0 0.0
        %632 = vmatpush2.msra.mxu0 0.0
        %633 = vmatprep.subr.mxu0 0.0
        %634 = vmatpush2.msra.mxu0 0.0
        %635 = vmatprep.subr.mxu0 0.0
        %636 = vmatpush2.msra.mxu0 0.0
        %637 = vmatprep.subr.mxu0 0.0
        %638 = vmatpush2.msra.mxu0 0.0
        %639 = vmatprep.subr.mxu0 0.0
        %640 = vmatpush2.msra.mxu0 0.0
        %641 = vmatprep.subr.mxu0 0.0
        %642 = vmatpush2.msra.mxu0 0.0
        %643 = vmatprep.subr.mxu0 0.0
        %644 = vmatpush2.msra.mxu0 0.0
        %645 = vmatprep.subr.mxu0 0.0
        %646 = vmatpush2.msra.mxu0 0.0
        %647 = vmatprep.subr.mxu0 0.0
        %648 = vmatpush2.msra.mxu0 0.0
        %649 = vmatprep.subr.mxu0 0.0
        %650 = vmatpush2.msra.mxu0 0.0
        %651 = vmatprep.subr.mxu0 0.0
        %652 = vmatpush2.msra.mxu0 0.0
        %653 = vmatprep.subr.mxu0 0.0
        %654 = vmatpush2.msra.mxu0 0.0
        %655 = vmatprep.subr.mxu0 0.0
        %656 = vmatpush2.msra.mxu0 0.0
        %657 = vmatprep.subr.mxu0 0.0
        %658 = vmatpush2.msra.mxu0 0.0
        %659 = vmatprep.subr.mxu0 0.0
        %660 = vmatpush2.msra.mxu0 0.0
        %661 = vmatprep.mubr.f32.mxu0 0.0
        %662 = vmatmul.mubr.f32.gmra.mxu0 %v579
        %v663 = vpop.f32.mrf.mxu0
        %v664 = vadd.f32 0.0, %v663
        %v665 = vpop.f32.mrf.mxu0
        %v666 = vadd.f32 0.0, %v665
        %667 = vmatprep.mubr.f32.mxu0 0.0
        %668 = vmatmul.mubr.f32.gmra.mxu0 %v582
        %v669 = vpop.f32.mrf.mxu0
        %v670 = vadd.f32 0.0, %v669
        %v671 = vpop.f32.mrf.mxu0
        %v672 = vadd.f32 0.0, %v671
        %673 = vmatprep.mubr.f32.mxu0 0.0
        %674 = vmatmul.mubr.f32.gmra.mxu0 %v585
        %v675 = vpop.f32.mrf.mxu0
        %v676 = vadd.f32 0.0, %v675
        %v677 = vpop.f32.mrf.mxu0
        %v678 = vadd.f32 0.0, %v677
        %679 = vdwg.mxu0
        %680 = vmatprep.subr.mxu0 0.0
        %681 = vmatpush1.msra.mxu0 0.0
        %682 = vmatprep.subr.mxu0 0.0
        %683 = vmatpush1.msra.mxu0 0.0
        %684 = vmatprep.subr.mxu0 0.0
        %685 = vmatpush1.msra.mxu0 0.0
        %686 = vmatprep.subr.mxu0 0.0
        %687 = vmatpush1.msra.mxu0 0.0
        %688 = vmatprep.subr.mxu0 0.0
        %689 = vmatpush1.msra.mxu0 0.0
        %690 = vmatprep.subr.mxu0 0.0
        %691 = vmatpush1.msra.mxu0 0.0
        %692 = vmatprep.subr.mxu0 0.0
        %693 = vmatpush1.msra.mxu0 0.0
        %694 = vmatprep.subr.mxu0 0.0
        %695 = vmatpush1.msra.mxu0 0.0
        %696 = vmatprep.subr.mxu0 0.0
        %697 = vmatpush1.msra.mxu0 0.0
        %698 = vmatprep.subr.mxu0 0.0
        %699 = vmatpush1.msra.mxu0 0.0
        %700 = vmatprep.subr.mxu0 0.0
        %701 = vmatpush1.msra.mxu0 0.0
        %702 = vmatprep.subr.mxu0 0.0
        %703 = vmatpush1.msra.mxu0 0.0
        %704 = vmatprep.subr.mxu0 0.0
        %705 = vmatpush1.msra.mxu0 %v595
        %706 = vmatprep.subr.mxu0 0.0
        %707 = vmatpush1.msra.mxu0 %v573
        %708 = vmatprep.subr.mxu0 0.0
        %709 = vmatpush1.msra.mxu0 %v570
        %710 = vmatprep.subr.mxu0 0.0
        %711 = vmatpush1.msra.mxu0 %v567
        %712 = vmatprep.subr.mxu0 0.0
        %713 = vmatpush2.msra.mxu0 0.0
        %714 = vmatprep.subr.mxu0 0.0
        %715 = vmatpush2.msra.mxu0 0.0
        %716 = vmatprep.subr.mxu0 0.0
        %717 = vmatpush2.msra.mxu0 0.0
        %718 = vmatprep.subr.mxu0 0.0
        %719 = vmatpush2.msra.mxu0 0.0
        %720 = vmatprep.subr.mxu0 0.0
        %721 = vmatpush2.msra.mxu0 0.0
        %722 = vmatprep.subr.mxu0 0.0
        %723 = vmatpush2.msra.mxu0 0.0
        %724 = vmatprep.subr.mxu0 0.0
        %725 = vmatpush2.msra.mxu0 0.0
        %726 = vmatprep.subr.mxu0 0.0
        %727 = vmatpush2.msra.mxu0 0.0
        %728 = vmatprep.subr.mxu0 0.0
        %729 = vmatpush2.msra.mxu0 0.0
        %730 = vmatprep.subr.mxu0 0.0
        %731 = vmatpush2.msra.mxu0 0.0
        %732 = vmatprep.subr.mxu0 0.0
        %733 = vmatpush2.msra.mxu0 0.0
        %734 = vmatprep.subr.mxu0 0.0
        %735 = vmatpush2.msra.mxu0 0.0
        %736 = vmatprep.subr.mxu0 0.0
        %737 = vmatpush2.msra.mxu0 0.0
        %738 = vmatprep.subr.mxu0 0.0
        %739 = vmatpush2.msra.mxu0 0.0
        %740 = vmatprep.subr.mxu0 0.0
        %741 = vmatpush2.msra.mxu0 0.0
        %742 = vmatprep.subr.mxu0 0.0
        %743 = vmatpush2.msra.mxu0 0.0
        %744 = vmatprep.mubr.f32.mxu0 0.0
        %745 = vmatmul.mubr.f32.gmra.mxu0 %v579
        %v746 = vpop.f32.mrf.mxu0
        %v747 = vadd.f32 0.0, %v746
        %v748 = vpop.f32.mrf.mxu0
        %749 = vmatprep.mubr.f32.mxu0 0.0
        %750 = vmatmul.mubr.f32.gmra.mxu0 %v582
        %v751 = vpop.f32.mrf.mxu0
        %v752 = vadd.f32 0.0, %v751
        %v753 = vpop.f32.mrf.mxu0
        %754 = vmatprep.mubr.f32.mxu0 0.0
        %755 = vmatmul.mubr.f32.gmra.mxu0 %v585
        %v756 = vpop.f32.mrf.mxu0
        %v757 = vadd.f32 0.0, %v756
        %v758 = vpop.f32.mrf.mxu0
        %759 = vdwg.mxu0
        %v761 = vsel %vm577, %v546, 0
        %v764 = vsel %vm577, %v547, 0
        %v767 = vsel %vm577, %v548, 0
        %v770 = vsel %vm587, %v558, 0
        %v773 = vsel %vm587, %v559, 0
        %v776 = vsel %vm587, %v560, 0
        %778 = vmatprep.subr.mxu0 0.0
        %779 = vmatpush1.msra.mxu0 0.0
        %780 = vmatprep.subr.mxu0 0.0
        %781 = vmatpush1.msra.mxu0 0.0
        %782 = vmatprep.subr.mxu0 0.0
        %783 = vmatpush1.msra.mxu0 0.0
        %784 = vmatprep.subr.mxu0 0.0
        %785 = vmatpush1.msra.mxu0 0.0
        %786 = vmatprep.subr.mxu0 0.0
        %787 = vmatpush1.msra.mxu0 0.0
        %788 = vmatprep.subr.mxu0 0.0
        %789 = vmatpush1.msra.mxu0 0.0
        %790 = vmatprep.subr.mxu0 0.0
        %791 = vmatpush1.msra.mxu0 0.0
        %792 = vmatprep.subr.mxu0 0.0
        %793 = vmatpush1.msra.mxu0 0.0
        %794 = vmatprep.subr.mxu0 0.0
        %795 = vmatpush1.msra.mxu0 0.0
        %796 = vmatprep.subr.mxu0 0.0
        %797 = vmatpush1.msra.mxu0 0.0
        %798 = vmatprep.subr.mxu0 0.0
        %799 = vmatpush1.msra.mxu0 0.0
        %800 = vmatprep.subr.mxu0 0.0
        %801 = vmatpush1.msra.mxu0 0.0
        %802 = vmatprep.subr.mxu0 %v773
        %803 = vmatpush1.msra.mxu0 %v770
        %804 = vmatprep.subr.mxu0 %v556
        %805 = vmatpush1.msra.mxu0 %v555
        %806 = vmatprep.subr.mxu0 %v553
        %807 = vmatpush1.msra.mxu0 %v552
        %808 = vmatprep.subr.mxu0 %v550
        %809 = vmatpush1.msra.mxu0 %v549
        %810 = vmatprep.subr.mxu0 0.0
        %811 = vmatpush2.msra.mxu0 0.0
        %812 = vmatprep.subr.mxu0 0.0
        %813 = vmatpush2.msra.mxu0 0.0
        %814 = vmatprep.subr.mxu0 0.0
        %815 = vmatpush2.msra.mxu0 0.0
        %816 = vmatprep.subr.mxu0 0.0
        %817 = vmatpush2.msra.mxu0 0.0
        %818 = vmatprep.subr.mxu0 0.0
        %819 = vmatpush2.msra.mxu0 0.0
        %820 = vmatprep.subr.mxu0 0.0
        %821 = vmatpush2.msra.mxu0 0.0
        %822 = vmatprep.subr.mxu0 0.0
        %823 = vmatpush2.msra.mxu0 0.0
        %824 = vmatprep.subr.mxu0 0.0
        %825 = vmatpush2.msra.mxu0 0.0
        %826 = vmatprep.subr.mxu0 0.0
        %827 = vmatpush2.msra.mxu0 0.0
        %828 = vmatprep.subr.mxu0 0.0
        %829 = vmatpush2.msra.mxu0 0.0
        %830 = vmatprep.subr.mxu0 0.0
        %831 = vmatpush2.msra.mxu0 0.0
        %832 = vmatprep.subr.mxu0 0.0
        %833 = vmatpush2.msra.mxu0 0.0
        %834 = vmatprep.subr.mxu0 0.0
        %835 = vmatpush2.msra.mxu0 0.0
        %836 = vmatprep.subr.mxu0 0.0
        %837 = vmatpush2.msra.mxu0 0.0
        %838 = vmatprep.subr.mxu0 0.0
        %839 = vmatpush2.msra.mxu0 0.0
        %840 = vmatprep.subr.mxu0 0.0
        %841 = vmatpush2.msra.mxu0 0.0
        %842 = vmatprep.mubr.f32.mxu0 0.0
        %843 = vmatmul.mubr.f32.gmra.mxu0 %v761
        %v844 = vpop.f32.mrf.mxu0
        %v845 = vadd.f32 %v664, %v844
        %v846 = vpop.f32.mrf.mxu0
        %v847 = vadd.f32 %v666, %v846
        %848 = vmatprep.mubr.f32.mxu0 0.0
        %849 = vmatmul.mubr.f32.gmra.mxu0 %v764
        %v850 = vpop.f32.mrf.mxu0
        %v851 = vadd.f32 %v670, %v850
        %v852 = vpop.f32.mrf.mxu0
        %v853 = vadd.f32 %v672, %v852
        %854 = vmatprep.mubr.f32.mxu0 0.0
        %855 = vmatmul.mubr.f32.gmra.mxu0 %v767
        %v856 = vpop.f32.mrf.mxu0
        %v857 = vadd.f32 %v676, %v856
        %v858 = vpop.f32.mrf.mxu0
        %v859 = vadd.f32 %v678, %v858
        %860 = vdwg.mxu0
        %861 = vmatprep.subr.mxu0 0.0
        %862 = vmatpush1.msra.mxu0 0.0
        %863 = vmatprep.subr.mxu0 0.0
        %864 = vmatpush1.msra.mxu0 0.0
        %865 = vmatprep.subr.mxu0 0.0
        %866 = vmatpush1.msra.mxu0 0.0
        %867 = vmatprep.subr.mxu0 0.0
        %868 = vmatpush1.msra.mxu0 0.0
        %869 = vmatprep.subr.mxu0 0.0
        %870 = vmatpush1.msra.mxu0 0.0
        %871 = vmatprep.subr.mxu0 0.0
        %872 = vmatpush1.msra.mxu0 0.0
        %873 = vmatprep.subr.mxu0 0.0
        %874 = vmatpush1.msra.mxu0 0.0
        %875 = vmatprep.subr.mxu0 0.0
        %876 = vmatpush1.msra.mxu0 0.0
        %877 = vmatprep.subr.mxu0 0.0
        %878 = vmatpush1.msra.mxu0 0.0
        %879 = vmatprep.subr.mxu0 0.0
        %880 = vmatpush1.msra.mxu0 0.0
        %881 = vmatprep.subr.mxu0 0.0
        %882 = vmatpush1.msra.mxu0 0.0
        %883 = vmatprep.subr.mxu0 0.0
        %884 = vmatpush1.msra.mxu0 0.0
        %885 = vmatprep.subr.mxu0 0.0
        %886 = vmatpush1.msra.mxu0 %v776
        %887 = vmatprep.subr.mxu0 0.0
        %888 = vmatpush1.msra.mxu0 %v557
        %889 = vmatprep.subr.mxu0 0.0
        %890 = vmatpush1.msra.mxu0 %v554
        %891 = vmatprep.subr.mxu0 0.0
        %892 = vmatpush1.msra.mxu0 %v551
        %893 = vmatprep.subr.mxu0 0.0
        %894 = vmatpush2.msra.mxu0 0.0
        %895 = vmatprep.subr.mxu0 0.0
        %896 = vmatpush2.msra.mxu0 0.0
        %897 = vmatprep.subr.mxu0 0.0
        %898 = vmatpush2.msra.mxu0 0.0
        %899 = vmatprep.subr.mxu0 0.0
        %900 = vmatpush2.msra.mxu0 0.0
        %901 = vmatprep.subr.mxu0 0.0
        %902 = vmatpush2.msra.mxu0 0.0
        %903 = vmatprep.subr.mxu0 0.0
        %904 = vmatpush2.msra.mxu0 0.0
        %905 = vmatprep.subr.mxu0 0.0
        %906 = vmatpush2.msra.mxu0 0.0
        %907 = vmatprep.subr.mxu0 0.0
        %908 = vmatpush2.msra.mxu0 0.0
        %909 = vmatprep.subr.mxu0 0.0
        %910 = vmatpush2.msra.mxu0 0.0
        %911 = vmatprep.subr.mxu0 0.0
        %912 = vmatpush2.msra.mxu0 0.0
        %913 = vmatprep.subr.mxu0 0.0
        %914 = vmatpush2.msra.mxu0 0.0
        %915 = vmatprep.subr.mxu0 0.0
        %916 = vmatpush2.msra.mxu0 0.0
        %917 = vmatprep.subr.mxu0 0.0
        %918 = vmatpush2.msra.mxu0 0.0
        %919 = vmatprep.subr.mxu0 0.0
        %920 = vmatpush2.msra.mxu0 0.0
        %921 = vmatprep.subr.mxu0 0.0
        %922 = vmatpush2.msra.mxu0 0.0
        %923 = vmatprep.subr.mxu0 0.0
        %924 = vmatpush2.msra.mxu0 0.0
        %925 = vmatprep.mubr.f32.mxu0 0.0
        %926 = vmatmul.mubr.f32.gmra.mxu0 %v761
        %v927 = vpop.f32.mrf.mxu0
        %v928 = vadd.f32 %v747, %v927
        %v929 = vpop.f32.mrf.mxu0
        %930 = vmatprep.mubr.f32.mxu0 0.0
        %931 = vmatmul.mubr.f32.gmra.mxu0 %v764
        %v932 = vpop.f32.mrf.mxu0
        %v933 = vadd.f32 %v752, %v932
        %v934 = vpop.f32.mrf.mxu0
        %935 = vmatprep.mubr.f32.mxu0 0.0
        %936 = vmatmul.mubr.f32.gmra.mxu0 %v767
        %v937 = vpop.f32.mrf.mxu0
        %v938 = vadd.f32 %v757, %v937
        %v939 = vpop.f32.mrf.mxu0
        %940 = vdwg.mxu0
        %v941 = vld [vmem:[%s545 + $0x2] sm:$0xff]
        %v942 = vld [vmem:[%s545 + $0xa] sm:$0xff]
        %v943 = vld [vmem:[%s545 + $0x12] sm:$0xff]
        %s944 = scalar_lea.vmem %s1, 192
        %v945 = vld [vmem:[%s944] sm:$0xff]
        %v946 = vld [vmem:[%s944 + $0x8] sm:$0xff]
        %v947 = vld [vmem:[%s944 + $0x10] sm:$0xff]
        %v948 = vld [vmem:[%s944 + $0x18] sm:$0xff]
        %v949 = vld [vmem:[%s944 + $0x20] sm:$0xff]
        %v950 = vld [vmem:[%s944 + $0x28] sm:$0xff]
        %v951 = vld [vmem:[%s944 + $0x30] sm:$0xff]
        %v952 = vld [vmem:[%s944 + $0x38] sm:$0xff]
        %v953 = vld [vmem:[%s944 + $0x40] sm:$0xff]
        %v954 = vld [vmem:[%s944 + $0x48] sm:$0xf]
        %v955 = vld [vmem:[%s944 + $0x50] sm:$0xf]
        %v956 = vld [vmem:[%s944 + $0x58] sm:$0xf]
        %v958 = vsel %vm577, %v941, 0
        %v961 = vsel %vm577, %v942, 0
        %v964 = vsel %vm577, %v943, 0
        %v967 = vsel %vm587, %v954, 0
        %v970 = vsel %vm587, %v955, 0
        %v973 = vsel %vm587, %v956, 0
        %975 = vmatprep.subr.mxu0 0.0
        %976 = vmatpush1.msra.mxu0 0.0
        %977 = vmatprep.subr.mxu0 0.0
        %978 = vmatpush1.msra.mxu0 0.0
        %979 = vmatprep.subr.mxu0 0.0
        %980 = vmatpush1.msra.mxu0 0.0
        %981 = vmatprep.subr.mxu0 0.0
        %982 = vmatpush1.msra.mxu0 0.0
        %983 = vmatprep.subr.mxu0 0.0
        %984 = vmatpush1.msra.mxu0 0.0
        %985 = vmatprep.subr.mxu0 0.0
        %986 = vmatpush1.msra.mxu0 0.0
        %987 = vmatprep.subr.mxu0 0.0
        %988 = vmatpush1.msra.mxu0 0.0
        %989 = vmatprep.subr.mxu0 0.0
        %990 = vmatpush1.msra.mxu0 0.0
        %991 = vmatprep.subr.mxu0 0.0
        %992 = vmatpush1.msra.mxu0 0.0
        %993 = vmatprep.subr.mxu0 0.0
        %994 = vmatpush1.msra.mxu0 0.0
        %995 = vmatprep.subr.mxu0 0.0
        %996 = vmatpush1.msra.mxu0 0.0
        %997 = vmatprep.subr.mxu0 0.0
        %998 = vmatpush1.msra.mxu0 0.0
        %999 = vmatprep.subr.mxu0 %v970
        %1000 = vmatpush1.msra.mxu0 %v967
        %1001 = vmatprep.subr.mxu0 %v952
        %1002 = vmatpush1.msra.mxu0 %v951
        %1003 = vmatprep.subr.mxu0 %v949
        %1004 = vmatpush1.msra.mxu0 %v948
        %1005 = vmatprep.subr.mxu0 %v946
        %1006 = vmatpush1.msra.mxu0 %v945
        %1007 = vmatprep.subr.mxu0 0.0
        %1008 = vmatpush2.msra.mxu0 0.0
        %1009 = vmatprep.subr.mxu0 0.0
        %1010 = vmatpush2.msra.mxu0 0.0
        %1011 = vmatprep.subr.mxu0 0.0
        %1012 = vmatpush2.msra.mxu0 0.0
        %1013 = vmatprep.subr.mxu0 0.0
        %1014 = vmatpush2.msra.mxu0 0.0
        %1015 = vmatprep.subr.mxu0 0.0
        %1016 = vmatpush2.msra.mxu0 0.0
        %1017 = vmatprep.subr.mxu0 0.0
        %1018 = vmatpush2.msra.mxu0 0.0
        %1019 = vmatprep.subr.mxu0 0.0
        %1020 = vmatpush2.msra.mxu0 0.0
        %1021 = vmatprep.subr.mxu0 0.0
        %1022 = vmatpush2.msra.mxu0 0.0
        %1023 = vmatprep.subr.mxu0 0.0
        %1024 = vmatpush2.msra.mxu0 0.0
        %1025 = vmatprep.subr.mxu0 0.0
        %1026 = vmatpush2.msra.mxu0 0.0
        %1027 = vmatprep.subr.mxu0 0.0
        %1028 = vmatpush2.msra.mxu0 0.0
        %1029 = vmatprep.subr.mxu0 0.0
        %1030 = vmatpush2.msra.mxu0 0.0
        %1031 = vmatprep.subr.mxu0 0.0
        %1032 = vmatpush2.msra.mxu0 0.0
        %1033 = vmatprep.subr.mxu0 0.0
        %1034 = vmatpush2.msra.mxu0 0.0
        %1035 = vmatprep.subr.mxu0 0.0
        %1036 = vmatpush2.msra.mxu0 0.0
        %1037 = vmatprep.subr.mxu0 0.0
        %1038 = vmatpush2.msra.mxu0 0.0
        %1039 = vmatprep.mubr.f32.mxu0 0.0
        %1040 = vmatmul.mubr.f32.gmra.mxu0 %v958
        %v1041 = vpop.f32.mrf.mxu0
        %v1042 = vadd.f32 0.0, %v1041
        %v1043 = vpop.f32.mrf.mxu0
        %v1044 = vadd.f32 0.0, %v1043
        %1045 = vmatprep.mubr.f32.mxu0 0.0
        %1046 = vmatmul.mubr.f32.gmra.mxu0 %v961
        %v1047 = vpop.f32.mrf.mxu0
        %v1048 = vadd.f32 0.0, %v1047
        %v1049 = vpop.f32.mrf.mxu0
        %v1050 = vadd.f32 0.0, %v1049
        %1051 = vmatprep.mubr.f32.mxu0 0.0
        %1052 = vmatmul.mubr.f32.gmra.mxu0 %v964
        %v1053 = vpop.f32.mrf.mxu0
        %v1054 = vadd.f32 0.0, %v1053
        %v1055 = vpop.f32.mrf.mxu0
        %v1056 = vadd.f32 0.0, %v1055
        %1057 = vdwg.mxu0
        %1058 = vmatprep.subr.mxu0 0.0
        %1059 = vmatpush1.msra.mxu0 0.0
        %1060 = vmatprep.subr.mxu0 0.0
        %1061 = vmatpush1.msra.mxu0 0.0
        %1062 = vmatprep.subr.mxu0 0.0
        %1063 = vmatpush1.msra.mxu0 0.0
        %1064 = vmatprep.subr.mxu0 0.0
        %1065 = vmatpush1.msra.mxu0 0.0
        %1066 = vmatprep.subr.mxu0 0.0
        %1067 = vmatpush1.msra.mxu0 0.0
        %1068 = vmatprep.subr.mxu0 0.0
        %1069 = vmatpush1.msra.mxu0 0.0
        %1070 = vmatprep.subr.mxu0 0.0
        %1071 = vmatpush1.msra.mxu0 0.0
        %1072 = vmatprep.subr.mxu0 0.0
        %1073 = vmatpush1.msra.mxu0 0.0
        %1074 = vmatprep.subr.mxu0 0.0
        %1075 = vmatpush1.msra.mxu0 0.0
        %1076 = vmatprep.subr.mxu0 0.0
        %1077 = vmatpush1.msra.mxu0 0.0
        %1078 = vmatprep.subr.mxu0 0.0
        %1079 = vmatpush1.msra.mxu0 0.0
        %1080 = vmatprep.subr.mxu0 0.0
        %1081 = vmatpush1.msra.mxu0 0.0
        %1082 = vmatprep.subr.mxu0 0.0
        %1083 = vmatpush1.msra.mxu0 %v973
        %1084 = vmatprep.subr.mxu0 0.0
        %1085 = vmatpush1.msra.mxu0 %v953
        %1086 = vmatprep.subr.mxu0 0.0
        %1087 = vmatpush1.msra.mxu0 %v950
        %1088 = vmatprep.subr.mxu0 0.0
        %1089 = vmatpush1.msra.mxu0 %v947
        %1090 = vmatprep.subr.mxu0 0.0
        %1091 = vmatpush2.msra.mxu0 0.0
        %1092 = vmatprep.subr.mxu0 0.0
        %1093 = vmatpush2.msra.mxu0 0.0
        %1094 = vmatprep.subr.mxu0 0.0
        %1095 = vmatpush2.msra.mxu0 0.0
        %1096 = vmatprep.subr.mxu0 0.0
        %1097 = vmatpush2.msra.mxu0 0.0
        %1098 = vmatprep.subr.mxu0 0.0
        %1099 = vmatpush2.msra.mxu0 0.0
        %1100 = vmatprep.subr.mxu0 0.0
        %1101 = vmatpush2.msra.mxu0 0.0
        %1102 = vmatprep.subr.mxu0 0.0
        %1103 = vmatpush2.msra.mxu0 0.0
        %1104 = vmatprep.subr.mxu0 0.0
        %1105 = vmatpush2.msra.mxu0 0.0
        %1106 = vmatprep.subr.mxu0 0.0
        %1107 = vmatpush2.msra.mxu0 0.0
        %1108 = vmatprep.subr.mxu0 0.0
        %1109 = vmatpush2.msra.mxu0 0.0
        %1110 = vmatprep.subr.mxu0 0.0
        %1111 = vmatpush2.msra.mxu0 0.0
        %1112 = vmatprep.subr.mxu0 0.0
        %1113 = vmatpush2.msra.mxu0 0.0
        %1114 = vmatprep.subr.mxu0 0.0
        %1115 = vmatpush2.msra.mxu0 0.0
        %1116 = vmatprep.subr.mxu0 0.0
        %1117 = vmatpush2.msra.mxu0 0.0
        %1118 = vmatprep.subr.mxu0 0.0
        %1119 = vmatpush2.msra.mxu0 0.0
        %1120 = vmatprep.subr.mxu0 0.0
        %1121 = vmatpush2.msra.mxu0 0.0
        %1122 = vmatprep.mubr.f32.mxu0 0.0
        %1123 = vmatmul.mubr.f32.gmra.mxu0 %v958
        %v1124 = vpop.f32.mrf.mxu0
        %v1125 = vadd.f32 0.0, %v1124
        %v1126 = vpop.f32.mrf.mxu0
        %1127 = vmatprep.mubr.f32.mxu0 0.0
        %1128 = vmatmul.mubr.f32.gmra.mxu0 %v961
        %v1129 = vpop.f32.mrf.mxu0
        %v1130 = vadd.f32 0.0, %v1129
        %v1131 = vpop.f32.mrf.mxu0
        %1132 = vmatprep.mubr.f32.mxu0 0.0
        %1133 = vmatmul.mubr.f32.gmra.mxu0 %v964
        %v1134 = vpop.f32.mrf.mxu0
        %v1135 = vadd.f32 0.0, %v1134
        %v1136 = vpop.f32.mrf.mxu0
        %1137 = vdwg.mxu0
        %v1138 = vadd.f32 %v845, %v1042
        %v1139 = vadd.f32 %v847, %v1044
        %v1140 = vadd.f32 %v928, %v1125
        %v1141 = vadd.f32 %v851, %v1048
        %v1142 = vadd.f32 %v853, %v1050
        %v1143 = vadd.f32 %v933, %v1130
        %v1144 = vadd.f32 %v857, %v1054
        %v1145 = vadd.f32 %v859, %v1056
        %v1146 = vadd.f32 %v938, %v1135
        %v1147 = vld [vmem:[%s545 + $0x3] sm:$0xff]
        %v1148 = vld [vmem:[%s545 + $0xb] sm:$0xff]
        %v1149 = vld [vmem:[%s545 + $0x13] sm:$0xff]
        %s1150 = scalar_lea.vmem %s1, 288
        %v1151 = vld [vmem:[%s1150] sm:$0xff]
        %v1152 = vld [vmem:[%s1150 + $0x8] sm:$0xff]
        %v1153 = vld [vmem:[%s1150 + $0x10] sm:$0xff]
        %v1154 = vld [vmem:[%s1150 + $0x18] sm:$0xff]
        %v1155 = vld [vmem:[%s1150 + $0x20] sm:$0xff]
        %v1156 = vld [vmem:[%s1150 + $0x28] sm:$0xff]
        %v1157 = vld [vmem:[%s1150 + $0x30] sm:$0xff]
        %v1158 = vld [vmem:[%s1150 + $0x38] sm:$0xff]
        %v1159 = vld [vmem:[%s1150 + $0x40] sm:$0xff]
        %v1160 = vld [vmem:[%s1150 + $0x48] sm:$0xf]
        %v1161 = vld [vmem:[%s1150 + $0x50] sm:$0xf]
        %v1162 = vld [vmem:[%s1150 + $0x58] sm:$0xf]
        %v1164 = vsel %vm577, %v1147, 0
        %v1167 = vsel %vm577, %v1148, 0
        %v1170 = vsel %vm577, %v1149, 0
        %v1173 = vsel %vm587, %v1160, 0
        %v1176 = vsel %vm587, %v1161, 0
        %v1179 = vsel %vm587, %v1162, 0
        %1181 = vmatprep.subr.mxu0 0.0
        %1182 = vmatpush1.msra.mxu0 0.0
        %1183 = vmatprep.subr.mxu0 0.0
        %1184 = vmatpush1.msra.mxu0 0.0
        %1185 = vmatprep.subr.mxu0 0.0
        %1186 = vmatpush1.msra.mxu0 0.0
        %1187 = vmatprep.subr.mxu0 0.0
        %1188 = vmatpush1.msra.mxu0 0.0
        %1189 = vmatprep.subr.mxu0 0.0
        %1190 = vmatpush1.msra.mxu0 0.0
        %1191 = vmatprep.subr.mxu0 0.0
        %1192 = vmatpush1.msra.mxu0 0.0
        %1193 = vmatprep.subr.mxu0 0.0
        %1194 = vmatpush1.msra.mxu0 0.0
        %1195 = vmatprep.subr.mxu0 0.0
        %1196 = vmatpush1.msra.mxu0 0.0
        %1197 = vmatprep.subr.mxu0 0.0
        %1198 = vmatpush1.msra.mxu0 0.0
        %1199 = vmatprep.subr.mxu0 0.0
        %1200 = vmatpush1.msra.mxu0 0.0
        %1201 = vmatprep.subr.mxu0 0.0
        %1202 = vmatpush1.msra.mxu0 0.0
        %1203 = vmatprep.subr.mxu0 0.0
        %1204 = vmatpush1.msra.mxu0 0.0
        %1205 = vmatprep.subr.mxu0 %v1176
        %1206 = vmatpush1.msra.mxu0 %v1173
        %1207 = vmatprep.subr.mxu0 %v1158
        %1208 = vmatpush1.msra.mxu0 %v1157
        %1209 = vmatprep.subr.mxu0 %v1155
        %1210 = vmatpush1.msra.mxu0 %v1154
        %1211 = vmatprep.subr.mxu0 %v1152
        %1212 = vmatpush1.msra.mxu0 %v1151
        %1213 = vmatprep.subr.mxu0 0.0
        %1214 = vmatpush2.msra.mxu0 0.0
        %1215 = vmatprep.subr.mxu0 0.0
        %1216 = vmatpush2.msra.mxu0 0.0
        %1217 = vmatprep.subr.mxu0 0.0
        %1218 = vmatpush2.msra.mxu0 0.0
        %1219 = vmatprep.subr.mxu0 0.0
        %1220 = vmatpush2.msra.mxu0 0.0
        %1221 = vmatprep.subr.mxu0 0.0
        %1222 = vmatpush2.msra.mxu0 0.0
        %1223 = vmatprep.subr.mxu0 0.0
        %1224 = vmatpush2.msra.mxu0 0.0
        %1225 = vmatprep.subr.mxu0 0.0
        %1226 = vmatpush2.msra.mxu0 0.0
        %1227 = vmatprep.subr.mxu0 0.0
        %1228 = vmatpush2.msra.mxu0 0.0
        %1229 = vmatprep.subr.mxu0 0.0
        %1230 = vmatpush2.msra.mxu0 0.0
        %1231 = vmatprep.subr.mxu0 0.0
        %1232 = vmatpush2.msra.mxu0 0.0
        %1233 = vmatprep.subr.mxu0 0.0
        %1234 = vmatpush2.msra.mxu0 0.0
        %1235 = vmatprep.subr.mxu0 0.0
        %1236 = vmatpush2.msra.mxu0 0.0
        %1237 = vmatprep.subr.mxu0 0.0
        %1238 = vmatpush2.msra.mxu0 0.0
        %1239 = vmatprep.subr.mxu0 0.0
        %1240 = vmatpush2.msra.mxu0 0.0
        %1241 = vmatprep.subr.mxu0 0.0
        %1242 = vmatpush2.msra.mxu0 0.0
        %1243 = vmatprep.subr.mxu0 0.0
        %1244 = vmatpush2.msra.mxu0 0.0
        %1245 = vmatprep.mubr.f32.mxu0 0.0
        %1246 = vmatmul.mubr.f32.gmra.mxu0 %v1164
        %v1247 = vpop.f32.mrf.mxu0
        %v1248 = vadd.f32 0.0, %v1247
        %v1249 = vpop.f32.mrf.mxu0
        %v1250 = vadd.f32 0.0, %v1249
        %1251 = vmatprep.mubr.f32.mxu0 0.0
        %1252 = vmatmul.mubr.f32.gmra.mxu0 %v1167
        %v1253 = vpop.f32.mrf.mxu0
        %v1254 = vadd.f32 0.0, %v1253
        %v1255 = vpop.f32.mrf.mxu0
        %v1256 = vadd.f32 0.0, %v1255
        %1257 = vmatprep.mubr.f32.mxu0 0.0
        %1258 = vmatmul.mubr.f32.gmra.mxu0 %v1170
        %v1259 = vpop.f32.mrf.mxu0
        %v1260 = vadd.f32 0.0, %v1259
        %v1261 = vpop.f32.mrf.mxu0
        %v1262 = vadd.f32 0.0, %v1261
        %1263 = vdwg.mxu0
        %1264 = vmatprep.subr.mxu0 0.0
        %1265 = vmatpush1.msra.mxu0 0.0
        %1266 = vmatprep.subr.mxu0 0.0
        %1267 = vmatpush1.msra.mxu0 0.0
        %1268 = vmatprep.subr.mxu0 0.0
        %1269 = vmatpush1.msra.mxu0 0.0
        %1270 = vmatprep.subr.mxu0 0.0
        %1271 = vmatpush1.msra.mxu0 0.0
        %1272 = vmatprep.subr.mxu0 0.0
        %1273 = vmatpush1.msra.mxu0 0.0
        %1274 = vmatprep.subr.mxu0 0.0
        %1275 = vmatpush1.msra.mxu0 0.0
        %1276 = vmatprep.subr.mxu0 0.0
        %1277 = vmatpush1.msra.mxu0 0.0
        %1278 = vmatprep.subr.mxu0 0.0
        %1279 = vmatpush1.msra.mxu0 0.0
        %1280 = vmatprep.subr.mxu0 0.0
        %1281 = vmatpush1.msra.mxu0 0.0
        %1282 = vmatprep.subr.mxu0 0.0
        %1283 = vmatpush1.msra.mxu0 0.0
        %1284 = vmatprep.subr.mxu0 0.0
        %1285 = vmatpush1.msra.mxu0 0.0
        %1286 = vmatprep.subr.mxu0 0.0
        %1287 = vmatpush1.msra.mxu0 0.0
        %1288 = vmatprep.subr.mxu0 0.0
        %1289 = vmatpush1.msra.mxu0 %v1179
        %1290 = vmatprep.subr.mxu0 0.0
        %1291 = vmatpush1.msra.mxu0 %v1159
        %1292 = vmatprep.subr.mxu0 0.0
        %1293 = vmatpush1.msra.mxu0 %v1156
        %1294 = vmatprep.subr.mxu0 0.0
        %1295 = vmatpush1.msra.mxu0 %v1153
        %1296 = vmatprep.subr.mxu0 0.0
        %1297 = vmatpush2.msra.mxu0 0.0
        %1298 = vmatprep.subr.mxu0 0.0
        %1299 = vmatpush2.msra.mxu0 0.0
        %1300 = vmatprep.subr.mxu0 0.0
        %1301 = vmatpush2.msra.mxu0 0.0
        %1302 = vmatprep.subr.mxu0 0.0
        %1303 = vmatpush2.msra.mxu0 0.0
        %1304 = vmatprep.subr.mxu0 0.0
        %1305 = vmatpush2.msra.mxu0 0.0
        %1306 = vmatprep.subr.mxu0 0.0
        %1307 = vmatpush2.msra.mxu0 0.0
        %1308 = vmatprep.subr.mxu0 0.0
        %1309 = vmatpush2.msra.mxu0 0.0
        %1310 = vmatprep.subr.mxu0 0.0
        %1311 = vmatpush2.msra.mxu0 0.0
        %1312 = vmatprep.subr.mxu0 0.0
        %1313 = vmatpush2.msra.mxu0 0.0
        %1314 = vmatprep.subr.mxu0 0.0
        %1315 = vmatpush2.msra.mxu0 0.0
        %1316 = vmatprep.subr.mxu0 0.0
        %1317 = vmatpush2.msra.mxu0 0.0
        %1318 = vmatprep.subr.mxu0 0.0
        %1319 = vmatpush2.msra.mxu0 0.0
        %1320 = vmatprep.subr.mxu0 0.0
        %1321 = vmatpush2.msra.mxu0 0.0
        %1322 = vmatprep.subr.mxu0 0.0
        %1323 = vmatpush2.msra.mxu0 0.0
        %1324 = vmatprep.subr.mxu0 0.0
        %1325 = vmatpush2.msra.mxu0 0.0
        %1326 = vmatprep.subr.mxu0 0.0
        %1327 = vmatpush2.msra.mxu0 0.0
        %1328 = vmatprep.mubr.f32.mxu0 0.0
        %1329 = vmatmul.mubr.f32.gmra.mxu0 %v1164
        %v1330 = vpop.f32.mrf.mxu0
        %v1331 = vadd.f32 0.0, %v1330
        %v1332 = vpop.f32.mrf.mxu0
        %1333 = vmatprep.mubr.f32.mxu0 0.0
        %1334 = vmatmul.mubr.f32.gmra.mxu0 %v1167
        %v1335 = vpop.f32.mrf.mxu0
        %v1336 = vadd.f32 0.0, %v1335
        %v1337 = vpop.f32.mrf.mxu0
        %1338 = vmatprep.mubr.f32.mxu0 0.0
        %1339 = vmatmul.mubr.f32.gmra.mxu0 %v1170
        %v1340 = vpop.f32.mrf.mxu0
        %v1341 = vadd.f32 0.0, %v1340
        %v1342 = vpop.f32.mrf.mxu0
        %1343 = vdwg.mxu0
        %v1344 = vadd.f32 %v1138, %v1248
        %v1345 = vadd.f32 %v1139, %v1250
        %v1346 = vadd.f32 %v1140, %v1331
        %v1347 = vadd.f32 %v1141, %v1254
        %v1348 = vadd.f32 %v1142, %v1256
        %v1349 = vadd.f32 %v1143, %v1336
        %v1350 = vadd.f32 %v1144, %v1260
        %v1351 = vadd.f32 %v1145, %v1262
        %v1352 = vadd.f32 %v1146, %v1341
        %v1353 = vld [vmem:[%s545 + $0x4] sm:$0xff]
        %v1354 = vld [vmem:[%s545 + $0xc] sm:$0xff]
        %v1355 = vld [vmem:[%s545 + $0x14] sm:$0xff]
        %s1356 = scalar_lea.vmem %s1, 384
        %v1357 = vld [vmem:[%s1356] sm:$0xff]
        %v1358 = vld [vmem:[%s1356 + $0x8] sm:$0xff]
        %v1359 = vld [vmem:[%s1356 + $0x10] sm:$0xff]
        %v1360 = vld [vmem:[%s1356 + $0x18] sm:$0xff]
        %v1361 = vld [vmem:[%s1356 + $0x20] sm:$0xff]
        %v1362 = vld [vmem:[%s1356 + $0x28] sm:$0xff]
        %v1363 = vld [vmem:[%s1356 + $0x30] sm:$0xff]
        %v1364 = vld [vmem:[%s1356 + $0x38] sm:$0xff]
        %v1365 = vld [vmem:[%s1356 + $0x40] sm:$0xff]
        %v1366 = vld [vmem:[%s1356 + $0x48] sm:$0xf]
        %v1367 = vld [vmem:[%s1356 + $0x50] sm:$0xf]
        %v1368 = vld [vmem:[%s1356 + $0x58] sm:$0xf]
        %v1370 = vsel %vm577, %v1353, 0
        %v1373 = vsel %vm577, %v1354, 0
        %v1376 = vsel %vm577, %v1355, 0
        %v1379 = vsel %vm587, %v1366, 0
        %v1382 = vsel %vm587, %v1367, 0
        %v1385 = vsel %vm587, %v1368, 0
        %1387 = vmatprep.subr.mxu0 0.0
        %1388 = vmatpush1.msra.mxu0 0.0
        %1389 = vmatprep.subr.mxu0 0.0
        %1390 = vmatpush1.msra.mxu0 0.0
        %1391 = vmatprep.subr.mxu0 0.0
        %1392 = vmatpush1.msra.mxu0 0.0
        %1393 = vmatprep.subr.mxu0 0.0
        %1394 = vmatpush1.msra.mxu0 0.0
        %1395 = vmatprep.subr.mxu0 0.0
        %1396 = vmatpush1.msra.mxu0 0.0
        %1397 = vmatprep.subr.mxu0 0.0
        %1398 = vmatpush1.msra.mxu0 0.0
        %1399 = vmatprep.subr.mxu0 0.0
        %1400 = vmatpush1.msra.mxu0 0.0
        %1401 = vmatprep.subr.mxu0 0.0
        %1402 = vmatpush1.msra.mxu0 0.0
        %1403 = vmatprep.subr.mxu0 0.0
        %1404 = vmatpush1.msra.mxu0 0.0
        %1405 = vmatprep.subr.mxu0 0.0
        %1406 = vmatpush1.msra.mxu0 0.0
        %1407 = vmatprep.subr.mxu0 0.0
        %1408 = vmatpush1.msra.mxu0 0.0
        %1409 = vmatprep.subr.mxu0 0.0
        %1410 = vmatpush1.msra.mxu0 0.0
        %1411 = vmatprep.subr.mxu0 %v1382
        %1412 = vmatpush1.msra.mxu0 %v1379
        %1413 = vmatprep.subr.mxu0 %v1364
        %1414 = vmatpush1.msra.mxu0 %v1363
        %1415 = vmatprep.subr.mxu0 %v1361
        %1416 = vmatpush1.msra.mxu0 %v1360
        %1417 = vmatprep.subr.mxu0 %v1358
        %1418 = vmatpush1.msra.mxu0 %v1357
        %1419 = vmatprep.subr.mxu0 0.0
        %1420 = vmatpush2.msra.mxu0 0.0
        %1421 = vmatprep.subr.mxu0 0.0
        %1422 = vmatpush2.msra.mxu0 0.0
        %1423 = vmatprep.subr.mxu0 0.0
        %1424 = vmatpush2.msra.mxu0 0.0
        %1425 = vmatprep.subr.mxu0 0.0
        %1426 = vmatpush2.msra.mxu0 0.0
        %1427 = vmatprep.subr.mxu0 0.0
        %1428 = vmatpush2.msra.mxu0 0.0
        %1429 = vmatprep.subr.mxu0 0.0
        %1430 = vmatpush2.msra.mxu0 0.0
        %1431 = vmatprep.subr.mxu0 0.0
        %1432 = vmatpush2.msra.mxu0 0.0
        %1433 = vmatprep.subr.mxu0 0.0
        %1434 = vmatpush2.msra.mxu0 0.0
        %1435 = vmatprep.subr.mxu0 0.0
        %1436 = vmatpush2.msra.mxu0 0.0
        %1437 = vmatprep.subr.mxu0 0.0
        %1438 = vmatpush2.msra.mxu0 0.0
        %1439 = vmatprep.subr.mxu0 0.0
        %1440 = vmatpush2.msra.mxu0 0.0
        %1441 = vmatprep.subr.mxu0 0.0
        %1442 = vmatpush2.msra.mxu0 0.0
        %1443 = vmatprep.subr.mxu0 0.0
        %1444 = vmatpush2.msra.mxu0 0.0
        %1445 = vmatprep.subr.mxu0 0.0
        %1446 = vmatpush2.msra.mxu0 0.0
        %1447 = vmatprep.subr.mxu0 0.0
        %1448 = vmatpush2.msra.mxu0 0.0
        %1449 = vmatprep.subr.mxu0 0.0
        %1450 = vmatpush2.msra.mxu0 0.0
        %1451 = vmatprep.mubr.f32.mxu0 0.0
        %1452 = vmatmul.mubr.f32.gmra.mxu0 %v1370
        %v1453 = vpop.f32.mrf.mxu0
        %v1454 = vadd.f32 0.0, %v1453
        %v1455 = vpop.f32.mrf.mxu0
        %v1456 = vadd.f32 0.0, %v1455
        %1457 = vmatprep.mubr.f32.mxu0 0.0
        %1458 = vmatmul.mubr.f32.gmra.mxu0 %v1373
        %v1459 = vpop.f32.mrf.mxu0
        %v1460 = vadd.f32 0.0, %v1459
        %v1461 = vpop.f32.mrf.mxu0
        %v1462 = vadd.f32 0.0, %v1461
        %1463 = vmatprep.mubr.f32.mxu0 0.0
        %1464 = vmatmul.mubr.f32.gmra.mxu0 %v1376
        %v1465 = vpop.f32.mrf.mxu0
        %v1466 = vadd.f32 0.0, %v1465
        %v1467 = vpop.f32.mrf.mxu0
        %v1468 = vadd.f32 0.0, %v1467
        %1469 = vdwg.mxu0
        %1470 = vmatprep.subr.mxu0 0.0
        %1471 = vmatpush1.msra.mxu0 0.0
        %1472 = vmatprep.subr.mxu0 0.0
        %1473 = vmatpush1.msra.mxu0 0.0
        %1474 = vmatprep.subr.mxu0 0.0
        %1475 = vmatpush1.msra.mxu0 0.0
        %1476 = vmatprep.subr.mxu0 0.0
        %1477 = vmatpush1.msra.mxu0 0.0
        %1478 = vmatprep.subr.mxu0 0.0
        %1479 = vmatpush1.msra.mxu0 0.0
        %1480 = vmatprep.subr.mxu0 0.0
        %1481 = vmatpush1.msra.mxu0 0.0
        %1482 = vmatprep.subr.mxu0 0.0
        %1483 = vmatpush1.msra.mxu0 0.0
        %1484 = vmatprep.subr.mxu0 0.0
        %1485 = vmatpush1.msra.mxu0 0.0
        %1486 = vmatprep.subr.mxu0 0.0
        %1487 = vmatpush1.msra.mxu0 0.0
        %1488 = vmatprep.subr.mxu0 0.0
        %1489 = vmatpush1.msra.mxu0 0.0
        %1490 = vmatprep.subr.mxu0 0.0
        %1491 = vmatpush1.msra.mxu0 0.0
        %1492 = vmatprep.subr.mxu0 0.0
        %1493 = vmatpush1.msra.mxu0 0.0
        %1494 = vmatprep.subr.mxu0 0.0
        %1495 = vmatpush1.msra.mxu0 %v1385
        %1496 = vmatprep.subr.mxu0 0.0
        %1497 = vmatpush1.msra.mxu0 %v1365
        %1498 = vmatprep.subr.mxu0 0.0
        %1499 = vmatpush1.msra.mxu0 %v1362
        %1500 = vmatprep.subr.mxu0 0.0
        %1501 = vmatpush1.msra.mxu0 %v1359
        %1502 = vmatprep.subr.mxu0 0.0
        %1503 = vmatpush2.msra.mxu0 0.0
        %1504 = vmatprep.subr.mxu0 0.0
        %1505 = vmatpush2.msra.mxu0 0.0
        %1506 = vmatprep.subr.mxu0 0.0
        %1507 = vmatpush2.msra.mxu0 0.0
        %1508 = vmatprep.subr.mxu0 0.0
        %1509 = vmatpush2.msra.mxu0 0.0
        %1510 = vmatprep.subr.mxu0 0.0
        %1511 = vmatpush2.msra.mxu0 0.0
        %1512 = vmatprep.subr.mxu0 0.0
        %1513 = vmatpush2.msra.mxu0 0.0
        %1514 = vmatprep.subr.mxu0 0.0
        %1515 = vmatpush2.msra.mxu0 0.0
        %1516 = vmatprep.subr.mxu0 0.0
        %1517 = vmatpush2.msra.mxu0 0.0
        %1518 = vmatprep.subr.mxu0 0.0
        %1519 = vmatpush2.msra.mxu0 0.0
        %1520 = vmatprep.subr.mxu0 0.0
        %1521 = vmatpush2.msra.mxu0 0.0
        %1522 = vmatprep.subr.mxu0 0.0
        %1523 = vmatpush2.msra.mxu0 0.0
        %1524 = vmatprep.subr.mxu0 0.0
        %1525 = vmatpush2.msra.mxu0 0.0
        %1526 = vmatprep.subr.mxu0 0.0
        %1527 = vmatpush2.msra.mxu0 0.0
        %1528 = vmatprep.subr.mxu0 0.0
        %1529 = vmatpush2.msra.mxu0 0.0
        %1530 = vmatprep.subr.mxu0 0.0
        %1531 = vmatpush2.msra.mxu0 0.0
        %1532 = vmatprep.subr.mxu0 0.0
        %1533 = vmatpush2.msra.mxu0 0.0
        %1534 = vmatprep.mubr.f32.mxu0 0.0
        %1535 = vmatmul.mubr.f32.gmra.mxu0 %v1370
        %v1536 = vpop.f32.mrf.mxu0
        %v1537 = vadd.f32 0.0, %v1536
        %v1538 = vpop.f32.mrf.mxu0
        %1539 = vmatprep.mubr.f32.mxu0 0.0
        %1540 = vmatmul.mubr.f32.gmra.mxu0 %v1373
        %v1541 = vpop.f32.mrf.mxu0
        %v1542 = vadd.f32 0.0, %v1541
        %v1543 = vpop.f32.mrf.mxu0
        %1544 = vmatprep.mubr.f32.mxu0 0.0
        %1545 = vmatmul.mubr.f32.gmra.mxu0 %v1376
        %v1546 = vpop.f32.mrf.mxu0
        %v1547 = vadd.f32 0.0, %v1546
        %v1548 = vpop.f32.mrf.mxu0
        %1549 = vdwg.mxu0
        %v1550 = vadd.f32 %v1344, %v1454
        %v1551 = vadd.f32 %v1345, %v1456
        %v1552 = vadd.f32 %v1346, %v1537
        %v1553 = vadd.f32 %v1347, %v1460
        %v1554 = vadd.f32 %v1348, %v1462
        %v1555 = vadd.f32 %v1349, %v1542
        %v1556 = vadd.f32 %v1350, %v1466
        %v1557 = vadd.f32 %v1351, %v1468
        %v1558 = vadd.f32 %v1352, %v1547
        %v1559 = vld [vmem:[%s2] sm:$0x7]
        %v1561 = vlaneseq
        %v1562 = vshrl.u32 %v1561, 7
        %v1563 = vsub.s32 0, %v1562
        %v1564 = vrot.slane %v1559, %v1563
        %v1565 = vlaneseq
        %v1566 = vshrl.u32 %v1565, 7
        %v1567 = vsub.s32 1, %v1566
        %v1568 = vrot.slane %v1559, %v1567
        %v1569 = vlaneseq
        %v1570 = vshrl.u32 %v1569, 7
        %v1571 = vsub.s32 2, %v1570
        %v1572 = vrot.slane %v1559, %v1571
        %v1576 = vadd.f32 %v1550, %v1564
        %v1577 = vadd.f32 %v1551, %v1568
        %v1578 = vadd.f32 %v1552, %v1572
        %v1579 = vadd.f32 %v1553, %v1564
        %v1580 = vadd.f32 %v1554, %v1568
        %v1581 = vadd.f32 %v1555, %v1572
        %v1582 = vadd.f32 %v1556, %v1564
        %v1583 = vadd.f32 %v1557, %v1568
        %v1584 = vadd.f32 %v1558, %v1572
        %v1585 = vmax.f32 %v1576, 0.0
        %v1586 = vmax.f32 %v1577, 0.0
        %v1587 = vmax.f32 %v1578, 0.0
        %v1588 = vmax.f32 %v1579, 0.0
        %v1589 = vmax.f32 %v1580, 0.0
        %v1590 = vmax.f32 %v1581, 0.0
        %v1591 = vmax.f32 %v1582, 0.0
        %v1592 = vmax.f32 %v1583, 0.0
        %v1593 = vmax.f32 %v1584, 0.0
        %1594 = vst [vmem:[#allocation2] sm:$0xff] 0.0
        %vm1595 = vcmask 523264
        %1596 = vst.msk [vmem:[#allocation2 + $0x8] sm:$0xff] %vm1595, 0.0
        %1597 = vst [vmem:[#allocation2 + $0x10] sm:$0xff] 0.0
        %1598 = vst.msk [vmem:[#allocation2 + $0x18] sm:$0xff] %vm1595, 0.0
        %v1599 = vld [vmem:[%s3] sm:$0xff]
        %v1600 = vld [vmem:[%s3 + $0x8] sm:$0xff]
        %v1601 = vld [vmem:[%s3 + $0x10] sm:$0xff]
        %v1602 = vld [vmem:[%s3 + $0x18] sm:$0xff]
        %v1603 = vld [vmem:[%s3 + $0x20] sm:$0xff]
        %v1604 = vld [vmem:[%s3 + $0x28] sm:$0xff]
        %v1605 = vld [vmem:[%s3 + $0x30] sm:$0xff]
        %v1606 = vld [vmem:[%s3 + $0x38] sm:$0xff]
        %v1607 = vld [vmem:[%s3 + $0x40] sm:$0xff]
        %v1608 = vld [vmem:[%s3 + $0x48] sm:$0xff]
        %v1609 = vld [vmem:[%s3 + $0x50] sm:$0xff]
        %v1610 = vld [vmem:[%s3 + $0x58] sm:$0xff]
        %v1611 = vld [vmem:[%s3 + $0x60] sm:$0xff]
        %v1612 = vld [vmem:[%s3 + $0x68] sm:$0xff]
        %v1613 = vld [vmem:[%s3 + $0x70] sm:$0xff]
        %v1614 = vld [vmem:[%s3 + $0x78] sm:$0xff]
        %v1615 = vld [vmem:[%s3 + $0x80] sm:$0xff]
        %v1616 = vld [vmem:[%s3 + $0x88] sm:$0xff]
        %v1617 = vld [vmem:[%s3 + $0x90] sm:$0xff]
        %v1618 = vld [vmem:[%s3 + $0x98] sm:$0xff]
        %v1619 = vld [vmem:[%s3 + $0xa0] sm:$0xff]
        %v1620 = vld [vmem:[%s3 + $0xa8] sm:$0xff]
        %v1621 = vld [vmem:[%s3 + $0xb0] sm:$0xff]
        %v1622 = vld [vmem:[%s3 + $0xb8] sm:$0xff]
        %v1623 = vld [vmem:[%s3 + $0xc0] sm:$0xff]
        %v1624 = vld [vmem:[%s3 + $0xc8] sm:$0xff]
        %v1625 = vld [vmem:[%s3 + $0xd0] sm:$0xff]
        %v1626 = vld [vmem:[%s3 + $0xd8] sm:$0xff]
        %v1627 = vld [vmem:[%s3 + $0xe0] sm:$0xff]
        %v1628 = vld [vmem:[%s3 + $0xe8] sm:$0xff]
        %v1629 = vld [vmem:[%s3 + $0xf0] sm:$0xff]
        %v1630 = vld [vmem:[%s3 + $0xf8] sm:$0xff]
        %v1631 = vld [vmem:[%s3 + $0x100] sm:$0xff]
        %v1632 = vld [vmem:[%s3 + $0x108] sm:$0xff]
        %v1633 = vld [vmem:[%s3 + $0x110] sm:$0xff]
        %v1634 = vld [vmem:[%s3 + $0x118] sm:$0xff]
        %v1635 = vld [vmem:[%s3 + $0x120] sm:$0xff]
        %v1636 = vld [vmem:[%s3 + $0x128] sm:$0xff]
        %v1637 = vld [vmem:[%s3 + $0x130] sm:$0xff]
        %v1638 = vld [vmem:[%s3 + $0x138] sm:$0xff]
        %v1639 = vld [vmem:[%s3 + $0x140] sm:$0xff]
        %v1640 = vld [vmem:[%s3 + $0x148] sm:$0xff]
        %v1641 = vld [vmem:[%s3 + $0x150] sm:$0xff]
        %v1642 = vld [vmem:[%s3 + $0x158] sm:$0xff]
        %v1643 = vld [vmem:[%s3 + $0x160] sm:$0xff]
        %v1644 = vld [vmem:[%s3 + $0x168] sm:$0xff]
        %v1645 = vld [vmem:[%s3 + $0x170] sm:$0xff]
        %v1646 = vld [vmem:[%s3 + $0x178] sm:$0xff]
        %v1647 = vld [vmem:[%s3 + $0x180] sm:$0xff]
        %v1648 = vld [vmem:[%s3 + $0x188] sm:$0xff]
        %v1649 = vld [vmem:[%s3 + $0x190] sm:$0xff]
        %v1650 = vld [vmem:[%s3 + $0x198] sm:$0xff]
        %v1651 = vld [vmem:[%s3 + $0x1a0] sm:$0xff]
        %v1652 = vld [vmem:[%s3 + $0x1a8] sm:$0xff]
        %v1653 = vld [vmem:[%s3 + $0x1b0] sm:$0xff]
        %v1654 = vld [vmem:[%s3 + $0x1b8] sm:$0xff]
        %v1655 = vld [vmem:[%s3 + $0x1c0] sm:$0xff]
        %v1656 = vld [vmem:[%s3 + $0x1c8] sm:$0xff]
        %v1657 = vld [vmem:[%s3 + $0x1d0] sm:$0xff]
        %v1658 = vld [vmem:[%s3 + $0x1d8] sm:$0xff]
        %v1659 = vld [vmem:[%s3 + $0x1e0] sm:$0xff]
        %v1660 = vld [vmem:[%s3 + $0x1e8] sm:$0xff]
        %v1661 = vld [vmem:[%s3 + $0x1f0] sm:$0xff]
        %v1662 = vld [vmem:[%s3 + $0x1f8] sm:$0xff]
        %v1663 = vld [vmem:[%s3 + $0x200] sm:$0xff]
        %v1664 = vld [vmem:[%s3 + $0x208] sm:$0xff]
        %v1665 = vld [vmem:[%s3 + $0x210] sm:$0xff]
        %v1666 = vld [vmem:[%s3 + $0x218] sm:$0xff]
        %v1667 = vld [vmem:[%s3 + $0x220] sm:$0xff]
        %v1668 = vld [vmem:[%s3 + $0x228] sm:$0xff]
        %v1669 = vld [vmem:[%s3 + $0x230] sm:$0xff]
        %v1670 = vld [vmem:[%s3 + $0x238] sm:$0xff]
        %v1671 = vld [vmem:[%s3 + $0x240] sm:$0xff]
        %v1672 = vld [vmem:[%s3 + $0x248] sm:$0xff]
        %v1673 = vld [vmem:[%s3 + $0x250] sm:$0xff]
        %v1674 = vld [vmem:[%s3 + $0x258] sm:$0xff]
        %v1675 = vld [vmem:[%s3 + $0x260] sm:$0xff]
        %v1676 = vld [vmem:[%s3 + $0x268] sm:$0xff]
        %v1677 = vld [vmem:[%s3 + $0x270] sm:$0xff]
        %v1678 = vld [vmem:[%s3 + $0x278] sm:$0xff]
        %v1679 = vld [vmem:[%s3 + $0x280] sm:$0xff]
        %v1680 = vld [vmem:[%s3 + $0x288] sm:$0xff]
        %v1681 = vld [vmem:[%s3 + $0x290] sm:$0xff]
        %v1682 = vld [vmem:[%s3 + $0x298] sm:$0xff]
        %v1683 = vld [vmem:[%s3 + $0x2a0] sm:$0xff]
        %v1684 = vld [vmem:[%s3 + $0x2a8] sm:$0xff]
        %v1685 = vld [vmem:[%s3 + $0x2b0] sm:$0xff]
        %v1686 = vld [vmem:[%s3 + $0x2b8] sm:$0xff]
        %v1687 = vld [vmem:[%s3 + $0x2c0] sm:$0xff]
        %v1688 = vld [vmem:[%s3 + $0x2c8] sm:$0xff]
        %v1689 = vld [vmem:[%s3 + $0x2d0] sm:$0xff]
        %v1690 = vld [vmem:[%s3 + $0x2d8] sm:$0xff]
        %v1691 = vld [vmem:[%s3 + $0x2e0] sm:$0xff]
        %v1692 = vld [vmem:[%s3 + $0x2e8] sm:$0xff]
        %v1693 = vld [vmem:[%s3 + $0x2f0] sm:$0xff]
        %v1694 = vld [vmem:[%s3 + $0x2f8] sm:$0xff]
        %1695 = vmatprep.subr.mxu0 %v1630
        %1696 = vmatpush1.msra.mxu0 %v1629
        %1697 = vmatprep.subr.mxu0 %v1628
        %1698 = vmatpush1.msra.mxu0 %v1627
        %1699 = vmatprep.subr.mxu0 %v1626
        %1700 = vmatpush1.msra.mxu0 %v1625
        %1701 = vmatprep.subr.mxu0 %v1624
        %1702 = vmatpush1.msra.mxu0 %v1623
        %1703 = vmatprep.subr.mxu0 %v1622
        %1704 = vmatpush1.msra.mxu0 %v1621
        %1705 = vmatprep.subr.mxu0 %v1620
        %1706 = vmatpush1.msra.mxu0 %v1619
        %1707 = vmatprep.subr.mxu0 %v1618
        %1708 = vmatpush1.msra.mxu0 %v1617
        %1709 = vmatprep.subr.mxu0 %v1616
        %1710 = vmatpush1.msra.mxu0 %v1615
        %1711 = vmatprep.subr.mxu0 %v1614
        %1712 = vmatpush1.msra.mxu0 %v1613
        %1713 = vmatprep.subr.mxu0 %v1612
        %1714 = vmatpush1.msra.mxu0 %v1611
        %1715 = vmatprep.subr.mxu0 %v1610
        %1716 = vmatpush1.msra.mxu0 %v1609
        %1717 = vmatprep.subr.mxu0 %v1608
        %1718 = vmatpush1.msra.mxu0 %v1607
        %1719 = vmatprep.subr.mxu0 %v1606
        %1720 = vmatpush1.msra.mxu0 %v1605
        %1721 = vmatprep.subr.mxu0 %v1604
        %1722 = vmatpush1.msra.mxu0 %v1603
        %1723 = vmatprep.subr.mxu0 %v1602
        %1724 = vmatpush1.msra.mxu0 %v1601
        %1725 = vmatprep.subr.mxu0 %v1600
        %1726 = vmatpush1.msra.mxu0 %v1599
        %1727 = vmatprep.subr.mxu0 %v1662
        %1728 = vmatpush2.msra.mxu0 %v1661
        %1729 = vmatprep.subr.mxu0 %v1660
        %1730 = vmatpush2.msra.mxu0 %v1659
        %1731 = vmatprep.subr.mxu0 %v1658
        %1732 = vmatpush2.msra.mxu0 %v1657
        %1733 = vmatprep.subr.mxu0 %v1656
        %1734 = vmatpush2.msra.mxu0 %v1655
        %1735 = vmatprep.subr.mxu0 %v1654
        %1736 = vmatpush2.msra.mxu0 %v1653
        %1737 = vmatprep.subr.mxu0 %v1652
        %1738 = vmatpush2.msra.mxu0 %v1651
        %1739 = vmatprep.subr.mxu0 %v1650
        %1740 = vmatpush2.msra.mxu0 %v1649
        %1741 = vmatprep.subr.mxu0 %v1648
        %1742 = vmatpush2.msra.mxu0 %v1647
        %1743 = vmatprep.subr.mxu0 %v1646
        %1744 = vmatpush2.msra.mxu0 %v1645
        %1745 = vmatprep.subr.mxu0 %v1644
        %1746 = vmatpush2.msra.mxu0 %v1643
        %1747 = vmatprep.subr.mxu0 %v1642
        %1748 = vmatpush2.msra.mxu0 %v1641
        %1749 = vmatprep.subr.mxu0 %v1640
        %1750 = vmatpush2.msra.mxu0 %v1639
        %1751 = vmatprep.subr.mxu0 %v1638
        %1752 = vmatpush2.msra.mxu0 %v1637
        %1753 = vmatprep.subr.mxu0 %v1636
        %1754 = vmatpush2.msra.mxu0 %v1635
        %1755 = vmatprep.subr.mxu0 %v1634
        %1756 = vmatpush2.msra.mxu0 %v1633
        %1757 = vmatprep.subr.mxu0 %v1632
        %1758 = vmatpush2.msra.mxu0 %v1631
        %1759 = vmatprep.mubr.f32.mxu0 %v1586
        %1760 = vmatmul.mubr.f32.gmra.mxu0 %v1585
        %v1761 = vpop.f32.mrf.mxu0
        %v1762 = vadd.f32 0.0, %v1761
        %v1763 = vpop.f32.mrf.mxu0
        %v1764 = vadd.f32 0.0, %v1763
        %1765 = vmatprep.mubr.f32.mxu0 %v1589
        %1766 = vmatmul.mubr.f32.gmra.mxu0 %v1588
        %v1767 = vpop.f32.mrf.mxu0
        %v1768 = vadd.f32 0.0, %v1767
        %v1769 = vpop.f32.mrf.mxu0
        %v1770 = vadd.f32 0.0, %v1769
        %1771 = vmatprep.mubr.f32.mxu0 %v1592
        %1772 = vmatmul.mubr.f32.gmra.mxu0 %v1591
        %v1773 = vpop.f32.mrf.mxu0
        %v1774 = vadd.f32 0.0, %v1773
        %v1775 = vpop.f32.mrf.mxu0
        %v1776 = vadd.f32 0.0, %v1775
        %1777 = vdwg.mxu0
        %1778 = vmatprep.subr.mxu0 %v1694
        %1779 = vmatpush1.msra.mxu0 %v1693
        %1780 = vmatprep.subr.mxu0 %v1692
        %1781 = vmatpush1.msra.mxu0 %v1691
        %1782 = vmatprep.subr.mxu0 %v1690
        %1783 = vmatpush1.msra.mxu0 %v1689
        %1784 = vmatprep.subr.mxu0 %v1688
        %1785 = vmatpush1.msra.mxu0 %v1687
        %1786 = vmatprep.subr.mxu0 %v1686
        %1787 = vmatpush1.msra.mxu0 %v1685
        %1788 = vmatprep.subr.mxu0 %v1684
        %1789 = vmatpush1.msra.mxu0 %v1683
        %1790 = vmatprep.subr.mxu0 %v1682
        %1791 = vmatpush1.msra.mxu0 %v1681
        %1792 = vmatprep.subr.mxu0 %v1680
        %1793 = vmatpush1.msra.mxu0 %v1679
        %1794 = vmatprep.subr.mxu0 %v1678
        %1795 = vmatpush1.msra.mxu0 %v1677
        %1796 = vmatprep.subr.mxu0 %v1676
        %1797 = vmatpush1.msra.mxu0 %v1675
        %1798 = vmatprep.subr.mxu0 %v1674
        %1799 = vmatpush1.msra.mxu0 %v1673
        %1800 = vmatprep.subr.mxu0 %v1672
        %1801 = vmatpush1.msra.mxu0 %v1671
        %1802 = vmatprep.subr.mxu0 %v1670
        %1803 = vmatpush1.msra.mxu0 %v1669
        %1804 = vmatprep.subr.mxu0 %v1668
        %1805 = vmatpush1.msra.mxu0 %v1667
        %1806 = vmatprep.subr.mxu0 %v1666
        %1807 = vmatpush1.msra.mxu0 %v1665
        %1808 = vmatprep.subr.mxu0 %v1664
        %1809 = vmatpush1.msra.mxu0 %v1663
        %1810 = vmatprep.subr.mxu0 0.0
        %1811 = vmatpush2.msra.mxu0 0.0
        %1812 = vmatprep.subr.mxu0 0.0
        %1813 = vmatpush2.msra.mxu0 0.0
        %1814 = vmatprep.subr.mxu0 0.0
        %1815 = vmatpush2.msra.mxu0 0.0
        %1816 = vmatprep.subr.mxu0 0.0
        %1817 = vmatpush2.msra.mxu0 0.0
        %1818 = vmatprep.subr.mxu0 0.0
        %1819 = vmatpush2.msra.mxu0 0.0
        %1820 = vmatprep.subr.mxu0 0.0
        %1821 = vmatpush2.msra.mxu0 0.0
        %1822 = vmatprep.subr.mxu0 0.0
        %1823 = vmatpush2.msra.mxu0 0.0
        %1824 = vmatprep.subr.mxu0 0.0
        %1825 = vmatpush2.msra.mxu0 0.0
        %1826 = vmatprep.subr.mxu0 0.0
        %1827 = vmatpush2.msra.mxu0 0.0
        %1828 = vmatprep.subr.mxu0 0.0
        %1829 = vmatpush2.msra.mxu0 0.0
        %1830 = vmatprep.subr.mxu0 0.0
        %1831 = vmatpush2.msra.mxu0 0.0
        %1832 = vmatprep.subr.mxu0 0.0
        %1833 = vmatpush2.msra.mxu0 0.0
        %1834 = vmatprep.subr.mxu0 0.0
        %1835 = vmatpush2.msra.mxu0 0.0
        %1836 = vmatprep.subr.mxu0 0.0
        %1837 = vmatpush2.msra.mxu0 0.0
        %1838 = vmatprep.subr.mxu0 0.0
        %1839 = vmatpush2.msra.mxu0 0.0
        %1840 = vmatprep.subr.mxu0 0.0
        %1841 = vmatpush2.msra.mxu0 0.0
        %1842 = vmatprep.mubr.f32.mxu0 0.0
        %1843 = vmatmul.mubr.f32.gmra.mxu0 %v1587
        %v1844 = vpop.f32.mrf.mxu0
        %v1845 = vadd.f32 %v1762, %v1844
        %v1846 = vpop.f32.mrf.mxu0
        %v1847 = vadd.f32 %v1764, %v1846
        %1848 = vmatprep.mubr.f32.mxu0 0.0
        %1849 = vmatmul.mubr.f32.gmra.mxu0 %v1590
        %v1850 = vpop.f32.mrf.mxu0
        %v1851 = vadd.f32 %v1768, %v1850
        %v1852 = vpop.f32.mrf.mxu0
        %v1853 = vadd.f32 %v1770, %v1852
        %1854 = vmatprep.mubr.f32.mxu0 0.0
        %1855 = vmatmul.mubr.f32.gmra.mxu0 %v1593
        %v1856 = vpop.f32.mrf.mxu0
        %v1857 = vadd.f32 %v1774, %v1856
        %v1858 = vpop.f32.mrf.mxu0
        %v1859 = vadd.f32 %v1776, %v1858
        %1860 = vdwg.mxu0
        %s1861 = scalar_lea.vmem %s3, 768
        %v1862 = vld [vmem:[%s1861] sm:$0xff]
        %v1863 = vld [vmem:[%s1861 + $0x8] sm:$0xff]
        %v1864 = vld [vmem:[%s1861 + $0x10] sm:$0xff]
        %v1865 = vld [vmem:[%s1861 + $0x18] sm:$0xff]
        %v1866 = vld [vmem:[%s1861 + $0x20] sm:$0xff]
        %v1867 = vld [vmem:[%s1861 + $0x28] sm:$0xff]
        %v1868 = vld [vmem:[%s1861 + $0x30] sm:$0xff]
        %v1869 = vld [vmem:[%s1861 + $0x38] sm:$0xff]
        %v1870 = vld [vmem:[%s1861 + $0x40] sm:$0xff]
        %v1871 = vld [vmem:[%s1861 + $0x48] sm:$0xff]
        %v1872 = vld [vmem:[%s1861 + $0x50] sm:$0xff]
        %v1873 = vld [vmem:[%s1861 + $0x58] sm:$0xff]
        %v1874 = vld [vmem:[%s1861 + $0x60] sm:$0xff]
        %v1875 = vld [vmem:[%s1861 + $0x68] sm:$0xff]
        %v1876 = vld [vmem:[%s1861 + $0x70] sm:$0xff]
        %v1877 = vld [vmem:[%s1861 + $0x78] sm:$0xff]
        %v1878 = vld [vmem:[%s1861 + $0x80] sm:$0xff]
        %v1879 = vld [vmem:[%s1861 + $0x88] sm:$0xff]
        %v1880 = vld [vmem:[%s1861 + $0x90] sm:$0xff]
        %v1881 = vld [vmem:[%s1861 + $0x98] sm:$0xff]
        %v1882 = vld [vmem:[%s1861 + $0xa0] sm:$0xff]
        %v1883 = vld [vmem:[%s1861 + $0xa8] sm:$0xff]
        %v1884 = vld [vmem:[%s1861 + $0xb0] sm:$0xff]
        %v1885 = vld [vmem:[%s1861 + $0xb8] sm:$0xff]
        %v1886 = vld [vmem:[%s1861 + $0xc0] sm:$0xff]
        %v1887 = vld [vmem:[%s1861 + $0xc8] sm:$0xff]
        %v1888 = vld [vmem:[%s1861 + $0xd0] sm:$0xff]
        %v1889 = vld [vmem:[%s1861 + $0xd8] sm:$0xff]
        %v1890 = vld [vmem:[%s1861 + $0xe0] sm:$0xff]
        %v1891 = vld [vmem:[%s1861 + $0xe8] sm:$0xff]
        %v1892 = vld [vmem:[%s1861 + $0xf0] sm:$0xff]
        %v1893 = vld [vmem:[%s1861 + $0xf8] sm:$0xff]
        %v1894 = vld [vmem:[%s1861 + $0x100] sm:$0xff]
        %v1895 = vld [vmem:[%s1861 + $0x108] sm:$0xff]
        %v1896 = vld [vmem:[%s1861 + $0x110] sm:$0xff]
        %v1897 = vld [vmem:[%s1861 + $0x118] sm:$0xff]
        %v1898 = vld [vmem:[%s1861 + $0x120] sm:$0xff]
        %v1899 = vld [vmem:[%s1861 + $0x128] sm:$0xff]
        %v1900 = vld [vmem:[%s1861 + $0x130] sm:$0xff]
        %v1901 = vld [vmem:[%s1861 + $0x138] sm:$0xff]
        %v1902 = vld [vmem:[%s1861 + $0x140] sm:$0xff]
        %v1903 = vld [vmem:[%s1861 + $0x148] sm:$0xff]
        %v1904 = vld [vmem:[%s1861 + $0x150] sm:$0xff]
        %v1905 = vld [vmem:[%s1861 + $0x158] sm:$0xff]
        %v1906 = vld [vmem:[%s1861 + $0x160] sm:$0xff]
        %v1907 = vld [vmem:[%s1861 + $0x168] sm:$0xff]
        %v1908 = vld [vmem:[%s1861 + $0x170] sm:$0xff]
        %v1909 = vld [vmem:[%s1861 + $0x178] sm:$0xff]
        %v1910 = vld [vmem:[%s1861 + $0x180] sm:$0xff]
        %v1911 = vld [vmem:[%s1861 + $0x188] sm:$0xff]
        %v1912 = vld [vmem:[%s1861 + $0x190] sm:$0xff]
        %v1913 = vld [vmem:[%s1861 + $0x198] sm:$0xff]
        %v1914 = vld [vmem:[%s1861 + $0x1a0] sm:$0xff]
        %v1915 = vld [vmem:[%s1861 + $0x1a8] sm:$0xff]
        %v1916 = vld [vmem:[%s1861 + $0x1b0] sm:$0xff]
        %v1917 = vld [vmem:[%s1861 + $0x1b8] sm:$0xff]
        %v1918 = vld [vmem:[%s1861 + $0x1c0] sm:$0xff]
        %v1919 = vld [vmem:[%s1861 + $0x1c8] sm:$0xff]
        %v1920 = vld [vmem:[%s1861 + $0x1d0] sm:$0xff]
        %v1921 = vld [vmem:[%s1861 + $0x1d8] sm:$0xff]
        %v1922 = vld [vmem:[%s1861 + $0x1e0] sm:$0xff]
        %v1923 = vld [vmem:[%s1861 + $0x1e8] sm:$0xff]
        %v1924 = vld [vmem:[%s1861 + $0x1f0] sm:$0xff]
        %v1925 = vld [vmem:[%s1861 + $0x1f8] sm:$0xff]
        %v1926 = vld [vmem:[%s1861 + $0x200] sm:$0xff]
        %v1927 = vld [vmem:[%s1861 + $0x208] sm:$0xff]
        %v1928 = vld [vmem:[%s1861 + $0x210] sm:$0xff]
        %v1929 = vld [vmem:[%s1861 + $0x218] sm:$0xff]
        %v1930 = vld [vmem:[%s1861 + $0x220] sm:$0xff]
        %v1931 = vld [vmem:[%s1861 + $0x228] sm:$0xff]
        %v1932 = vld [vmem:[%s1861 + $0x230] sm:$0xff]
        %v1933 = vld [vmem:[%s1861 + $0x238] sm:$0xff]
        %v1934 = vld [vmem:[%s1861 + $0x240] sm:$0xff]
        %v1935 = vld [vmem:[%s1861 + $0x248] sm:$0xff]
        %v1936 = vld [vmem:[%s1861 + $0x250] sm:$0xff]
        %v1937 = vld [vmem:[%s1861 + $0x258] sm:$0xff]
        %v1938 = vld [vmem:[%s1861 + $0x260] sm:$0xff]
        %v1939 = vld [vmem:[%s1861 + $0x268] sm:$0xff]
        %v1940 = vld [vmem:[%s1861 + $0x270] sm:$0xff]
        %v1941 = vld [vmem:[%s1861 + $0x278] sm:$0xff]
        %v1942 = vld [vmem:[%s1861 + $0x280] sm:$0xff]
        %v1943 = vld [vmem:[%s1861 + $0x288] sm:$0xff]
        %v1944 = vld [vmem:[%s1861 + $0x290] sm:$0xff]
        %v1945 = vld [vmem:[%s1861 + $0x298] sm:$0xff]
        %v1946 = vld [vmem:[%s1861 + $0x2a0] sm:$0xff]
        %v1947 = vld [vmem:[%s1861 + $0x2a8] sm:$0xff]
        %v1948 = vld [vmem:[%s1861 + $0x2b0] sm:$0xff]
        %v1949 = vld [vmem:[%s1861 + $0x2b8] sm:$0xff]
        %v1950 = vld [vmem:[%s1861 + $0x2c0] sm:$0xff]
        %v1951 = vld [vmem:[%s1861 + $0x2c8] sm:$0xff]
        %v1952 = vld [vmem:[%s1861 + $0x2d0] sm:$0xff]
        %v1953 = vld [vmem:[%s1861 + $0x2d8] sm:$0xff]
        %v1954 = vld [vmem:[%s1861 + $0x2e0] sm:$0xff]
        %v1955 = vld [vmem:[%s1861 + $0x2e8] sm:$0xff]
        %v1956 = vld [vmem:[%s1861 + $0x2f0] sm:$0xff]
        %v1957 = vld [vmem:[%s1861 + $0x2f8] sm:$0xff]
        %1958 = vmatprep.subr.mxu0 %v1893
        %1959 = vmatpush1.msra.mxu0 %v1892
        %1960 = vmatprep.subr.mxu0 %v1891
        %1961 = vmatpush1.msra.mxu0 %v1890
        %1962 = vmatprep.subr.mxu0 %v1889
        %1963 = vmatpush1.msra.mxu0 %v1888
        %1964 = vmatprep.subr.mxu0 %v1887
        %1965 = vmatpush1.msra.mxu0 %v1886
        %1966 = vmatprep.subr.mxu0 %v1885
        %1967 = vmatpush1.msra.mxu0 %v1884
        %1968 = vmatprep.subr.mxu0 %v1883
        %1969 = vmatpush1.msra.mxu0 %v1882
        %1970 = vmatprep.subr.mxu0 %v1881
        %1971 = vmatpush1.msra.mxu0 %v1880
        %1972 = vmatprep.subr.mxu0 %v1879
        %1973 = vmatpush1.msra.mxu0 %v1878
        %1974 = vmatprep.subr.mxu0 %v1877
        %1975 = vmatpush1.msra.mxu0 %v1876
        %1976 = vmatprep.subr.mxu0 %v1875
        %1977 = vmatpush1.msra.mxu0 %v1874
        %1978 = vmatprep.subr.mxu0 %v1873
        %1979 = vmatpush1.msra.mxu0 %v1872
        %1980 = vmatprep.subr.mxu0 %v1871
        %1981 = vmatpush1.msra.mxu0 %v1870
        %1982 = vmatprep.subr.mxu0 %v1869
        %1983 = vmatpush1.msra.mxu0 %v1868
        %1984 = vmatprep.subr.mxu0 %v1867
        %1985 = vmatpush1.msra.mxu0 %v1866
        %1986 = vmatprep.subr.mxu0 %v1865
        %1987 = vmatpush1.msra.mxu0 %v1864
        %1988 = vmatprep.subr.mxu0 %v1863
        %1989 = vmatpush1.msra.mxu0 %v1862
        %1990 = vmatprep.subr.mxu0 %v1925
        %1991 = vmatpush2.msra.mxu0 %v1924
        %1992 = vmatprep.subr.mxu0 %v1923
        %1993 = vmatpush2.msra.mxu0 %v1922
        %1994 = vmatprep.subr.mxu0 %v1921
        %1995 = vmatpush2.msra.mxu0 %v1920
        %1996 = vmatprep.subr.mxu0 %v1919
        %1997 = vmatpush2.msra.mxu0 %v1918
        %1998 = vmatprep.subr.mxu0 %v1917
        %1999 = vmatpush2.msra.mxu0 %v1916
        %2000 = vmatprep.subr.mxu0 %v1915
        %2001 = vmatpush2.msra.mxu0 %v1914
        %2002 = vmatprep.subr.mxu0 %v1913
        %2003 = vmatpush2.msra.mxu0 %v1912
        %2004 = vmatprep.subr.mxu0 %v1911
        %2005 = vmatpush2.msra.mxu0 %v1910
        %2006 = vmatprep.subr.mxu0 %v1909
        %2007 = vmatpush2.msra.mxu0 %v1908
        %2008 = vmatprep.subr.mxu0 %v1907
        %2009 = vmatpush2.msra.mxu0 %v1906
        %2010 = vmatprep.subr.mxu0 %v1905
        %2011 = vmatpush2.msra.mxu0 %v1904
        %2012 = vmatprep.subr.mxu0 %v1903
        %2013 = vmatpush2.msra.mxu0 %v1902
        %2014 = vmatprep.subr.mxu0 %v1901
        %2015 = vmatpush2.msra.mxu0 %v1900
        %2016 = vmatprep.subr.mxu0 %v1899
        %2017 = vmatpush2.msra.mxu0 %v1898
        %2018 = vmatprep.subr.mxu0 %v1897
        %2019 = vmatpush2.msra.mxu0 %v1896
        %2020 = vmatprep.subr.mxu0 %v1895
        %2021 = vmatpush2.msra.mxu0 %v1894
        %2022 = vmatprep.mubr.f32.mxu0 %v1586
        %2023 = vmatmul.mubr.f32.gmra.mxu0 %v1585
        %v2024 = vpop.f32.mrf.mxu0
        %v2025 = vadd.f32 0.0, %v2024
        %v2026 = vpop.f32.mrf.mxu0
        %v2027 = vadd.f32 0.0, %v2026
        %2028 = vmatprep.mubr.f32.mxu0 %v1589
        %2029 = vmatmul.mubr.f32.gmra.mxu0 %v1588
        %v2030 = vpop.f32.mrf.mxu0
        %v2031 = vadd.f32 0.0, %v2030
        %v2032 = vpop.f32.mrf.mxu0
        %v2033 = vadd.f32 0.0, %v2032
        %2034 = vmatprep.mubr.f32.mxu0 %v1592
        %2035 = vmatmul.mubr.f32.gmra.mxu0 %v1591
        %v2036 = vpop.f32.mrf.mxu0
        %v2037 = vadd.f32 0.0, %v2036
        %v2038 = vpop.f32.mrf.mxu0
        %v2039 = vadd.f32 0.0, %v2038
        %2040 = vdwg.mxu0
        %2041 = vmatprep.subr.mxu0 %v1957
        %2042 = vmatpush1.msra.mxu0 %v1956
        %2043 = vmatprep.subr.mxu0 %v1955
        %2044 = vmatpush1.msra.mxu0 %v1954
        %2045 = vmatprep.subr.mxu0 %v1953
        %2046 = vmatpush1.msra.mxu0 %v1952
        %2047 = vmatprep.subr.mxu0 %v1951
        %2048 = vmatpush1.msra.mxu0 %v1950
        %2049 = vmatprep.subr.mxu0 %v1949
        %2050 = vmatpush1.msra.mxu0 %v1948
        %2051 = vmatprep.subr.mxu0 %v1947
        %2052 = vmatpush1.msra.mxu0 %v1946
        %2053 = vmatprep.subr.mxu0 %v1945
        %2054 = vmatpush1.msra.mxu0 %v1944
        %2055 = vmatprep.subr.mxu0 %v1943
        %2056 = vmatpush1.msra.mxu0 %v1942
        %2057 = vmatprep.subr.mxu0 %v1941
        %2058 = vmatpush1.msra.mxu0 %v1940
        %2059 = vmatprep.subr.mxu0 %v1939
        %2060 = vmatpush1.msra.mxu0 %v1938
        %2061 = vmatprep.subr.mxu0 %v1937
        %2062 = vmatpush1.msra.mxu0 %v1936
        %2063 = vmatprep.subr.mxu0 %v1935
        %2064 = vmatpush1.msra.mxu0 %v1934
        %2065 = vmatprep.subr.mxu0 %v1933
        %2066 = vmatpush1.msra.mxu0 %v1932
        %2067 = vmatprep.subr.mxu0 %v1931
        %2068 = vmatpush1.msra.mxu0 %v1930
        %2069 = vmatprep.subr.mxu0 %v1929
        %2070 = vmatpush1.msra.mxu0 %v1928
        %2071 = vmatprep.subr.mxu0 %v1927
        %2072 = vmatpush1.msra.mxu0 %v1926
        %2073 = vmatprep.subr.mxu0 0.0
        %2074 = vmatpush2.msra.mxu0 0.0
        %2075 = vmatprep.subr.mxu0 0.0
        %2076 = vmatpush2.msra.mxu0 0.0
        %2077 = vmatprep.subr.mxu0 0.0
        %2078 = vmatpush2.msra.mxu0 0.0
        %2079 = vmatprep.subr.mxu0 0.0
        %2080 = vmatpush2.msra.mxu0 0.0
        %2081 = vmatprep.subr.mxu0 0.0
        %2082 = vmatpush2.msra.mxu0 0.0
        %2083 = vmatprep.subr.mxu0 0.0
        %2084 = vmatpush2.msra.mxu0 0.0
        %2085 = vmatprep.subr.mxu0 0.0
        %2086 = vmatpush2.msra.mxu0 0.0
        %2087 = vmatprep.subr.mxu0 0.0
        %2088 = vmatpush2.msra.mxu0 0.0
        %2089 = vmatprep.subr.mxu0 0.0
        %2090 = vmatpush2.msra.mxu0 0.0
        %2091 = vmatprep.subr.mxu0 0.0
        %2092 = vmatpush2.msra.mxu0 0.0
        %2093 = vmatprep.subr.mxu0 0.0
        %2094 = vmatpush2.msra.mxu0 0.0
        %2095 = vmatprep.subr.mxu0 0.0
        %2096 = vmatpush2.msra.mxu0 0.0
        %2097 = vmatprep.subr.mxu0 0.0
        %2098 = vmatpush2.msra.mxu0 0.0
        %2099 = vmatprep.subr.mxu0 0.0
        %2100 = vmatpush2.msra.mxu0 0.0
        %2101 = vmatprep.subr.mxu0 0.0
        %2102 = vmatpush2.msra.mxu0 0.0
        %2103 = vmatprep.subr.mxu0 0.0
        %2104 = vmatpush2.msra.mxu0 0.0
        %2105 = vmatprep.mubr.f32.mxu0 0.0
        %2106 = vmatmul.mubr.f32.gmra.mxu0 %v1587
        %v2107 = vpop.f32.mrf.mxu0
        %v2108 = vadd.f32 %v2025, %v2107
        %v2109 = vpop.f32.mrf.mxu0
        %v2110 = vadd.f32 %v2027, %v2109
        %2111 = vmatprep.mubr.f32.mxu0 0.0
        %2112 = vmatmul.mubr.f32.gmra.mxu0 %v1590
        %v2113 = vpop.f32.mrf.mxu0
        %v2114 = vadd.f32 %v2031, %v2113
        %v2115 = vpop.f32.mrf.mxu0
        %v2116 = vadd.f32 %v2033, %v2115
        %2117 = vmatprep.mubr.f32.mxu0 0.0
        %2118 = vmatmul.mubr.f32.gmra.mxu0 %v1593
        %v2119 = vpop.f32.mrf.mxu0
        %v2120 = vadd.f32 %v2037, %v2119
        %v2121 = vpop.f32.mrf.mxu0
        %v2122 = vadd.f32 %v2039, %v2121
        %2123 = vdwg.mxu0
        %v2124 = vmax.f32 %v1845, %v2108
        %v2125 = vmax.f32 %v1847, %v2110
        %v2126 = vmax.f32 %v1851, %v2114
        %v2127 = vmax.f32 %v1853, %v2116
        %v2128 = vmax.f32 %v1857, %v2120
        %v2129 = vmax.f32 %v1859, %v2122
        %v2130 = vld [vmem:[%s4] sm:$0xff]
        %v2131 = vld [vmem:[%s4 + $0x8] sm:$0xf]
        %vm2132 = vcmask 195584
        %v2134 = vsel %vm2132, %v2130, 0
        %v2137 = vsel %vm2132, %v2131, 0
        %2139 = vmatprep.subr.mxu0 0.0
        %2140 = vmatpush1.msra.mxu0 0.0
        %2141 = vmatprep.subr.mxu0 0.0
        %2142 = vmatpush1.msra.mxu0 0.0
        %2143 = vmatprep.subr.mxu0 0.0
        %2144 = vmatpush1.msra.mxu0 0.0
        %2145 = vmatprep.subr.mxu0 0.0
        %2146 = vmatpush1.msra.mxu0 0.0
        %2147 = vmatprep.subr.mxu0 0.0
        %2148 = vmatpush1.msra.mxu0 0.0
        %2149 = vmatprep.subr.mxu0 0.0
        %2150 = vmatpush1.msra.mxu0 0.0
        %2151 = vmatprep.subr.mxu0 0.0
        %2152 = vmatpush1.msra.mxu0 0.0
        %2153 = vmatprep.subr.mxu0 0.0
        %2154 = vmatpush1.msra.mxu0 0.0
        %2155 = vmatprep.subr.mxu0 0.0
        %2156 = vmatpush1.msra.mxu0 0.0
        %2157 = vmatprep.subr.mxu0 0.0
        %2158 = vmatpush1.msra.mxu0 0.0
        %2159 = vmatprep.subr.mxu0 0.0
        %2160 = vmatpush1.msra.mxu0 0.0
        %2161 = vmatprep.subr.mxu0 0.0
        %2162 = vmatpush1.msra.mxu0 0.0
        %2163 = vmatprep.subr.mxu0 0.0
        %2164 = vmatpush1.msra.mxu0 0.0
        %2165 = vmatprep.subr.mxu0 %v2129
        %2166 = vmatpush1.msra.mxu0 %v2128
        %2167 = vmatprep.subr.mxu0 %v2127
        %2168 = vmatpush1.msra.mxu0 %v2126
        %2169 = vmatprep.subr.mxu0 %v2125
        %2170 = vmatpush1.msra.mxu0 %v2124
        %2171 = vmatprep.subr.mxu0 0.0
        %2172 = vmatpush2.msra.mxu0 0.0
        %2173 = vmatprep.subr.mxu0 0.0
        %2174 = vmatpush2.msra.mxu0 0.0
        %2175 = vmatprep.subr.mxu0 0.0
        %2176 = vmatpush2.msra.mxu0 0.0
        %2177 = vmatprep.subr.mxu0 0.0
        %2178 = vmatpush2.msra.mxu0 0.0
        %2179 = vmatprep.subr.mxu0 0.0
        %2180 = vmatpush2.msra.mxu0 0.0
        %2181 = vmatprep.subr.mxu0 0.0
        %2182 = vmatpush2.msra.mxu0 0.0
        %2183 = vmatprep.subr.mxu0 0.0
        %2184 = vmatpush2.msra.mxu0 0.0
        %2185 = vmatprep.subr.mxu0 0.0
        %2186 = vmatpush2.msra.mxu0 0.0
        %2187 = vmatprep.subr.mxu0 0.0
        %2188 = vmatpush2.msra.mxu0 0.0
        %2189 = vmatprep.subr.mxu0 0.0
        %2190 = vmatpush2.msra.mxu0 0.0
        %2191 = vmatprep.subr.mxu0 0.0
        %2192 = vmatpush2.msra.mxu0 0.0
        %2193 = vmatprep.subr.mxu0 0.0
        %2194 = vmatpush2.msra.mxu0 0.0
        %2195 = vmatprep.subr.mxu0 0.0
        %2196 = vmatpush2.msra.mxu0 0.0
        %2197 = vmatprep.subr.mxu0 0.0
        %2198 = vmatpush2.msra.mxu0 0.0
        %2199 = vmatprep.subr.mxu0 0.0
        %2200 = vmatpush2.msra.mxu0 0.0
        %2201 = vmatprep.subr.mxu0 0.0
        %2202 = vmatpush2.msra.mxu0 0.0
        %2203 = vmatprep.mubr.f32.mxu0 0.0
        %2204 = vmatmul.mubr.f32.gmra.mxu0 %v2134
        %v2205 = vpop.f32.mrf.mxu0
        %v2206 = vadd.f32 0.0, %v2205
        %v2207 = vpop.f32.mrf.mxu0
        %v2208 = vadd.f32 0.0, %v2207
        %2209 = vmatprep.mubr.f32.mxu0 0.0
        %2210 = vmatmul.mubr.f32.gmra.mxu0 %v2137
        %v2211 = vpop.f32.mrf.mxu0
        %v2212 = vadd.f32 0.0, %v2211
        %v2213 = vpop.f32.mrf.mxu0
        %v2214 = vadd.f32 0.0, %v2213
        %2215 = vdwg.mxu0
        %s2216 = scalar_lea.vmem %s4, 16
        %v2217 = vld [vmem:[%s2216] sm:$0xff]
        %v2218 = vld [vmem:[%s2216 + $0x8] sm:$0xf]
        %v2220 = vsel %vm2132, %v2217, 0
        %v2223 = vsel %vm2132, %v2218, 0
        %2225 = vmatprep.subr.mxu0 0.0
        %2226 = vmatpush1.msra.mxu0 0.0
        %2227 = vmatprep.subr.mxu0 0.0
        %2228 = vmatpush1.msra.mxu0 0.0
        %2229 = vmatprep.subr.mxu0 0.0
        %2230 = vmatpush1.msra.mxu0 0.0
        %2231 = vmatprep.subr.mxu0 0.0
        %2232 = vmatpush1.msra.mxu0 0.0
        %2233 = vmatprep.subr.mxu0 0.0
        %2234 = vmatpush1.msra.mxu0 0.0
        %2235 = vmatprep.subr.mxu0 0.0
        %2236 = vmatpush1.msra.mxu0 0.0
        %2237 = vmatprep.subr.mxu0 0.0
        %2238 = vmatpush1.msra.mxu0 0.0
        %2239 = vmatprep.subr.mxu0 0.0
        %2240 = vmatpush1.msra.mxu0 0.0
        %2241 = vmatprep.subr.mxu0 0.0
        %2242 = vmatpush1.msra.mxu0 0.0
        %2243 = vmatprep.subr.mxu0 0.0
        %2244 = vmatpush1.msra.mxu0 0.0
        %2245 = vmatprep.subr.mxu0 0.0
        %2246 = vmatpush1.msra.mxu0 0.0
        %2247 = vmatprep.subr.mxu0 0.0
        %2248 = vmatpush1.msra.mxu0 0.0
        %2249 = vmatprep.subr.mxu0 0.0
        %2250 = vmatpush1.msra.mxu0 0.0
        %2251 = vmatprep.subr.mxu0 %v2129
        %2252 = vmatpush1.msra.mxu0 %v2128
        %2253 = vmatprep.subr.mxu0 %v2127
        %2254 = vmatpush1.msra.mxu0 %v2126
        %2255 = vmatprep.subr.mxu0 %v2125
        %2256 = vmatpush1.msra.mxu0 %v2124
        %2257 = vmatprep.subr.mxu0 0.0
        %2258 = vmatpush2.msra.mxu0 0.0
        %2259 = vmatprep.subr.mxu0 0.0
        %2260 = vmatpush2.msra.mxu0 0.0
        %2261 = vmatprep.subr.mxu0 0.0
        %2262 = vmatpush2.msra.mxu0 0.0
        %2263 = vmatprep.subr.mxu0 0.0
        %2264 = vmatpush2.msra.mxu0 0.0
        %2265 = vmatprep.subr.mxu0 0.0
        %2266 = vmatpush2.msra.mxu0 0.0
        %2267 = vmatprep.subr.mxu0 0.0
        %2268 = vmatpush2.msra.mxu0 0.0
        %2269 = vmatprep.subr.mxu0 0.0
        %2270 = vmatpush2.msra.mxu0 0.0
        %2271 = vmatprep.subr.mxu0 0.0
        %2272 = vmatpush2.msra.mxu0 0.0
        %2273 = vmatprep.subr.mxu0 0.0
        %2274 = vmatpush2.msra.mxu0 0.0
        %2275 = vmatprep.subr.mxu0 0.0
        %2276 = vmatpush2.msra.mxu0 0.0
        %2277 = vmatprep.subr.mxu0 0.0
        %2278 = vmatpush2.msra.mxu0 0.0
        %2279 = vmatprep.subr.mxu0 0.0
        %2280 = vmatpush2.msra.mxu0 0.0
        %2281 = vmatprep.subr.mxu0 0.0
        %2282 = vmatpush2.msra.mxu0 0.0
        %2283 = vmatprep.subr.mxu0 0.0
        %2284 = vmatpush2.msra.mxu0 0.0
        %2285 = vmatprep.subr.mxu0 0.0
        %2286 = vmatpush2.msra.mxu0 0.0
        %2287 = vmatprep.subr.mxu0 0.0
        %2288 = vmatpush2.msra.mxu0 0.0
        %2289 = vmatprep.mubr.f32.mxu0 0.0
        %2290 = vmatmul.mubr.f32.gmra.mxu0 %v2220
        %v2291 = vpop.f32.mrf.mxu0
        %v2292 = vadd.f32 0.0, %v2291
        %v2293 = vpop.f32.mrf.mxu0
        %v2294 = vadd.f32 0.0, %v2293
        %2295 = vmatprep.mubr.f32.mxu0 0.0
        %2296 = vmatmul.mubr.f32.gmra.mxu0 %v2223
        %v2297 = vpop.f32.mrf.mxu0
        %v2298 = vadd.f32 0.0, %v2297
        %v2299 = vpop.f32.mrf.mxu0
        %v2300 = vadd.f32 0.0, %v2299
        %2301 = vdwg.mxu0
        %v2302 = vmax.f32 %v2206, %v2292
        %v2303 = vmax.f32 %v2208, %v2294
        %v2304 = vmax.f32 %v2212, %v2298
        %v2305 = vmax.f32 %v2214, %v2300
        %vm2310 = vcmask 1041408
        %v2311 = vrot.slane %v2302, 6
        %v2312 = vrot.slane %v2303, 6
        %v2313 = vrot.slane %v2304, 6
        %v2314 = vsel %vm2310, %v2311, %v2313
        %v2315 = vrot.slane %v2305, 6
        %v2316 = vsel %vm2310, %v2312, %v2315
        %2321 = vst [vmem:[#allocation2] sm:$0xfc] %v2311
        %vm2322 = vcmask 523266
        %2323 = vst.msk [vmem:[#allocation2 + $0x8] sm:$0xfc] %vm2322, %v2312
        %2324 = vst [vmem:[#allocation2 + $0x10] sm:$0x3f] %v2314
        %vm2325 = vcmask 521216
        %2326 = vst.msk [vmem:[#allocation2 + $0x18] sm:$0x3f] %vm2325, %v2316
        %v2327 = vld [vmem:[#allocation2] sm:$0xff]
        %v2328 = vld [vmem:[#allocation2 + $0x8] sm:$0xff]
        %v2329 = vld [vmem:[#allocation2 + $0x10] sm:$0xf]
        %v2330 = vld [vmem:[#allocation2 + $0x18] sm:$0xf]
        %v2331 = vld [vmem:[%s5] sm:$0xff]
        %v2332 = vld [vmem:[%s5 + $0x8] sm:$0xff]
        %v2333 = vld [vmem:[%s5 + $0x10] sm:$0xff]
        %v2334 = vld [vmem:[%s5 + $0x18] sm:$0xff]
        %v2335 = vld [vmem:[%s5 + $0x20] sm:$0xff]
        %v2336 = vld [vmem:[%s5 + $0x28] sm:$0xff]
        %v2337 = vld [vmem:[%s5 + $0x30] sm:$0xff]
        %v2338 = vld [vmem:[%s5 + $0x38] sm:$0xff]
        %v2339 = vld [vmem:[%s5 + $0x40] sm:$0xff]
        %v2340 = vld [vmem:[%s5 + $0x48] sm:$0xff]
        %v2341 = vld [vmem:[%s5 + $0x50] sm:$0xff]
        %v2342 = vld [vmem:[%s5 + $0x58] sm:$0xff]
        %v2343 = vld [vmem:[%s5 + $0x60] sm:$0xff]
        %v2344 = vld [vmem:[%s5 + $0x68] sm:$0xff]
        %v2345 = vld [vmem:[%s5 + $0x70] sm:$0xff]
        %v2346 = vld [vmem:[%s5 + $0x78] sm:$0xff]
        %v2347 = vld [vmem:[%s5 + $0x80] sm:$0xff]
        %v2348 = vld [vmem:[%s5 + $0x88] sm:$0xff]
        %v2349 = vld [vmem:[%s5 + $0x90] sm:$0xff]
        %v2350 = vld [vmem:[%s5 + $0x98] sm:$0xff]
        %v2351 = vld [vmem:[%s5 + $0xa0] sm:$0xff]
        %v2352 = vld [vmem:[%s5 + $0xa8] sm:$0xff]
        %v2353 = vld [vmem:[%s5 + $0xb0] sm:$0xff]
        %v2354 = vld [vmem:[%s5 + $0xb8] sm:$0xff]
        %v2355 = vld [vmem:[%s5 + $0xc0] sm:$0xff]
        %v2356 = vld [vmem:[%s5 + $0xc8] sm:$0xff]
        %v2357 = vld [vmem:[%s5 + $0xd0] sm:$0xff]
        %v2358 = vld [vmem:[%s5 + $0xd8] sm:$0xff]
        %v2359 = vld [vmem:[%s5 + $0xe0] sm:$0xff]
        %v2360 = vld [vmem:[%s5 + $0xe8] sm:$0xff]
        %v2361 = vld [vmem:[%s5 + $0xf0] sm:$0xff]
        %v2362 = vld [vmem:[%s5 + $0xf8] sm:$0xff]
        %v2363 = vld [vmem:[%s5 + $0x100] sm:$0xff]
        %v2364 = vld [vmem:[%s5 + $0x108] sm:$0xff]
        %v2365 = vld [vmem:[%s5 + $0x110] sm:$0xff]
        %v2366 = vld [vmem:[%s5 + $0x118] sm:$0xff]
        %v2367 = vld [vmem:[%s5 + $0x120] sm:$0xff]
        %v2368 = vld [vmem:[%s5 + $0x128] sm:$0xff]
        %v2369 = vld [vmem:[%s5 + $0x130] sm:$0xff]
        %v2370 = vld [vmem:[%s5 + $0x138] sm:$0xff]
        %v2371 = vld [vmem:[%s5 + $0x140] sm:$0xff]
        %v2372 = vld [vmem:[%s5 + $0x148] sm:$0xff]
        %v2373 = vld [vmem:[%s5 + $0x150] sm:$0xff]
        %v2374 = vld [vmem:[%s5 + $0x158] sm:$0xff]
        %v2375 = vld [vmem:[%s5 + $0x160] sm:$0xff]
        %v2376 = vld [vmem:[%s5 + $0x168] sm:$0xff]
        %v2377 = vld [vmem:[%s5 + $0x170] sm:$0xff]
        %v2378 = vld [vmem:[%s5 + $0x178] sm:$0xff]
        %v2379 = vld [vmem:[%s5 + $0x180] sm:$0xff]
        %v2380 = vld [vmem:[%s5 + $0x188] sm:$0xff]
        %v2381 = vld [vmem:[%s5 + $0x190] sm:$0xff]
        %v2382 = vld [vmem:[%s5 + $0x198] sm:$0xff]
        %v2383 = vld [vmem:[%s5 + $0x1a0] sm:$0xff]
        %v2384 = vld [vmem:[%s5 + $0x1a8] sm:$0xff]
        %v2385 = vld [vmem:[%s5 + $0x1b0] sm:$0xff]
        %v2386 = vld [vmem:[%s5 + $0x1b8] sm:$0xff]
        %v2387 = vld [vmem:[%s5 + $0x1c0] sm:$0xff]
        %v2388 = vld [vmem:[%s5 + $0x1c8] sm:$0xff]
        %v2389 = vld [vmem:[%s5 + $0x1d0] sm:$0xff]
        %v2390 = vld [vmem:[%s5 + $0x1d8] sm:$0xff]
        %v2391 = vld [vmem:[%s5 + $0x1e0] sm:$0xff]
        %v2392 = vld [vmem:[%s5 + $0x1e8] sm:$0xff]
        %v2393 = vld [vmem:[%s5 + $0x1f0] sm:$0xff]
        %v2394 = vld [vmem:[%s5 + $0x1f8] sm:$0xff]
        %v2395 = vld [vmem:[%s5 + $0x200] sm:$0xff]
        %v2396 = vld [vmem:[%s5 + $0x208] sm:$0xff]
        %v2397 = vld [vmem:[%s5 + $0x210] sm:$0xff]
        %v2398 = vld [vmem:[%s5 + $0x218] sm:$0xff]
        %v2399 = vld [vmem:[%s5 + $0x220] sm:$0xff]
        %v2400 = vld [vmem:[%s5 + $0x228] sm:$0xff]
        %v2401 = vld [vmem:[%s5 + $0x230] sm:$0xff]
        %v2402 = vld [vmem:[%s5 + $0x238] sm:$0xff]
        %v2403 = vld [vmem:[#allocation2] sm:$0xfe]
        %v2404 = vld [vmem:[#allocation2 + $0x8] sm:$0xfe]
        %v2405 = vld [vmem:[#allocation2 + $0x10] sm:$0x1f]
        %v2406 = vld [vmem:[#allocation2 + $0x18] sm:$0x1f]
        %s2407 = scalar_lea.vmem %s5, 576
        %v2408 = vld [vmem:[%s2407] sm:$0xff]
        %v2409 = vld [vmem:[%s2407 + $0x8] sm:$0xff]
        %v2410 = vld [vmem:[%s2407 + $0x10] sm:$0xff]
        %v2411 = vld [vmem:[%s2407 + $0x18] sm:$0xff]
        %v2412 = vld [vmem:[%s2407 + $0x20] sm:$0xff]
        %v2413 = vld [vmem:[%s2407 + $0x28] sm:$0xff]
        %v2414 = vld [vmem:[%s2407 + $0x30] sm:$0xff]
        %v2415 = vld [vmem:[%s2407 + $0x38] sm:$0xff]
        %v2416 = vld [vmem:[%s2407 + $0x40] sm:$0xff]
        %v2417 = vld [vmem:[%s2407 + $0x48] sm:$0xff]
        %v2418 = vld [vmem:[%s2407 + $0x50] sm:$0xff]
        %v2419 = vld [vmem:[%s2407 + $0x58] sm:$0xff]
        %v2420 = vld [vmem:[%s2407 + $0x60] sm:$0xff]
        %v2421 = vld [vmem:[%s2407 + $0x68] sm:$0xff]
        %v2422 = vld [vmem:[%s2407 + $0x70] sm:$0xff]
        %v2423 = vld [vmem:[%s2407 + $0x78] sm:$0xff]
        %v2424 = vld [vmem:[%s2407 + $0x80] sm:$0xff]
        %v2425 = vld [vmem:[%s2407 + $0x88] sm:$0xff]
        %v2426 = vld [vmem:[%s2407 + $0x90] sm:$0xff]
        %v2427 = vld [vmem:[%s2407 + $0x98] sm:$0xff]
        %v2428 = vld [vmem:[%s2407 + $0xa0] sm:$0xff]
        %v2429 = vld [vmem:[%s2407 + $0xa8] sm:$0xff]
        %v2430 = vld [vmem:[%s2407 + $0xb0] sm:$0xff]
        %v2431 = vld [vmem:[%s2407 + $0xb8] sm:$0xff]
        %v2432 = vld [vmem:[%s2407 + $0xc0] sm:$0xff]
        %v2433 = vld [vmem:[%s2407 + $0xc8] sm:$0xff]
        %v2434 = vld [vmem:[%s2407 + $0xd0] sm:$0xff]
        %v2435 = vld [vmem:[%s2407 + $0xd8] sm:$0xff]
        %v2436 = vld [vmem:[%s2407 + $0xe0] sm:$0xff]
        %v2437 = vld [vmem:[%s2407 + $0xe8] sm:$0xff]
        %v2438 = vld [vmem:[%s2407 + $0xf0] sm:$0xff]
        %v2439 = vld [vmem:[%s2407 + $0xf8] sm:$0xff]
        %v2440 = vld [vmem:[%s2407 + $0x100] sm:$0xff]
        %v2441 = vld [vmem:[%s2407 + $0x108] sm:$0xff]
        %v2442 = vld [vmem:[%s2407 + $0x110] sm:$0xff]
        %v2443 = vld [vmem:[%s2407 + $0x118] sm:$0xff]
        %v2444 = vld [vmem:[%s2407 + $0x120] sm:$0xff]
        %v2445 = vld [vmem:[%s2407 + $0x128] sm:$0xff]
        %v2446 = vld [vmem:[%s2407 + $0x130] sm:$0xff]
        %v2447 = vld [vmem:[%s2407 + $0x138] sm:$0xff]
        %v2448 = vld [vmem:[%s2407 + $0x140] sm:$0xff]
        %v2449 = vld [vmem:[%s2407 + $0x148] sm:$0xff]
        %v2450 = vld [vmem:[%s2407 + $0x150] sm:$0xff]
        %v2451 = vld [vmem:[%s2407 + $0x158] sm:$0xff]
        %v2452 = vld [vmem:[%s2407 + $0x160] sm:$0xff]
        %v2453 = vld [vmem:[%s2407 + $0x168] sm:$0xff]
        %v2454 = vld [vmem:[%s2407 + $0x170] sm:$0xff]
        %v2455 = vld [vmem:[%s2407 + $0x178] sm:$0xff]
        %v2456 = vld [vmem:[%s2407 + $0x180] sm:$0xff]
        %v2457 = vld [vmem:[%s2407 + $0x188] sm:$0xff]
        %v2458 = vld [vmem:[%s2407 + $0x190] sm:$0xff]
        %v2459 = vld [vmem:[%s2407 + $0x198] sm:$0xff]
        %v2460 = vld [vmem:[%s2407 + $0x1a0] sm:$0xff]
        %v2461 = vld [vmem:[%s2407 + $0x1a8] sm:$0xff]
        %v2462 = vld [vmem:[%s2407 + $0x1b0] sm:$0xff]
        %v2463 = vld [vmem:[%s2407 + $0x1b8] sm:$0xff]
        %v2464 = vld [vmem:[%s2407 + $0x1c0] sm:$0xff]
        %v2465 = vld [vmem:[%s2407 + $0x1c8] sm:$0xff]
        %v2466 = vld [vmem:[%s2407 + $0x1d0] sm:$0xff]
        %v2467 = vld [vmem:[%s2407 + $0x1d8] sm:$0xff]
        %v2468 = vld [vmem:[%s2407 + $0x1e0] sm:$0xff]
        %v2469 = vld [vmem:[%s2407 + $0x1e8] sm:$0xff]
        %v2470 = vld [vmem:[%s2407 + $0x1f0] sm:$0xff]
        %v2471 = vld [vmem:[%s2407 + $0x1f8] sm:$0xff]
        %v2472 = vld [vmem:[%s2407 + $0x200] sm:$0xff]
        %v2473 = vld [vmem:[%s2407 + $0x208] sm:$0xff]
        %v2474 = vld [vmem:[%s2407 + $0x210] sm:$0xff]
        %v2475 = vld [vmem:[%s2407 + $0x218] sm:$0xff]
        %v2476 = vld [vmem:[%s2407 + $0x220] sm:$0xff]
        %v2477 = vld [vmem:[%s2407 + $0x228] sm:$0xff]
        %v2478 = vld [vmem:[%s2407 + $0x230] sm:$0xff]
        %v2479 = vld [vmem:[%s2407 + $0x238] sm:$0xff]
        %vm2484 = vcmask 1046528
        %v2485 = vrot.slane %v2403, 1
        %v2486 = vrot.slane %v2405, 1
        %v2487 = vsel %vm2484, %v2485, %v2486
        %v2488 = vrot.slane %v2404, 1
        %v2489 = vrot.slane %v2406, 1
        %v2490 = vsel %vm2484, %v2488, %v2489
        %v2493 = vsel %vm1595, %v2490, 0
        %v2495 = vsel %vm1595, %v2489, 0
        %2497 = vmatprep.subr.mxu0 %v2454
        %2498 = vmatpush1.msra.mxu0 %v2453
        %2499 = vmatprep.subr.mxu0 %v2451
        %2500 = vmatpush1.msra.mxu0 %v2450
        %2501 = vmatprep.subr.mxu0 %v2448
        %2502 = vmatpush1.msra.mxu0 %v2447
        %2503 = vmatprep.subr.mxu0 %v2445
        %2504 = vmatpush1.msra.mxu0 %v2444
        %2505 = vmatprep.subr.mxu0 %v2442
        %2506 = vmatpush1.msra.mxu0 %v2441
        %2507 = vmatprep.subr.mxu0 %v2439
        %2508 = vmatpush1.msra.mxu0 %v2438
        %2509 = vmatprep.subr.mxu0 %v2436
        %2510 = vmatpush1.msra.mxu0 %v2435
        %2511 = vmatprep.subr.mxu0 %v2433
        %2512 = vmatpush1.msra.mxu0 %v2432
        %2513 = vmatprep.subr.mxu0 %v2430
        %2514 = vmatpush1.msra.mxu0 %v2429
        %2515 = vmatprep.subr.mxu0 %v2427
        %2516 = vmatpush1.msra.mxu0 %v2426
        %2517 = vmatprep.subr.mxu0 %v2424
        %2518 = vmatpush1.msra.mxu0 %v2423
        %2519 = vmatprep.subr.mxu0 %v2421
        %2520 = vmatpush1.msra.mxu0 %v2420
        %2521 = vmatprep.subr.mxu0 %v2418
        %2522 = vmatpush1.msra.mxu0 %v2417
        %2523 = vmatprep.subr.mxu0 %v2415
        %2524 = vmatpush1.msra.mxu0 %v2414
        %2525 = vmatprep.subr.mxu0 %v2412
        %2526 = vmatpush1.msra.mxu0 %v2411
        %2527 = vmatprep.subr.mxu0 %v2409
        %2528 = vmatpush1.msra.mxu0 %v2408
        %2529 = vmatprep.subr.mxu0 0.0
        %2530 = vmatpush2.msra.mxu0 0.0
        %2531 = vmatprep.subr.mxu0 0.0
        %2532 = vmatpush2.msra.mxu0 0.0
        %2533 = vmatprep.subr.mxu0 0.0
        %2534 = vmatpush2.msra.mxu0 0.0
        %2535 = vmatprep.subr.mxu0 0.0
        %2536 = vmatpush2.msra.mxu0 0.0
        %2537 = vmatprep.subr.mxu0 0.0
        %2538 = vmatpush2.msra.mxu0 0.0
        %2539 = vmatprep.subr.mxu0 0.0
        %2540 = vmatpush2.msra.mxu0 0.0
        %2541 = vmatprep.subr.mxu0 0.0
        %2542 = vmatpush2.msra.mxu0 0.0
        %2543 = vmatprep.subr.mxu0 0.0
        %2544 = vmatpush2.msra.mxu0 0.0
        %2545 = vmatprep.subr.mxu0 %v2478
        %2546 = vmatpush2.msra.mxu0 %v2477
        %2547 = vmatprep.subr.mxu0 %v2475
        %2548 = vmatpush2.msra.mxu0 %v2474
        %2549 = vmatprep.subr.mxu0 %v2472
        %2550 = vmatpush2.msra.mxu0 %v2471
        %2551 = vmatprep.subr.mxu0 %v2469
        %2552 = vmatpush2.msra.mxu0 %v2468
        %2553 = vmatprep.subr.mxu0 %v2466
        %2554 = vmatpush2.msra.mxu0 %v2465
        %2555 = vmatprep.subr.mxu0 %v2463
        %2556 = vmatpush2.msra.mxu0 %v2462
        %2557 = vmatprep.subr.mxu0 %v2460
        %2558 = vmatpush2.msra.mxu0 %v2459
        %2559 = vmatprep.subr.mxu0 %v2457
        %2560 = vmatpush2.msra.mxu0 %v2456
        %2561 = vmatprep.mubr.f32.mxu0 %v2493
        %2562 = vmatmul.mubr.f32.gmra.mxu0 %v2487
        %v2563 = vpop.f32.mrf.mxu0
        %v2564 = vadd.f32 0.0, %v2563
        %v2565 = vpop.f32.mrf.mxu0
        %v2566 = vadd.f32 0.0, %v2565
        %2567 = vmatprep.mubr.f32.mxu0 %v2495
        %2568 = vmatmul.mubr.f32.gmra.mxu0 %v2486
        %v2569 = vpop.f32.mrf.mxu0
        %v2570 = vadd.f32 0.0, %v2569
        %v2571 = vpop.f32.mrf.mxu0
        %v2572 = vadd.f32 0.0, %v2571
        %2573 = vdwg.mxu0
        %2574 = vmatprep.subr.mxu0 0.0
        %2575 = vmatpush1.msra.mxu0 %v2455
        %2576 = vmatprep.subr.mxu0 0.0
        %2577 = vmatpush1.msra.mxu0 %v2452
        %2578 = vmatprep.subr.mxu0 0.0
        %2579 = vmatpush1.msra.mxu0 %v2449
        %2580 = vmatprep.subr.mxu0 0.0
        %2581 = vmatpush1.msra.mxu0 %v2446
        %2582 = vmatprep.subr.mxu0 0.0
        %2583 = vmatpush1.msra.mxu0 %v2443
        %2584 = vmatprep.subr.mxu0 0.0
        %2585 = vmatpush1.msra.mxu0 %v2440
        %2586 = vmatprep.subr.mxu0 0.0
        %2587 = vmatpush1.msra.mxu0 %v2437
        %2588 = vmatprep.subr.mxu0 0.0
        %2589 = vmatpush1.msra.mxu0 %v2434
        %2590 = vmatprep.subr.mxu0 0.0
        %2591 = vmatpush1.msra.mxu0 %v2431
        %2592 = vmatprep.subr.mxu0 0.0
        %2593 = vmatpush1.msra.mxu0 %v2428
        %2594 = vmatprep.subr.mxu0 0.0
        %2595 = vmatpush1.msra.mxu0 %v2425
        %2596 = vmatprep.subr.mxu0 0.0
        %2597 = vmatpush1.msra.mxu0 %v2422
        %2598 = vmatprep.subr.mxu0 0.0
        %2599 = vmatpush1.msra.mxu0 %v2419
        %2600 = vmatprep.subr.mxu0 0.0
        %2601 = vmatpush1.msra.mxu0 %v2416
        %2602 = vmatprep.subr.mxu0 0.0
        %2603 = vmatpush1.msra.mxu0 %v2413
        %2604 = vmatprep.subr.mxu0 0.0
        %2605 = vmatpush1.msra.mxu0 %v2410
        %2606 = vmatprep.subr.mxu0 0.0
        %2607 = vmatpush2.msra.mxu0 0.0
        %2608 = vmatprep.subr.mxu0 0.0
        %2609 = vmatpush2.msra.mxu0 0.0
        %2610 = vmatprep.subr.mxu0 0.0
        %2611 = vmatpush2.msra.mxu0 0.0
        %2612 = vmatprep.subr.mxu0 0.0
        %2613 = vmatpush2.msra.mxu0 0.0
        %2614 = vmatprep.subr.mxu0 0.0
        %2615 = vmatpush2.msra.mxu0 0.0
        %2616 = vmatprep.subr.mxu0 0.0
        %2617 = vmatpush2.msra.mxu0 0.0
        %2618 = vmatprep.subr.mxu0 0.0
        %2619 = vmatpush2.msra.mxu0 0.0
        %2620 = vmatprep.subr.mxu0 0.0
        %2621 = vmatpush2.msra.mxu0 0.0
        %2622 = vmatprep.subr.mxu0 0.0
        %2623 = vmatpush2.msra.mxu0 %v2479
        %2624 = vmatprep.subr.mxu0 0.0
        %2625 = vmatpush2.msra.mxu0 %v2476
        %2626 = vmatprep.subr.mxu0 0.0
        %2627 = vmatpush2.msra.mxu0 %v2473
        %2628 = vmatprep.subr.mxu0 0.0
        %2629 = vmatpush2.msra.mxu0 %v2470
        %2630 = vmatprep.subr.mxu0 0.0
        %2631 = vmatpush2.msra.mxu0 %v2467
        %2632 = vmatprep.subr.mxu0 0.0
        %2633 = vmatpush2.msra.mxu0 %v2464
        %2634 = vmatprep.subr.mxu0 0.0
        %2635 = vmatpush2.msra.mxu0 %v2461
        %2636 = vmatprep.subr.mxu0 0.0
        %2637 = vmatpush2.msra.mxu0 %v2458
        %2638 = vmatprep.mubr.f32.mxu0 %v2493
        %2639 = vmatmul.mubr.f32.gmra.mxu0 %v2487
        %v2640 = vpop.f32.mrf.mxu0
        %v2641 = vadd.f32 0.0, %v2640
        %v2642 = vpop.f32.mrf.mxu0
        %2643 = vmatprep.mubr.f32.mxu0 %v2495
        %2644 = vmatmul.mubr.f32.gmra.mxu0 %v2486
        %v2645 = vpop.f32.mrf.mxu0
        %v2646 = vadd.f32 0.0, %v2645
        %v2647 = vpop.f32.mrf.mxu0
        %2648 = vdwg.mxu0
        %v2650 = vsel %vm1595, %v2328, 0
        %v2653 = vsel %vm1595, %v2330, 0
        %2655 = vmatprep.subr.mxu0 %v2377
        %2656 = vmatpush1.msra.mxu0 %v2376
        %2657 = vmatprep.subr.mxu0 %v2374
        %2658 = vmatpush1.msra.mxu0 %v2373
        %2659 = vmatprep.subr.mxu0 %v2371
        %2660 = vmatpush1.msra.mxu0 %v2370
        %2661 = vmatprep.subr.mxu0 %v2368
        %2662 = vmatpush1.msra.mxu0 %v2367
        %2663 = vmatprep.subr.mxu0 %v2365
        %2664 = vmatpush1.msra.mxu0 %v2364
        %2665 = vmatprep.subr.mxu0 %v2362
        %2666 = vmatpush1.msra.mxu0 %v2361
        %2667 = vmatprep.subr.mxu0 %v2359
        %2668 = vmatpush1.msra.mxu0 %v2358
        %2669 = vmatprep.subr.mxu0 %v2356
        %2670 = vmatpush1.msra.mxu0 %v2355
        %2671 = vmatprep.subr.mxu0 %v2353
        %2672 = vmatpush1.msra.mxu0 %v2352
        %2673 = vmatprep.subr.mxu0 %v2350
        %2674 = vmatpush1.msra.mxu0 %v2349
        %2675 = vmatprep.subr.mxu0 %v2347
        %2676 = vmatpush1.msra.mxu0 %v2346
        %2677 = vmatprep.subr.mxu0 %v2344
        %2678 = vmatpush1.msra.mxu0 %v2343
        %2679 = vmatprep.subr.mxu0 %v2341
        %2680 = vmatpush1.msra.mxu0 %v2340
        %2681 = vmatprep.subr.mxu0 %v2338
        %2682 = vmatpush1.msra.mxu0 %v2337
        %2683 = vmatprep.subr.mxu0 %v2335
        %2684 = vmatpush1.msra.mxu0 %v2334
        %2685 = vmatprep.subr.mxu0 %v2332
        %2686 = vmatpush1.msra.mxu0 %v2331
        %2687 = vmatprep.subr.mxu0 0.0
        %2688 = vmatpush2.msra.mxu0 0.0
        %2689 = vmatprep.subr.mxu0 0.0
        %2690 = vmatpush2.msra.mxu0 0.0
        %2691 = vmatprep.subr.mxu0 0.0
        %2692 = vmatpush2.msra.mxu0 0.0
        %2693 = vmatprep.subr.mxu0 0.0
        %2694 = vmatpush2.msra.mxu0 0.0
        %2695 = vmatprep.subr.mxu0 0.0
        %2696 = vmatpush2.msra.mxu0 0.0
        %2697 = vmatprep.subr.mxu0 0.0
        %2698 = vmatpush2.msra.mxu0 0.0
        %2699 = vmatprep.subr.mxu0 0.0
        %2700 = vmatpush2.msra.mxu0 0.0
        %2701 = vmatprep.subr.mxu0 0.0
        %2702 = vmatpush2.msra.mxu0 0.0
        %2703 = vmatprep.subr.mxu0 %v2401
        %2704 = vmatpush2.msra.mxu0 %v2400
        %2705 = vmatprep.subr.mxu0 %v2398
        %2706 = vmatpush2.msra.mxu0 %v2397
        %2707 = vmatprep.subr.mxu0 %v2395
        %2708 = vmatpush2.msra.mxu0 %v2394
        %2709 = vmatprep.subr.mxu0 %v2392
        %2710 = vmatpush2.msra.mxu0 %v2391
        %2711 = vmatprep.subr.mxu0 %v2389
        %2712 = vmatpush2.msra.mxu0 %v2388
        %2713 = vmatprep.subr.mxu0 %v2386
        %2714 = vmatpush2.msra.mxu0 %v2385
        %2715 = vmatprep.subr.mxu0 %v2383
        %2716 = vmatpush2.msra.mxu0 %v2382
        %2717 = vmatprep.subr.mxu0 %v2380
        %2718 = vmatpush2.msra.mxu0 %v2379
        %2719 = vmatprep.mubr.f32.mxu0 %v2650
        %2720 = vmatmul.mubr.f32.gmra.mxu0 %v2327
        %v2721 = vpop.f32.mrf.mxu0
        %v2722 = vadd.f32 %v2564, %v2721
        %v2723 = vpop.f32.mrf.mxu0
        %v2724 = vadd.f32 %v2566, %v2723
        %2725 = vmatprep.mubr.f32.mxu0 %v2653
        %2726 = vmatmul.mubr.f32.gmra.mxu0 %v2329
        %v2727 = vpop.f32.mrf.mxu0
        %v2728 = vadd.f32 %v2570, %v2727
        %v2729 = vpop.f32.mrf.mxu0
        %v2730 = vadd.f32 %v2572, %v2729
        %2731 = vdwg.mxu0
        %2732 = vmatprep.subr.mxu0 0.0
        %2733 = vmatpush1.msra.mxu0 %v2378
        %2734 = vmatprep.subr.mxu0 0.0
        %2735 = vmatpush1.msra.mxu0 %v2375
        %2736 = vmatprep.subr.mxu0 0.0
        %2737 = vmatpush1.msra.mxu0 %v2372
        %2738 = vmatprep.subr.mxu0 0.0
        %2739 = vmatpush1.msra.mxu0 %v2369
        %2740 = vmatprep.subr.mxu0 0.0
        %2741 = vmatpush1.msra.mxu0 %v2366
        %2742 = vmatprep.subr.mxu0 0.0
        %2743 = vmatpush1.msra.mxu0 %v2363
        %2744 = vmatprep.subr.mxu0 0.0
        %2745 = vmatpush1.msra.mxu0 %v2360
        %2746 = vmatprep.subr.mxu0 0.0
        %2747 = vmatpush1.msra.mxu0 %v2357
        %2748 = vmatprep.subr.mxu0 0.0
        %2749 = vmatpush1.msra.mxu0 %v2354
        %2750 = vmatprep.subr.mxu0 0.0
        %2751 = vmatpush1.msra.mxu0 %v2351
        %2752 = vmatprep.subr.mxu0 0.0
        %2753 = vmatpush1.msra.mxu0 %v2348
        %2754 = vmatprep.subr.mxu0 0.0
        %2755 = vmatpush1.msra.mxu0 %v2345
        %2756 = vmatprep.subr.mxu0 0.0
        %2757 = vmatpush1.msra.mxu0 %v2342
        %2758 = vmatprep.subr.mxu0 0.0
        %2759 = vmatpush1.msra.mxu0 %v2339
        %2760 = vmatprep.subr.mxu0 0.0
        %2761 = vmatpush1.msra.mxu0 %v2336
        %2762 = vmatprep.subr.mxu0 0.0
        %2763 = vmatpush1.msra.mxu0 %v2333
        %2764 = vmatprep.subr.mxu0 0.0
        %2765 = vmatpush2.msra.mxu0 0.0
        %2766 = vmatprep.subr.mxu0 0.0
        %2767 = vmatpush2.msra.mxu0 0.0
        %2768 = vmatprep.subr.mxu0 0.0
        %2769 = vmatpush2.msra.mxu0 0.0
        %2770 = vmatprep.subr.mxu0 0.0
        %2771 = vmatpush2.msra.mxu0 0.0
        %2772 = vmatprep.subr.mxu0 0.0
        %2773 = vmatpush2.msra.mxu0 0.0
        %2774 = vmatprep.subr.mxu0 0.0
        %2775 = vmatpush2.msra.mxu0 0.0
        %2776 = vmatprep.subr.mxu0 0.0
        %2777 = vmatpush2.msra.mxu0 0.0
        %2778 = vmatprep.subr.mxu0 0.0
        %2779 = vmatpush2.msra.mxu0 0.0
        %2780 = vmatprep.subr.mxu0 0.0
        %2781 = vmatpush2.msra.mxu0 %v2402
        %2782 = vmatprep.subr.mxu0 0.0
        %2783 = vmatpush2.msra.mxu0 %v2399
        %2784 = vmatprep.subr.mxu0 0.0
        %2785 = vmatpush2.msra.mxu0 %v2396
        %2786 = vmatprep.subr.mxu0 0.0
        %2787 = vmatpush2.msra.mxu0 %v2393
        %2788 = vmatprep.subr.mxu0 0.0
        %2789 = vmatpush2.msra.mxu0 %v2390
        %2790 = vmatprep.subr.mxu0 0.0
        %2791 = vmatpush2.msra.mxu0 %v2387
        %2792 = vmatprep.subr.mxu0 0.0
        %2793 = vmatpush2.msra.mxu0 %v2384
        %2794 = vmatprep.subr.mxu0 0.0
        %2795 = vmatpush2.msra.mxu0 %v2381
        %2796 = vmatprep.mubr.f32.mxu0 %v2650
        %2797 = vmatmul.mubr.f32.gmra.mxu0 %v2327
        %v2798 = vpop.f32.mrf.mxu0
        %v2799 = vadd.f32 %v2641, %v2798
        %v2800 = vpop.f32.mrf.mxu0
        %2801 = vmatprep.mubr.f32.mxu0 %v2653
        %2802 = vmatmul.mubr.f32.gmra.mxu0 %v2329
        %v2803 = vpop.f32.mrf.mxu0
        %v2804 = vadd.f32 %v2646, %v2803
        %v2805 = vpop.f32.mrf.mxu0
        %2806 = vdwg.mxu0
        %v2807 = vld [vmem:[#allocation2] sm:$0xfc]
        %v2808 = vld [vmem:[#allocation2 + $0x8] sm:$0xfc]
        %v2809 = vld [vmem:[#allocation2 + $0x10] sm:$0x3f]
        %v2810 = vld [vmem:[#allocation2 + $0x18] sm:$0x3f]
        %s2811 = scalar_lea.vmem %s5, 1152
        %v2812 = vld [vmem:[%s2811] sm:$0xff]
        %v2813 = vld [vmem:[%s2811 + $0x8] sm:$0xff]
        %v2814 = vld [vmem:[%s2811 + $0x10] sm:$0xff]
        %v2815 = vld [vmem:[%s2811 + $0x18] sm:$0xff]
        %v2816 = vld [vmem:[%s2811 + $0x20] sm:$0xff]
        %v2817 = vld [vmem:[%s2811 + $0x28] sm:$0xff]
        %v2818 = vld [vmem:[%s2811 + $0x30] sm:$0xff]
        %v2819 = vld [vmem:[%s2811 + $0x38] sm:$0xff]
        %v2820 = vld [vmem:[%s2811 + $0x40] sm:$0xff]
        %v2821 = vld [vmem:[%s2811 + $0x48] sm:$0xff]
        %v2822 = vld [vmem:[%s2811 + $0x50] sm:$0xff]
        %v2823 = vld [vmem:[%s2811 + $0x58] sm:$0xff]
        %v2824 = vld [vmem:[%s2811 + $0x60] sm:$0xff]
        %v2825 = vld [vmem:[%s2811 + $0x68] sm:$0xff]
        %v2826 = vld [vmem:[%s2811 + $0x70] sm:$0xff]
        %v2827 = vld [vmem:[%s2811 + $0x78] sm:$0xff]
        %v2828 = vld [vmem:[%s2811 + $0x80] sm:$0xff]
        %v2829 = vld [vmem:[%s2811 + $0x88] sm:$0xff]
        %v2830 = vld [vmem:[%s2811 + $0x90] sm:$0xff]
        %v2831 = vld [vmem:[%s2811 + $0x98] sm:$0xff]
        %v2832 = vld [vmem:[%s2811 + $0xa0] sm:$0xff]
        %v2833 = vld [vmem:[%s2811 + $0xa8] sm:$0xff]
        %v2834 = vld [vmem:[%s2811 + $0xb0] sm:$0xff]
        %v2835 = vld [vmem:[%s2811 + $0xb8] sm:$0xff]
        %v2836 = vld [vmem:[%s2811 + $0xc0] sm:$0xff]
        %v2837 = vld [vmem:[%s2811 + $0xc8] sm:$0xff]
        %v2838 = vld [vmem:[%s2811 + $0xd0] sm:$0xff]
        %v2839 = vld [vmem:[%s2811 + $0xd8] sm:$0xff]
        %v2840 = vld [vmem:[%s2811 + $0xe0] sm:$0xff]
        %v2841 = vld [vmem:[%s2811 + $0xe8] sm:$0xff]
        %v2842 = vld [vmem:[%s2811 + $0xf0] sm:$0xff]
        %v2843 = vld [vmem:[%s2811 + $0xf8] sm:$0xff]
        %v2844 = vld [vmem:[%s2811 + $0x100] sm:$0xff]
        %v2845 = vld [vmem:[%s2811 + $0x108] sm:$0xff]
        %v2846 = vld [vmem:[%s2811 + $0x110] sm:$0xff]
        %v2847 = vld [vmem:[%s2811 + $0x118] sm:$0xff]
        %v2848 = vld [vmem:[%s2811 + $0x120] sm:$0xff]
        %v2849 = vld [vmem:[%s2811 + $0x128] sm:$0xff]
        %v2850 = vld [vmem:[%s2811 + $0x130] sm:$0xff]
        %v2851 = vld [vmem:[%s2811 + $0x138] sm:$0xff]
        %v2852 = vld [vmem:[%s2811 + $0x140] sm:$0xff]
        %v2853 = vld [vmem:[%s2811 + $0x148] sm:$0xff]
        %v2854 = vld [vmem:[%s2811 + $0x150] sm:$0xff]
        %v2855 = vld [vmem:[%s2811 + $0x158] sm:$0xff]
        %v2856 = vld [vmem:[%s2811 + $0x160] sm:$0xff]
        %v2857 = vld [vmem:[%s2811 + $0x168] sm:$0xff]
        %v2858 = vld [vmem:[%s2811 + $0x170] sm:$0xff]
        %v2859 = vld [vmem:[%s2811 + $0x178] sm:$0xff]
        %v2860 = vld [vmem:[%s2811 + $0x180] sm:$0xff]
        %v2861 = vld [vmem:[%s2811 + $0x188] sm:$0xff]
        %v2862 = vld [vmem:[%s2811 + $0x190] sm:$0xff]
        %v2863 = vld [vmem:[%s2811 + $0x198] sm:$0xff]
        %v2864 = vld [vmem:[%s2811 + $0x1a0] sm:$0xff]
        %v2865 = vld [vmem:[%s2811 + $0x1a8] sm:$0xff]
        %v2866 = vld [vmem:[%s2811 + $0x1b0] sm:$0xff]
        %v2867 = vld [vmem:[%s2811 + $0x1b8] sm:$0xff]
        %v2868 = vld [vmem:[%s2811 + $0x1c0] sm:$0xff]
        %v2869 = vld [vmem:[%s2811 + $0x1c8] sm:$0xff]
        %v2870 = vld [vmem:[%s2811 + $0x1d0] sm:$0xff]
        %v2871 = vld [vmem:[%s2811 + $0x1d8] sm:$0xff]
        %v2872 = vld [vmem:[%s2811 + $0x1e0] sm:$0xff]
        %v2873 = vld [vmem:[%s2811 + $0x1e8] sm:$0xff]
        %v2874 = vld [vmem:[%s2811 + $0x1f0] sm:$0xff]
        %v2875 = vld [vmem:[%s2811 + $0x1f8] sm:$0xff]
        %v2876 = vld [vmem:[%s2811 + $0x200] sm:$0xff]
        %v2877 = vld [vmem:[%s2811 + $0x208] sm:$0xff]
        %v2878 = vld [vmem:[%s2811 + $0x210] sm:$0xff]
        %v2879 = vld [vmem:[%s2811 + $0x218] sm:$0xff]
        %v2880 = vld [vmem:[%s2811 + $0x220] sm:$0xff]
        %v2881 = vld [vmem:[%s2811 + $0x228] sm:$0xff]
        %v2882 = vld [vmem:[%s2811 + $0x230] sm:$0xff]
        %v2883 = vld [vmem:[%s2811 + $0x238] sm:$0xff]
        %vm2888 = vcmask 1045504
        %v2889 = vrot.slane %v2807, 2
        %v2890 = vrot.slane %v2809, 2
        %v2891 = vsel %vm2888, %v2889, %v2890
        %v2892 = vrot.slane %v2808, 2
        %v2893 = vrot.slane %v2810, 2
        %v2894 = vsel %vm2888, %v2892, %v2893
        %v2897 = vsel %vm1595, %v2894, 0
        %v2899 = vsel %vm1595, %v2893, 0
        %2901 = vmatprep.subr.mxu0 %v2858
        %2902 = vmatpush1.msra.mxu0 %v2857
        %2903 = vmatprep.subr.mxu0 %v2855
        %2904 = vmatpush1.msra.mxu0 %v2854
        %2905 = vmatprep.subr.mxu0 %v2852
        %2906 = vmatpush1.msra.mxu0 %v2851
        %2907 = vmatprep.subr.mxu0 %v2849
        %2908 = vmatpush1.msra.mxu0 %v2848
        %2909 = vmatprep.subr.mxu0 %v2846
        %2910 = vmatpush1.msra.mxu0 %v2845
        %2911 = vmatprep.subr.mxu0 %v2843
        %2912 = vmatpush1.msra.mxu0 %v2842
        %2913 = vmatprep.subr.mxu0 %v2840
        %2914 = vmatpush1.msra.mxu0 %v2839
        %2915 = vmatprep.subr.mxu0 %v2837
        %2916 = vmatpush1.msra.mxu0 %v2836
        %2917 = vmatprep.subr.mxu0 %v2834
        %2918 = vmatpush1.msra.mxu0 %v2833
        %2919 = vmatprep.subr.mxu0 %v2831
        %2920 = vmatpush1.msra.mxu0 %v2830
        %2921 = vmatprep.subr.mxu0 %v2828
        %2922 = vmatpush1.msra.mxu0 %v2827
        %2923 = vmatprep.subr.mxu0 %v2825
        %2924 = vmatpush1.msra.mxu0 %v2824
        %2925 = vmatprep.subr.mxu0 %v2822
        %2926 = vmatpush1.msra.mxu0 %v2821
        %2927 = vmatprep.subr.mxu0 %v2819
        %2928 = vmatpush1.msra.mxu0 %v2818
        %2929 = vmatprep.subr.mxu0 %v2816
        %2930 = vmatpush1.msra.mxu0 %v2815
        %2931 = vmatprep.subr.mxu0 %v2813
        %2932 = vmatpush1.msra.mxu0 %v2812
        %2933 = vmatprep.subr.mxu0 0.0
        %2934 = vmatpush2.msra.mxu0 0.0
        %2935 = vmatprep.subr.mxu0 0.0
        %2936 = vmatpush2.msra.mxu0 0.0
        %2937 = vmatprep.subr.mxu0 0.0
        %2938 = vmatpush2.msra.mxu0 0.0
        %2939 = vmatprep.subr.mxu0 0.0
        %2940 = vmatpush2.msra.mxu0 0.0
        %2941 = vmatprep.subr.mxu0 0.0
        %2942 = vmatpush2.msra.mxu0 0.0
        %2943 = vmatprep.subr.mxu0 0.0
        %2944 = vmatpush2.msra.mxu0 0.0
        %2945 = vmatprep.subr.mxu0 0.0
        %2946 = vmatpush2.msra.mxu0 0.0
        %2947 = vmatprep.subr.mxu0 0.0
        %2948 = vmatpush2.msra.mxu0 0.0
        %2949 = vmatprep.subr.mxu0 %v2882
        %2950 = vmatpush2.msra.mxu0 %v2881
        %2951 = vmatprep.subr.mxu0 %v2879
        %2952 = vmatpush2.msra.mxu0 %v2878
        %2953 = vmatprep.subr.mxu0 %v2876
        %2954 = vmatpush2.msra.mxu0 %v2875
        %2955 = vmatprep.subr.mxu0 %v2873
        %2956 = vmatpush2.msra.mxu0 %v2872
        %2957 = vmatprep.subr.mxu0 %v2870
        %2958 = vmatpush2.msra.mxu0 %v2869
        %2959 = vmatprep.subr.mxu0 %v2867
        %2960 = vmatpush2.msra.mxu0 %v2866
        %2961 = vmatprep.subr.mxu0 %v2864
        %2962 = vmatpush2.msra.mxu0 %v2863
        %2963 = vmatprep.subr.mxu0 %v2861
        %2964 = vmatpush2.msra.mxu0 %v2860
        %2965 = vmatprep.mubr.f32.mxu0 %v2897
        %2966 = vmatmul.mubr.f32.gmra.mxu0 %v2891
        %v2967 = vpop.f32.mrf.mxu0
        %v2968 = vadd.f32 0.0, %v2967
        %v2969 = vpop.f32.mrf.mxu0
        %v2970 = vadd.f32 0.0, %v2969
        %2971 = vmatprep.mubr.f32.mxu0 %v2899
        %2972 = vmatmul.mubr.f32.gmra.mxu0 %v2890
        %v2973 = vpop.f32.mrf.mxu0
        %v2974 = vadd.f32 0.0, %v2973
        %v2975 = vpop.f32.mrf.mxu0
        %v2976 = vadd.f32 0.0, %v2975
        %2977 = vdwg.mxu0
        %2978 = vmatprep.subr.mxu0 0.0
        %2979 = vmatpush1.msra.mxu0 %v2859
        %2980 = vmatprep.subr.mxu0 0.0
        %2981 = vmatpush1.msra.mxu0 %v2856
        %2982 = vmatprep.subr.mxu0 0.0
        %2983 = vmatpush1.msra.mxu0 %v2853
        %2984 = vmatprep.subr.mxu0 0.0
        %2985 = vmatpush1.msra.mxu0 %v2850
        %2986 = vmatprep.subr.mxu0 0.0
        %2987 = vmatpush1.msra.mxu0 %v2847
        %2988 = vmatprep.subr.mxu0 0.0
        %2989 = vmatpush1.msra.mxu0 %v2844
        %2990 = vmatprep.subr.mxu0 0.0
        %2991 = vmatpush1.msra.mxu0 %v2841
        %2992 = vmatprep.subr.mxu0 0.0
        %2993 = vmatpush1.msra.mxu0 %v2838
        %2994 = vmatprep.subr.mxu0 0.0
        %2995 = vmatpush1.msra.mxu0 %v2835
        %2996 = vmatprep.subr.mxu0 0.0
        %2997 = vmatpush1.msra.mxu0 %v2832
        %2998 = vmatprep.subr.mxu0 0.0
        %2999 = vmatpush1.msra.mxu0 %v2829
        %3000 = vmatprep.subr.mxu0 0.0
        %3001 = vmatpush1.msra.mxu0 %v2826
        %3002 = vmatprep.subr.mxu0 0.0
        %3003 = vmatpush1.msra.mxu0 %v2823
        %3004 = vmatprep.subr.mxu0 0.0
        %3005 = vmatpush1.msra.mxu0 %v2820
        %3006 = vmatprep.subr.mxu0 0.0
        %3007 = vmatpush1.msra.mxu0 %v2817
        %3008 = vmatprep.subr.mxu0 0.0
        %3009 = vmatpush1.msra.mxu0 %v2814
        %3010 = vmatprep.subr.mxu0 0.0
        %3011 = vmatpush2.msra.mxu0 0.0
        %3012 = vmatprep.subr.mxu0 0.0
        %3013 = vmatpush2.msra.mxu0 0.0
        %3014 = vmatprep.subr.mxu0 0.0
        %3015 = vmatpush2.msra.mxu0 0.0
        %3016 = vmatprep.subr.mxu0 0.0
        %3017 = vmatpush2.msra.mxu0 0.0
        %3018 = vmatprep.subr.mxu0 0.0
        %3019 = vmatpush2.msra.mxu0 0.0
        %3020 = vmatprep.subr.mxu0 0.0
        %3021 = vmatpush2.msra.mxu0 0.0
        %3022 = vmatprep.subr.mxu0 0.0
        %3023 = vmatpush2.msra.mxu0 0.0
        %3024 = vmatprep.subr.mxu0 0.0
        %3025 = vmatpush2.msra.mxu0 0.0
        %3026 = vmatprep.subr.mxu0 0.0
        %3027 = vmatpush2.msra.mxu0 %v2883
        %3028 = vmatprep.subr.mxu0 0.0
        %3029 = vmatpush2.msra.mxu0 %v2880
        %3030 = vmatprep.subr.mxu0 0.0
        %3031 = vmatpush2.msra.mxu0 %v2877
        %3032 = vmatprep.subr.mxu0 0.0
        %3033 = vmatpush2.msra.mxu0 %v2874
        %3034 = vmatprep.subr.mxu0 0.0
        %3035 = vmatpush2.msra.mxu0 %v2871
        %3036 = vmatprep.subr.mxu0 0.0
        %3037 = vmatpush2.msra.mxu0 %v2868
        %3038 = vmatprep.subr.mxu0 0.0
        %3039 = vmatpush2.msra.mxu0 %v2865
        %3040 = vmatprep.subr.mxu0 0.0
        %3041 = vmatpush2.msra.mxu0 %v2862
        %3042 = vmatprep.mubr.f32.mxu0 %v2897
        %3043 = vmatmul.mubr.f32.gmra.mxu0 %v2891
        %v3044 = vpop.f32.mrf.mxu0
        %v3045 = vadd.f32 0.0, %v3044
        %v3046 = vpop.f32.mrf.mxu0
        %3047 = vmatprep.mubr.f32.mxu0 %v2899
        %3048 = vmatmul.mubr.f32.gmra.mxu0 %v2890
        %v3049 = vpop.f32.mrf.mxu0
        %v3050 = vadd.f32 0.0, %v3049
        %v3051 = vpop.f32.mrf.mxu0
        %3052 = vdwg.mxu0
        %v3053 = vadd.f32 %v2722, %v2968
        %v3054 = vadd.f32 %v2724, %v2970
        %v3055 = vadd.f32 %v2799, %v3045
        %v3056 = vadd.f32 %v2728, %v2974
        %v3057 = vadd.f32 %v2730, %v2976
        %v3058 = vadd.f32 %v2804, %v3050
        %v3059 = vld [vmem:[#allocation2] sm:$0xf8]
        %v3060 = vld [vmem:[#allocation2 + $0x8] sm:$0xf8]
        %v3061 = vld [vmem:[#allocation2 + $0x10] sm:$0x7f]
        %v3062 = vld [vmem:[#allocation2 + $0x18] sm:$0x7f]
        %s3063 = scalar_lea.vmem %s5, 1728
        %v3064 = vld [vmem:[%s3063] sm:$0xff]
        %v3065 = vld [vmem:[%s3063 + $0x8] sm:$0xff]
        %v3066 = vld [vmem:[%s3063 + $0x10] sm:$0xff]
        %v3067 = vld [vmem:[%s3063 + $0x18] sm:$0xff]
        %v3068 = vld [vmem:[%s3063 + $0x20] sm:$0xff]
        %v3069 = vld [vmem:[%s3063 + $0x28] sm:$0xff]
        %v3070 = vld [vmem:[%s3063 + $0x30] sm:$0xff]
        %v3071 = vld [vmem:[%s3063 + $0x38] sm:$0xff]
        %v3072 = vld [vmem:[%s3063 + $0x40] sm:$0xff]
        %v3073 = vld [vmem:[%s3063 + $0x48] sm:$0xff]
        %v3074 = vld [vmem:[%s3063 + $0x50] sm:$0xff]
        %v3075 = vld [vmem:[%s3063 + $0x58] sm:$0xff]
        %v3076 = vld [vmem:[%s3063 + $0x60] sm:$0xff]
        %v3077 = vld [vmem:[%s3063 + $0x68] sm:$0xff]
        %v3078 = vld [vmem:[%s3063 + $0x70] sm:$0xff]
        %v3079 = vld [vmem:[%s3063 + $0x78] sm:$0xff]
        %v3080 = vld [vmem:[%s3063 + $0x80] sm:$0xff]
        %v3081 = vld [vmem:[%s3063 + $0x88] sm:$0xff]
        %v3082 = vld [vmem:[%s3063 + $0x90] sm:$0xff]
        %v3083 = vld [vmem:[%s3063 + $0x98] sm:$0xff]
        %v3084 = vld [vmem:[%s3063 + $0xa0] sm:$0xff]
        %v3085 = vld [vmem:[%s3063 + $0xa8] sm:$0xff]
        %v3086 = vld [vmem:[%s3063 + $0xb0] sm:$0xff]
        %v3087 = vld [vmem:[%s3063 + $0xb8] sm:$0xff]
        %v3088 = vld [vmem:[%s3063 + $0xc0] sm:$0xff]
        %v3089 = vld [vmem:[%s3063 + $0xc8] sm:$0xff]
        %v3090 = vld [vmem:[%s3063 + $0xd0] sm:$0xff]
        %v3091 = vld [vmem:[%s3063 + $0xd8] sm:$0xff]
        %v3092 = vld [vmem:[%s3063 + $0xe0] sm:$0xff]
        %v3093 = vld [vmem:[%s3063 + $0xe8] sm:$0xff]
        %v3094 = vld [vmem:[%s3063 + $0xf0] sm:$0xff]
        %v3095 = vld [vmem:[%s3063 + $0xf8] sm:$0xff]
        %v3096 = vld [vmem:[%s3063 + $0x100] sm:$0xff]
        %v3097 = vld [vmem:[%s3063 + $0x108] sm:$0xff]
        %v3098 = vld [vmem:[%s3063 + $0x110] sm:$0xff]
        %v3099 = vld [vmem:[%s3063 + $0x118] sm:$0xff]
        %v3100 = vld [vmem:[%s3063 + $0x120] sm:$0xff]
        %v3101 = vld [vmem:[%s3063 + $0x128] sm:$0xff]
        %v3102 = vld [vmem:[%s3063 + $0x130] sm:$0xff]
        %v3103 = vld [vmem:[%s3063 + $0x138] sm:$0xff]
        %v3104 = vld [vmem:[%s3063 + $0x140] sm:$0xff]
        %v3105 = vld [vmem:[%s3063 + $0x148] sm:$0xff]
        %v3106 = vld [vmem:[%s3063 + $0x150] sm:$0xff]
        %v3107 = vld [vmem:[%s3063 + $0x158] sm:$0xff]
        %v3108 = vld [vmem:[%s3063 + $0x160] sm:$0xff]
        %v3109 = vld [vmem:[%s3063 + $0x168] sm:$0xff]
        %v3110 = vld [vmem:[%s3063 + $0x170] sm:$0xff]
        %v3111 = vld [vmem:[%s3063 + $0x178] sm:$0xff]
        %v3112 = vld [vmem:[%s3063 + $0x180] sm:$0xff]
        %v3113 = vld [vmem:[%s3063 + $0x188] sm:$0xff]
        %v3114 = vld [vmem:[%s3063 + $0x190] sm:$0xff]
        %v3115 = vld [vmem:[%s3063 + $0x198] sm:$0xff]
        %v3116 = vld [vmem:[%s3063 + $0x1a0] sm:$0xff]
        %v3117 = vld [vmem:[%s3063 + $0x1a8] sm:$0xff]
        %v3118 = vld [vmem:[%s3063 + $0x1b0] sm:$0xff]
        %v3119 = vld [vmem:[%s3063 + $0x1b8] sm:$0xff]
        %v3120 = vld [vmem:[%s3063 + $0x1c0] sm:$0xff]
        %v3121 = vld [vmem:[%s3063 + $0x1c8] sm:$0xff]
        %v3122 = vld [vmem:[%s3063 + $0x1d0] sm:$0xff]
        %v3123 = vld [vmem:[%s3063 + $0x1d8] sm:$0xff]
        %v3124 = vld [vmem:[%s3063 + $0x1e0] sm:$0xff]
        %v3125 = vld [vmem:[%s3063 + $0x1e8] sm:$0xff]
        %v3126 = vld [vmem:[%s3063 + $0x1f0] sm:$0xff]
        %v3127 = vld [vmem:[%s3063 + $0x1f8] sm:$0xff]
        %v3128 = vld [vmem:[%s3063 + $0x200] sm:$0xff]
        %v3129 = vld [vmem:[%s3063 + $0x208] sm:$0xff]
        %v3130 = vld [vmem:[%s3063 + $0x210] sm:$0xff]
        %v3131 = vld [vmem:[%s3063 + $0x218] sm:$0xff]
        %v3132 = vld [vmem:[%s3063 + $0x220] sm:$0xff]
        %v3133 = vld [vmem:[%s3063 + $0x228] sm:$0xff]
        %v3134 = vld [vmem:[%s3063 + $0x230] sm:$0xff]
        %v3135 = vld [vmem:[%s3063 + $0x238] sm:$0xff]
        %vm3140 = vcmask 1044480
        %v3141 = vrot.slane %v3059, 3
        %v3142 = vrot.slane %v3061, 3
        %v3143 = vsel %vm3140, %v3141, %v3142
        %v3144 = vrot.slane %v3060, 3
        %v3145 = vrot.slane %v3062, 3
        %v3146 = vsel %vm3140, %v3144, %v3145
        %v3149 = vsel %vm1595, %v3146, 0
        %v3151 = vsel %vm1595, %v3145, 0
        %3153 = vmatprep.subr.mxu0 %v3110
        %3154 = vmatpush1.msra.mxu0 %v3109
        %3155 = vmatprep.subr.mxu0 %v3107
        %3156 = vmatpush1.msra.mxu0 %v3106
        %3157 = vmatprep.subr.mxu0 %v3104
        %3158 = vmatpush1.msra.mxu0 %v3103
        %3159 = vmatprep.subr.mxu0 %v3101
        %3160 = vmatpush1.msra.mxu0 %v3100
        %3161 = vmatprep.subr.mxu0 %v3098
        %3162 = vmatpush1.msra.mxu0 %v3097
        %3163 = vmatprep.subr.mxu0 %v3095
        %3164 = vmatpush1.msra.mxu0 %v3094
        %3165 = vmatprep.subr.mxu0 %v3092
        %3166 = vmatpush1.msra.mxu0 %v3091
        %3167 = vmatprep.subr.mxu0 %v3089
        %3168 = vmatpush1.msra.mxu0 %v3088
        %3169 = vmatprep.subr.mxu0 %v3086
        %3170 = vmatpush1.msra.mxu0 %v3085
        %3171 = vmatprep.subr.mxu0 %v3083
        %3172 = vmatpush1.msra.mxu0 %v3082
        %3173 = vmatprep.subr.mxu0 %v3080
        %3174 = vmatpush1.msra.mxu0 %v3079
        %3175 = vmatprep.subr.mxu0 %v3077
        %3176 = vmatpush1.msra.mxu0 %v3076
        %3177 = vmatprep.subr.mxu0 %v3074
        %3178 = vmatpush1.msra.mxu0 %v3073
        %3179 = vmatprep.subr.mxu0 %v3071
        %3180 = vmatpush1.msra.mxu0 %v3070
        %3181 = vmatprep.subr.mxu0 %v3068
        %3182 = vmatpush1.msra.mxu0 %v3067
        %3183 = vmatprep.subr.mxu0 %v3065
        %3184 = vmatpush1.msra.mxu0 %v3064
        %3185 = vmatprep.subr.mxu0 0.0
        %3186 = vmatpush2.msra.mxu0 0.0
        %3187 = vmatprep.subr.mxu0 0.0
        %3188 = vmatpush2.msra.mxu0 0.0
        %3189 = vmatprep.subr.mxu0 0.0
        %3190 = vmatpush2.msra.mxu0 0.0
        %3191 = vmatprep.subr.mxu0 0.0
        %3192 = vmatpush2.msra.mxu0 0.0
        %3193 = vmatprep.subr.mxu0 0.0
        %3194 = vmatpush2.msra.mxu0 0.0
        %3195 = vmatprep.subr.mxu0 0.0
        %3196 = vmatpush2.msra.mxu0 0.0
        %3197 = vmatprep.subr.mxu0 0.0
        %3198 = vmatpush2.msra.mxu0 0.0
        %3199 = vmatprep.subr.mxu0 0.0
        %3200 = vmatpush2.msra.mxu0 0.0
        %3201 = vmatprep.subr.mxu0 %v3134
        %3202 = vmatpush2.msra.mxu0 %v3133
        %3203 = vmatprep.subr.mxu0 %v3131
        %3204 = vmatpush2.msra.mxu0 %v3130
        %3205 = vmatprep.subr.mxu0 %v3128
        %3206 = vmatpush2.msra.mxu0 %v3127
        %3207 = vmatprep.subr.mxu0 %v3125
        %3208 = vmatpush2.msra.mxu0 %v3124
        %3209 = vmatprep.subr.mxu0 %v3122
        %3210 = vmatpush2.msra.mxu0 %v3121
        %3211 = vmatprep.subr.mxu0 %v3119
        %3212 = vmatpush2.msra.mxu0 %v3118
        %3213 = vmatprep.subr.mxu0 %v3116
        %3214 = vmatpush2.msra.mxu0 %v3115
        %3215 = vmatprep.subr.mxu0 %v3113
        %3216 = vmatpush2.msra.mxu0 %v3112
        %3217 = vmatprep.mubr.f32.mxu0 %v3149
        %3218 = vmatmul.mubr.f32.gmra.mxu0 %v3143
        %v3219 = vpop.f32.mrf.mxu0
        %v3220 = vadd.f32 0.0, %v3219
        %v3221 = vpop.f32.mrf.mxu0
        %v3222 = vadd.f32 0.0, %v3221
        %3223 = vmatprep.mubr.f32.mxu0 %v3151
        %3224 = vmatmul.mubr.f32.gmra.mxu0 %v3142
        %v3225 = vpop.f32.mrf.mxu0
        %v3226 = vadd.f32 0.0, %v3225
        %v3227 = vpop.f32.mrf.mxu0
        %v3228 = vadd.f32 0.0, %v3227
        %3229 = vdwg.mxu0
        %3230 = vmatprep.subr.mxu0 0.0
        %3231 = vmatpush1.msra.mxu0 %v3111
        %3232 = vmatprep.subr.mxu0 0.0
        %3233 = vmatpush1.msra.mxu0 %v3108
        %3234 = vmatprep.subr.mxu0 0.0
        %3235 = vmatpush1.msra.mxu0 %v3105
        %3236 = vmatprep.subr.mxu0 0.0
        %3237 = vmatpush1.msra.mxu0 %v3102
        %3238 = vmatprep.subr.mxu0 0.0
        %3239 = vmatpush1.msra.mxu0 %v3099
        %3240 = vmatprep.subr.mxu0 0.0
        %3241 = vmatpush1.msra.mxu0 %v3096
        %3242 = vmatprep.subr.mxu0 0.0
        %3243 = vmatpush1.msra.mxu0 %v3093
        %3244 = vmatprep.subr.mxu0 0.0
        %3245 = vmatpush1.msra.mxu0 %v3090
        %3246 = vmatprep.subr.mxu0 0.0
        %3247 = vmatpush1.msra.mxu0 %v3087
        %3248 = vmatprep.subr.mxu0 0.0
        %3249 = vmatpush1.msra.mxu0 %v3084
        %3250 = vmatprep.subr.mxu0 0.0
        %3251 = vmatpush1.msra.mxu0 %v3081
        %3252 = vmatprep.subr.mxu0 0.0
        %3253 = vmatpush1.msra.mxu0 %v3078
        %3254 = vmatprep.subr.mxu0 0.0
        %3255 = vmatpush1.msra.mxu0 %v3075
        %3256 = vmatprep.subr.mxu0 0.0
        %3257 = vmatpush1.msra.mxu0 %v3072
        %3258 = vmatprep.subr.mxu0 0.0
        %3259 = vmatpush1.msra.mxu0 %v3069
        %3260 = vmatprep.subr.mxu0 0.0
        %3261 = vmatpush1.msra.mxu0 %v3066
        %3262 = vmatprep.subr.mxu0 0.0
        %3263 = vmatpush2.msra.mxu0 0.0
        %3264 = vmatprep.subr.mxu0 0.0
        %3265 = vmatpush2.msra.mxu0 0.0
        %3266 = vmatprep.subr.mxu0 0.0
        %3267 = vmatpush2.msra.mxu0 0.0
        %3268 = vmatprep.subr.mxu0 0.0
        %3269 = vmatpush2.msra.mxu0 0.0
        %3270 = vmatprep.subr.mxu0 0.0
        %3271 = vmatpush2.msra.mxu0 0.0
        %3272 = vmatprep.subr.mxu0 0.0
        %3273 = vmatpush2.msra.mxu0 0.0
        %3274 = vmatprep.subr.mxu0 0.0
        %3275 = vmatpush2.msra.mxu0 0.0
        %3276 = vmatprep.subr.mxu0 0.0
        %3277 = vmatpush2.msra.mxu0 0.0
        %3278 = vmatprep.subr.mxu0 0.0
        %3279 = vmatpush2.msra.mxu0 %v3135
        %3280 = vmatprep.subr.mxu0 0.0
        %3281 = vmatpush2.msra.mxu0 %v3132
        %3282 = vmatprep.subr.mxu0 0.0
        %3283 = vmatpush2.msra.mxu0 %v3129
        %3284 = vmatprep.subr.mxu0 0.0
        %3285 = vmatpush2.msra.mxu0 %v3126
        %3286 = vmatprep.subr.mxu0 0.0
        %3287 = vmatpush2.msra.mxu0 %v3123
        %3288 = vmatprep.subr.mxu0 0.0
        %3289 = vmatpush2.msra.mxu0 %v3120
        %3290 = vmatprep.subr.mxu0 0.0
        %3291 = vmatpush2.msra.mxu0 %v3117
        %3292 = vmatprep.subr.mxu0 0.0
        %3293 = vmatpush2.msra.mxu0 %v3114
        %3294 = vmatprep.mubr.f32.mxu0 %v3149
        %3295 = vmatmul.mubr.f32.gmra.mxu0 %v3143
        %v3296 = vpop.f32.mrf.mxu0
        %v3297 = vadd.f32 0.0, %v3296
        %v3298 = vpop.f32.mrf.mxu0
        %3299 = vmatprep.mubr.f32.mxu0 %v3151
        %3300 = vmatmul.mubr.f32.gmra.mxu0 %v3142
        %v3301 = vpop.f32.mrf.mxu0
        %v3302 = vadd.f32 0.0, %v3301
        %v3303 = vpop.f32.mrf.mxu0
        %3304 = vdwg.mxu0
        %v3305 = vadd.f32 %v3053, %v3220
        %v3306 = vadd.f32 %v3054, %v3222
        %v3307 = vadd.f32 %v3055, %v3297
        %v3308 = vadd.f32 %v3056, %v3226
        %v3309 = vadd.f32 %v3057, %v3228
        %v3310 = vadd.f32 %v3058, %v3302
        %v3311 = vld [vmem:[#allocation2] sm:$0xf0]
        %v3312 = vld [vmem:[#allocation2 + $0x8] sm:$0xf0]
        %v3313 = vld [vmem:[#allocation2 + $0x10] sm:$0xff]
        %v3314 = vld [vmem:[#allocation2 + $0x18] sm:$0xff]
        %s3315 = scalar_lea.vmem %s5, 2304
        %v3316 = vld [vmem:[%s3315] sm:$0xff]
        %v3317 = vld [vmem:[%s3315 + $0x8] sm:$0xff]
        %v3318 = vld [vmem:[%s3315 + $0x10] sm:$0xff]
        %v3319 = vld [vmem:[%s3315 + $0x18] sm:$0xff]
        %v3320 = vld [vmem:[%s3315 + $0x20] sm:$0xff]
        %v3321 = vld [vmem:[%s3315 + $0x28] sm:$0xff]
        %v3322 = vld [vmem:[%s3315 + $0x30] sm:$0xff]
        %v3323 = vld [vmem:[%s3315 + $0x38] sm:$0xff]
        %v3324 = vld [vmem:[%s3315 + $0x40] sm:$0xff]
        %v3325 = vld [vmem:[%s3315 + $0x48] sm:$0xff]
        %v3326 = vld [vmem:[%s3315 + $0x50] sm:$0xff]
        %v3327 = vld [vmem:[%s3315 + $0x58] sm:$0xff]
        %v3328 = vld [vmem:[%s3315 + $0x60] sm:$0xff]
        %v3329 = vld [vmem:[%s3315 + $0x68] sm:$0xff]
        %v3330 = vld [vmem:[%s3315 + $0x70] sm:$0xff]
        %v3331 = vld [vmem:[%s3315 + $0x78] sm:$0xff]
        %v3332 = vld [vmem:[%s3315 + $0x80] sm:$0xff]
        %v3333 = vld [vmem:[%s3315 + $0x88] sm:$0xff]
        %v3334 = vld [vmem:[%s3315 + $0x90] sm:$0xff]
        %v3335 = vld [vmem:[%s3315 + $0x98] sm:$0xff]
        %v3336 = vld [vmem:[%s3315 + $0xa0] sm:$0xff]
        %v3337 = vld [vmem:[%s3315 + $0xa8] sm:$0xff]
        %v3338 = vld [vmem:[%s3315 + $0xb0] sm:$0xff]
        %v3339 = vld [vmem:[%s3315 + $0xb8] sm:$0xff]
        %v3340 = vld [vmem:[%s3315 + $0xc0] sm:$0xff]
        %v3341 = vld [vmem:[%s3315 + $0xc8] sm:$0xff]
        %v3342 = vld [vmem:[%s3315 + $0xd0] sm:$0xff]
        %v3343 = vld [vmem:[%s3315 + $0xd8] sm:$0xff]
        %v3344 = vld [vmem:[%s3315 + $0xe0] sm:$0xff]
        %v3345 = vld [vmem:[%s3315 + $0xe8] sm:$0xff]
        %v3346 = vld [vmem:[%s3315 + $0xf0] sm:$0xff]
        %v3347 = vld [vmem:[%s3315 + $0xf8] sm:$0xff]
        %v3348 = vld [vmem:[%s3315 + $0x100] sm:$0xff]
        %v3349 = vld [vmem:[%s3315 + $0x108] sm:$0xff]
        %v3350 = vld [vmem:[%s3315 + $0x110] sm:$0xff]
        %v3351 = vld [vmem:[%s3315 + $0x118] sm:$0xff]
        %v3352 = vld [vmem:[%s3315 + $0x120] sm:$0xff]
        %v3353 = vld [vmem:[%s3315 + $0x128] sm:$0xff]
        %v3354 = vld [vmem:[%s3315 + $0x130] sm:$0xff]
        %v3355 = vld [vmem:[%s3315 + $0x138] sm:$0xff]
        %v3356 = vld [vmem:[%s3315 + $0x140] sm:$0xff]
        %v3357 = vld [vmem:[%s3315 + $0x148] sm:$0xff]
        %v3358 = vld [vmem:[%s3315 + $0x150] sm:$0xff]
        %v3359 = vld [vmem:[%s3315 + $0x158] sm:$0xff]
        %v3360 = vld [vmem:[%s3315 + $0x160] sm:$0xff]
        %v3361 = vld [vmem:[%s3315 + $0x168] sm:$0xff]
        %v3362 = vld [vmem:[%s3315 + $0x170] sm:$0xff]
        %v3363 = vld [vmem:[%s3315 + $0x178] sm:$0xff]
        %v3364 = vld [vmem:[%s3315 + $0x180] sm:$0xff]
        %v3365 = vld [vmem:[%s3315 + $0x188] sm:$0xff]
        %v3366 = vld [vmem:[%s3315 + $0x190] sm:$0xff]
        %v3367 = vld [vmem:[%s3315 + $0x198] sm:$0xff]
        %v3368 = vld [vmem:[%s3315 + $0x1a0] sm:$0xff]
        %v3369 = vld [vmem:[%s3315 + $0x1a8] sm:$0xff]
        %v3370 = vld [vmem:[%s3315 + $0x1b0] sm:$0xff]
        %v3371 = vld [vmem:[%s3315 + $0x1b8] sm:$0xff]
        %v3372 = vld [vmem:[%s3315 + $0x1c0] sm:$0xff]
        %v3373 = vld [vmem:[%s3315 + $0x1c8] sm:$0xff]
        %v3374 = vld [vmem:[%s3315 + $0x1d0] sm:$0xff]
        %v3375 = vld [vmem:[%s3315 + $0x1d8] sm:$0xff]
        %v3376 = vld [vmem:[%s3315 + $0x1e0] sm:$0xff]
        %v3377 = vld [vmem:[%s3315 + $0x1e8] sm:$0xff]
        %v3378 = vld [vmem:[%s3315 + $0x1f0] sm:$0xff]
        %v3379 = vld [vmem:[%s3315 + $0x1f8] sm:$0xff]
        %v3380 = vld [vmem:[%s3315 + $0x200] sm:$0xff]
        %v3381 = vld [vmem:[%s3315 + $0x208] sm:$0xff]
        %v3382 = vld [vmem:[%s3315 + $0x210] sm:$0xff]
        %v3383 = vld [vmem:[%s3315 + $0x218] sm:$0xff]
        %v3384 = vld [vmem:[%s3315 + $0x220] sm:$0xff]
        %v3385 = vld [vmem:[%s3315 + $0x228] sm:$0xff]
        %v3386 = vld [vmem:[%s3315 + $0x230] sm:$0xff]
        %v3387 = vld [vmem:[%s3315 + $0x238] sm:$0xff]
        %v3392 = vrot.slane %v3311, 4
        %v3393 = vrot.slane %v3313, 4
        %v3394 = vsel %vm587, %v3392, %v3393
        %v3395 = vrot.slane %v3312, 4
        %v3396 = vrot.slane %v3314, 4
        %v3397 = vsel %vm587, %v3395, %v3396
        %v3400 = vsel %vm1595, %v3397, 0
        %v3402 = vsel %vm1595, %v3396, 0
        %3404 = vmatprep.subr.mxu0 %v3362
        %3405 = vmatpush1.msra.mxu0 %v3361
        %3406 = vmatprep.subr.mxu0 %v3359
        %3407 = vmatpush1.msra.mxu0 %v3358
        %3408 = vmatprep.subr.mxu0 %v3356
        %3409 = vmatpush1.msra.mxu0 %v3355
        %3410 = vmatprep.subr.mxu0 %v3353
        %3411 = vmatpush1.msra.mxu0 %v3352
        %3412 = vmatprep.subr.mxu0 %v3350
        %3413 = vmatpush1.msra.mxu0 %v3349
        %3414 = vmatprep.subr.mxu0 %v3347
        %3415 = vmatpush1.msra.mxu0 %v3346
        %3416 = vmatprep.subr.mxu0 %v3344
        %3417 = vmatpush1.msra.mxu0 %v3343
        %3418 = vmatprep.subr.mxu0 %v3341
        %3419 = vmatpush1.msra.mxu0 %v3340
        %3420 = vmatprep.subr.mxu0 %v3338
        %3421 = vmatpush1.msra.mxu0 %v3337
        %3422 = vmatprep.subr.mxu0 %v3335
        %3423 = vmatpush1.msra.mxu0 %v3334
        %3424 = vmatprep.subr.mxu0 %v3332
        %3425 = vmatpush1.msra.mxu0 %v3331
        %3426 = vmatprep.subr.mxu0 %v3329
        %3427 = vmatpush1.msra.mxu0 %v3328
        %3428 = vmatprep.subr.mxu0 %v3326
        %3429 = vmatpush1.msra.mxu0 %v3325
        %3430 = vmatprep.subr.mxu0 %v3323
        %3431 = vmatpush1.msra.mxu0 %v3322
        %3432 = vmatprep.subr.mxu0 %v3320
        %3433 = vmatpush1.msra.mxu0 %v3319
        %3434 = vmatprep.subr.mxu0 %v3317
        %3435 = vmatpush1.msra.mxu0 %v3316
        %3436 = vmatprep.subr.mxu0 0.0
        %3437 = vmatpush2.msra.mxu0 0.0
        %3438 = vmatprep.subr.mxu0 0.0
        %3439 = vmatpush2.msra.mxu0 0.0
        %3440 = vmatprep.subr.mxu0 0.0
        %3441 = vmatpush2.msra.mxu0 0.0
        %3442 = vmatprep.subr.mxu0 0.0
        %3443 = vmatpush2.msra.mxu0 0.0
        %3444 = vmatprep.subr.mxu0 0.0
        %3445 = vmatpush2.msra.mxu0 0.0
        %3446 = vmatprep.subr.mxu0 0.0
        %3447 = vmatpush2.msra.mxu0 0.0
        %3448 = vmatprep.subr.mxu0 0.0
        %3449 = vmatpush2.msra.mxu0 0.0
        %3450 = vmatprep.subr.mxu0 0.0
        %3451 = vmatpush2.msra.mxu0 0.0
        %3452 = vmatprep.subr.mxu0 %v3386
        %3453 = vmatpush2.msra.mxu0 %v3385
        %3454 = vmatprep.subr.mxu0 %v3383
        %3455 = vmatpush2.msra.mxu0 %v3382
        %3456 = vmatprep.subr.mxu0 %v3380
        %3457 = vmatpush2.msra.mxu0 %v3379
        %3458 = vmatprep.subr.mxu0 %v3377
        %3459 = vmatpush2.msra.mxu0 %v3376
        %3460 = vmatprep.subr.mxu0 %v3374
        %3461 = vmatpush2.msra.mxu0 %v3373
        %3462 = vmatprep.subr.mxu0 %v3371
        %3463 = vmatpush2.msra.mxu0 %v3370
        %3464 = vmatprep.subr.mxu0 %v3368
        %3465 = vmatpush2.msra.mxu0 %v3367
        %3466 = vmatprep.subr.mxu0 %v3365
        %3467 = vmatpush2.msra.mxu0 %v3364
        %3468 = vmatprep.mubr.f32.mxu0 %v3400
        %3469 = vmatmul.mubr.f32.gmra.mxu0 %v3394
        %v3470 = vpop.f32.mrf.mxu0
        %v3471 = vadd.f32 0.0, %v3470
        %v3472 = vpop.f32.mrf.mxu0
        %v3473 = vadd.f32 0.0, %v3472
        %3474 = vmatprep.mubr.f32.mxu0 %v3402
        %3475 = vmatmul.mubr.f32.gmra.mxu0 %v3393
        %v3476 = vpop.f32.mrf.mxu0
        %v3477 = vadd.f32 0.0, %v3476
        %v3478 = vpop.f32.mrf.mxu0
        %v3479 = vadd.f32 0.0, %v3478
        %3480 = vdwg.mxu0
        %3481 = vmatprep.subr.mxu0 0.0
        %3482 = vmatpush1.msra.mxu0 %v3363
        %3483 = vmatprep.subr.mxu0 0.0
        %3484 = vmatpush1.msra.mxu0 %v3360
        %3485 = vmatprep.subr.mxu0 0.0
        %3486 = vmatpush1.msra.mxu0 %v3357
        %3487 = vmatprep.subr.mxu0 0.0
        %3488 = vmatpush1.msra.mxu0 %v3354
        %3489 = vmatprep.subr.mxu0 0.0
        %3490 = vmatpush1.msra.mxu0 %v3351
        %3491 = vmatprep.subr.mxu0 0.0
        %3492 = vmatpush1.msra.mxu0 %v3348
        %3493 = vmatprep.subr.mxu0 0.0
        %3494 = vmatpush1.msra.mxu0 %v3345
        %3495 = vmatprep.subr.mxu0 0.0
        %3496 = vmatpush1.msra.mxu0 %v3342
        %3497 = vmatprep.subr.mxu0 0.0
        %3498 = vmatpush1.msra.mxu0 %v3339
        %3499 = vmatprep.subr.mxu0 0.0
        %3500 = vmatpush1.msra.mxu0 %v3336
        %3501 = vmatprep.subr.mxu0 0.0
        %3502 = vmatpush1.msra.mxu0 %v3333
        %3503 = vmatprep.subr.mxu0 0.0
        %3504 = vmatpush1.msra.mxu0 %v3330
        %3505 = vmatprep.subr.mxu0 0.0
        %3506 = vmatpush1.msra.mxu0 %v3327
        %3507 = vmatprep.subr.mxu0 0.0
        %3508 = vmatpush1.msra.mxu0 %v3324
        %3509 = vmatprep.subr.mxu0 0.0
        %3510 = vmatpush1.msra.mxu0 %v3321
        %3511 = vmatprep.subr.mxu0 0.0
        %3512 = vmatpush1.msra.mxu0 %v3318
        %3513 = vmatprep.subr.mxu0 0.0
        %3514 = vmatpush2.msra.mxu0 0.0
        %3515 = vmatprep.subr.mxu0 0.0
        %3516 = vmatpush2.msra.mxu0 0.0
        %3517 = vmatprep.subr.mxu0 0.0
        %3518 = vmatpush2.msra.mxu0 0.0
        %3519 = vmatprep.subr.mxu0 0.0
        %3520 = vmatpush2.msra.mxu0 0.0
        %3521 = vmatprep.subr.mxu0 0.0
        %3522 = vmatpush2.msra.mxu0 0.0
        %3523 = vmatprep.subr.mxu0 0.0
        %3524 = vmatpush2.msra.mxu0 0.0
        %3525 = vmatprep.subr.mxu0 0.0
        %3526 = vmatpush2.msra.mxu0 0.0
        %3527 = vmatprep.subr.mxu0 0.0
        %3528 = vmatpush2.msra.mxu0 0.0
        %3529 = vmatprep.subr.mxu0 0.0
        %3530 = vmatpush2.msra.mxu0 %v3387
        %3531 = vmatprep.subr.mxu0 0.0
        %3532 = vmatpush2.msra.mxu0 %v3384
        %3533 = vmatprep.subr.mxu0 0.0
        %3534 = vmatpush2.msra.mxu0 %v3381
        %3535 = vmatprep.subr.mxu0 0.0
        %3536 = vmatpush2.msra.mxu0 %v3378
        %3537 = vmatprep.subr.mxu0 0.0
        %3538 = vmatpush2.msra.mxu0 %v3375
        %3539 = vmatprep.subr.mxu0 0.0
        %3540 = vmatpush2.msra.mxu0 %v3372
        %3541 = vmatprep.subr.mxu0 0.0
        %3542 = vmatpush2.msra.mxu0 %v3369
        %3543 = vmatprep.subr.mxu0 0.0
        %3544 = vmatpush2.msra.mxu0 %v3366
        %3545 = vmatprep.mubr.f32.mxu0 %v3400
        %3546 = vmatmul.mubr.f32.gmra.mxu0 %v3394
        %v3547 = vpop.f32.mrf.mxu0
        %v3548 = vadd.f32 0.0, %v3547
        %v3549 = vpop.f32.mrf.mxu0
        %3550 = vmatprep.mubr.f32.mxu0 %v3402
        %3551 = vmatmul.mubr.f32.gmra.mxu0 %v3393
        %v3552 = vpop.f32.mrf.mxu0
        %v3553 = vadd.f32 0.0, %v3552
        %v3554 = vpop.f32.mrf.mxu0
        %3555 = vdwg.mxu0
        %v3556 = vadd.f32 %v3305, %v3471
        %v3557 = vadd.f32 %v3306, %v3473
        %v3558 = vadd.f32 %v3307, %v3548
        %v3559 = vadd.f32 %v3308, %v3477
        %v3560 = vadd.f32 %v3309, %v3479
        %v3561 = vadd.f32 %v3310, %v3553
        %v3562 = vld [vmem:[%s6] sm:$0x7]
        %v3564 = vlaneseq
        %v3565 = vshrl.u32 %v3564, 7
        %v3566 = vsub.s32 0, %v3565
        %v3567 = vrot.slane %v3562, %v3566
        %v3568 = vlaneseq
        %v3569 = vshrl.u32 %v3568, 7
        %v3570 = vsub.s32 1, %v3569
        %v3571 = vrot.slane %v3562, %v3570
        %v3572 = vlaneseq
        %v3573 = vshrl.u32 %v3572, 7
        %v3574 = vsub.s32 2, %v3573
        %v3575 = vrot.slane %v3562, %v3574
        %v3579 = vadd.f32 %v3556, %v3567
        %v3580 = vadd.f32 %v3557, %v3571
        %v3581 = vadd.f32 %v3558, %v3575
        %v3582 = vadd.f32 %v3559, %v3567
        %v3583 = vadd.f32 %v3560, %v3571
        %v3584 = vadd.f32 %v3561, %v3575
        %v3585 = vmax.f32 %v3579, 0.0
        %v3586 = vmax.f32 %v3580, 0.0
        %v3587 = vmax.f32 %v3581, 0.0
        %v3588 = vmax.f32 %v3582, 0.0
        %v3589 = vmax.f32 %v3583, 0.0
        %v3590 = vmax.f32 %v3584, 0.0
        %3591 = vst [vmem:[#allocation3] sm:$0xff] 0.0
        %3592 = vst.msk [vmem:[#allocation3 + $0x8] sm:$0xff] %vm1595, 0.0
        %v3593 = vld [vmem:[%s7] sm:$0xff]
        %v3594 = vld [vmem:[%s7 + $0x8] sm:$0xff]
        %v3595 = vld [vmem:[%s7 + $0x10] sm:$0xff]
        %v3596 = vld [vmem:[%s7 + $0x18] sm:$0xff]
        %v3597 = vld [vmem:[%s7 + $0x20] sm:$0xff]
        %v3598 = vld [vmem:[%s7 + $0x28] sm:$0xff]
        %v3599 = vld [vmem:[%s7 + $0x30] sm:$0xff]
        %v3600 = vld [vmem:[%s7 + $0x38] sm:$0xff]
        %v3601 = vld [vmem:[%s7 + $0x40] sm:$0xff]
        %v3602 = vld [vmem:[%s7 + $0x48] sm:$0xff]
        %v3603 = vld [vmem:[%s7 + $0x50] sm:$0xff]
        %v3604 = vld [vmem:[%s7 + $0x58] sm:$0xff]
        %v3605 = vld [vmem:[%s7 + $0x60] sm:$0xff]
        %v3606 = vld [vmem:[%s7 + $0x68] sm:$0xff]
        %v3607 = vld [vmem:[%s7 + $0x70] sm:$0xff]
        %v3608 = vld [vmem:[%s7 + $0x78] sm:$0xff]
        %v3609 = vld [vmem:[%s7 + $0x80] sm:$0xff]
        %v3610 = vld [vmem:[%s7 + $0x88] sm:$0xff]
        %v3611 = vld [vmem:[%s7 + $0x90] sm:$0xff]
        %v3612 = vld [vmem:[%s7 + $0x98] sm:$0xff]
        %v3613 = vld [vmem:[%s7 + $0xa0] sm:$0xff]
        %v3614 = vld [vmem:[%s7 + $0xa8] sm:$0xff]
        %v3615 = vld [vmem:[%s7 + $0xb0] sm:$0xff]
        %v3616 = vld [vmem:[%s7 + $0xb8] sm:$0xff]
        %v3617 = vld [vmem:[%s7 + $0xc0] sm:$0xff]
        %v3618 = vld [vmem:[%s7 + $0xc8] sm:$0xff]
        %v3619 = vld [vmem:[%s7 + $0xd0] sm:$0xff]
        %v3620 = vld [vmem:[%s7 + $0xd8] sm:$0xff]
        %v3621 = vld [vmem:[%s7 + $0xe0] sm:$0xff]
        %v3622 = vld [vmem:[%s7 + $0xe8] sm:$0xff]
        %v3623 = vld [vmem:[%s7 + $0xf0] sm:$0xff]
        %v3624 = vld [vmem:[%s7 + $0xf8] sm:$0xff]
        %v3625 = vld [vmem:[%s7 + $0x100] sm:$0xff]
        %v3626 = vld [vmem:[%s7 + $0x108] sm:$0xff]
        %v3627 = vld [vmem:[%s7 + $0x110] sm:$0xff]
        %v3628 = vld [vmem:[%s7 + $0x118] sm:$0xff]
        %v3629 = vld [vmem:[%s7 + $0x120] sm:$0xff]
        %v3630 = vld [vmem:[%s7 + $0x128] sm:$0xff]
        %v3631 = vld [vmem:[%s7 + $0x130] sm:$0xff]
        %v3632 = vld [vmem:[%s7 + $0x138] sm:$0xff]
        %v3633 = vld [vmem:[%s7 + $0x140] sm:$0xff]
        %v3634 = vld [vmem:[%s7 + $0x148] sm:$0xff]
        %v3635 = vld [vmem:[%s7 + $0x150] sm:$0xff]
        %v3636 = vld [vmem:[%s7 + $0x158] sm:$0xff]
        %v3637 = vld [vmem:[%s7 + $0x160] sm:$0xff]
        %v3638 = vld [vmem:[%s7 + $0x168] sm:$0xff]
        %v3639 = vld [vmem:[%s7 + $0x170] sm:$0xff]
        %v3640 = vld [vmem:[%s7 + $0x178] sm:$0xff]
        %v3641 = vld [vmem:[%s7 + $0x180] sm:$0xff]
        %v3642 = vld [vmem:[%s7 + $0x188] sm:$0xff]
        %v3643 = vld [vmem:[%s7 + $0x190] sm:$0xff]
        %v3644 = vld [vmem:[%s7 + $0x198] sm:$0xff]
        %v3645 = vld [vmem:[%s7 + $0x1a0] sm:$0xff]
        %v3646 = vld [vmem:[%s7 + $0x1a8] sm:$0xff]
        %v3647 = vld [vmem:[%s7 + $0x1b0] sm:$0xff]
        %v3648 = vld [vmem:[%s7 + $0x1b8] sm:$0xff]
        %v3649 = vld [vmem:[%s7 + $0x1c0] sm:$0xff]
        %v3650 = vld [vmem:[%s7 + $0x1c8] sm:$0xff]
        %v3651 = vld [vmem:[%s7 + $0x1d0] sm:$0xff]
        %v3652 = vld [vmem:[%s7 + $0x1d8] sm:$0xff]
        %v3653 = vld [vmem:[%s7 + $0x1e0] sm:$0xff]
        %v3654 = vld [vmem:[%s7 + $0x1e8] sm:$0xff]
        %v3655 = vld [vmem:[%s7 + $0x1f0] sm:$0xff]
        %v3656 = vld [vmem:[%s7 + $0x1f8] sm:$0xff]
        %v3657 = vld [vmem:[%s7 + $0x200] sm:$0xff]
        %v3658 = vld [vmem:[%s7 + $0x208] sm:$0xff]
        %v3659 = vld [vmem:[%s7 + $0x210] sm:$0xff]
        %v3660 = vld [vmem:[%s7 + $0x218] sm:$0xff]
        %v3661 = vld [vmem:[%s7 + $0x220] sm:$0xff]
        %v3662 = vld [vmem:[%s7 + $0x228] sm:$0xff]
        %v3663 = vld [vmem:[%s7 + $0x230] sm:$0xff]
        %v3664 = vld [vmem:[%s7 + $0x238] sm:$0xff]
        %v3665 = vld [vmem:[%s7 + $0x240] sm:$0xff]
        %v3666 = vld [vmem:[%s7 + $0x248] sm:$0xff]
        %v3667 = vld [vmem:[%s7 + $0x250] sm:$0xff]
        %v3668 = vld [vmem:[%s7 + $0x258] sm:$0xff]
        %v3669 = vld [vmem:[%s7 + $0x260] sm:$0xff]
        %v3670 = vld [vmem:[%s7 + $0x268] sm:$0xff]
        %v3671 = vld [vmem:[%s7 + $0x270] sm:$0xff]
        %v3672 = vld [vmem:[%s7 + $0x278] sm:$0xff]
        %v3673 = vld [vmem:[%s7 + $0x280] sm:$0xff]
        %v3674 = vld [vmem:[%s7 + $0x288] sm:$0xff]
        %v3675 = vld [vmem:[%s7 + $0x290] sm:$0xff]
        %v3676 = vld [vmem:[%s7 + $0x298] sm:$0xff]
        %v3677 = vld [vmem:[%s7 + $0x2a0] sm:$0xff]
        %v3678 = vld [vmem:[%s7 + $0x2a8] sm:$0xff]
        %v3679 = vld [vmem:[%s7 + $0x2b0] sm:$0xff]
        %v3680 = vld [vmem:[%s7 + $0x2b8] sm:$0xff]
        %v3681 = vld [vmem:[%s7 + $0x2c0] sm:$0xff]
        %v3682 = vld [vmem:[%s7 + $0x2c8] sm:$0xff]
        %v3683 = vld [vmem:[%s7 + $0x2d0] sm:$0xff]
        %v3684 = vld [vmem:[%s7 + $0x2d8] sm:$0xff]
        %v3685 = vld [vmem:[%s7 + $0x2e0] sm:$0xff]
        %v3686 = vld [vmem:[%s7 + $0x2e8] sm:$0xff]
        %v3687 = vld [vmem:[%s7 + $0x2f0] sm:$0xff]
        %v3688 = vld [vmem:[%s7 + $0x2f8] sm:$0xff]
        %3689 = vmatprep.subr.mxu0 %v3624
        %3690 = vmatpush1.msra.mxu0 %v3623
        %3691 = vmatprep.subr.mxu0 %v3622
        %3692 = vmatpush1.msra.mxu0 %v3621
        %3693 = vmatprep.subr.mxu0 %v3620
        %3694 = vmatpush1.msra.mxu0 %v3619
        %3695 = vmatprep.subr.mxu0 %v3618
        %3696 = vmatpush1.msra.mxu0 %v3617
        %3697 = vmatprep.subr.mxu0 %v3616
        %3698 = vmatpush1.msra.mxu0 %v3615
        %3699 = vmatprep.subr.mxu0 %v3614
        %3700 = vmatpush1.msra.mxu0 %v3613
        %3701 = vmatprep.subr.mxu0 %v3612
        %3702 = vmatpush1.msra.mxu0 %v3611
        %3703 = vmatprep.subr.mxu0 %v3610
        %3704 = vmatpush1.msra.mxu0 %v3609
        %3705 = vmatprep.subr.mxu0 %v3608
        %3706 = vmatpush1.msra.mxu0 %v3607
        %3707 = vmatprep.subr.mxu0 %v3606
        %3708 = vmatpush1.msra.mxu0 %v3605
        %3709 = vmatprep.subr.mxu0 %v3604
        %3710 = vmatpush1.msra.mxu0 %v3603
        %3711 = vmatprep.subr.mxu0 %v3602
        %3712 = vmatpush1.msra.mxu0 %v3601
        %3713 = vmatprep.subr.mxu0 %v3600
        %3714 = vmatpush1.msra.mxu0 %v3599
        %3715 = vmatprep.subr.mxu0 %v3598
        %3716 = vmatpush1.msra.mxu0 %v3597
        %3717 = vmatprep.subr.mxu0 %v3596
        %3718 = vmatpush1.msra.mxu0 %v3595
        %3719 = vmatprep.subr.mxu0 %v3594
        %3720 = vmatpush1.msra.mxu0 %v3593
        %3721 = vmatprep.subr.mxu0 %v3656
        %3722 = vmatpush2.msra.mxu0 %v3655
        %3723 = vmatprep.subr.mxu0 %v3654
        %3724 = vmatpush2.msra.mxu0 %v3653
        %3725 = vmatprep.subr.mxu0 %v3652
        %3726 = vmatpush2.msra.mxu0 %v3651
        %3727 = vmatprep.subr.mxu0 %v3650
        %3728 = vmatpush2.msra.mxu0 %v3649
        %3729 = vmatprep.subr.mxu0 %v3648
        %3730 = vmatpush2.msra.mxu0 %v3647
        %3731 = vmatprep.subr.mxu0 %v3646
        %3732 = vmatpush2.msra.mxu0 %v3645
        %3733 = vmatprep.subr.mxu0 %v3644
        %3734 = vmatpush2.msra.mxu0 %v3643
        %3735 = vmatprep.subr.mxu0 %v3642
        %3736 = vmatpush2.msra.mxu0 %v3641
        %3737 = vmatprep.subr.mxu0 %v3640
        %3738 = vmatpush2.msra.mxu0 %v3639
        %3739 = vmatprep.subr.mxu0 %v3638
        %3740 = vmatpush2.msra.mxu0 %v3637
        %3741 = vmatprep.subr.mxu0 %v3636
        %3742 = vmatpush2.msra.mxu0 %v3635
        %3743 = vmatprep.subr.mxu0 %v3634
        %3744 = vmatpush2.msra.mxu0 %v3633
        %3745 = vmatprep.subr.mxu0 %v3632
        %3746 = vmatpush2.msra.mxu0 %v3631
        %3747 = vmatprep.subr.mxu0 %v3630
        %3748 = vmatpush2.msra.mxu0 %v3629
        %3749 = vmatprep.subr.mxu0 %v3628
        %3750 = vmatpush2.msra.mxu0 %v3627
        %3751 = vmatprep.subr.mxu0 %v3626
        %3752 = vmatpush2.msra.mxu0 %v3625
        %3753 = vmatprep.mubr.f32.mxu0 %v3586
        %3754 = vmatmul.mubr.f32.gmra.mxu0 %v3585
        %v3755 = vpop.f32.mrf.mxu0
        %v3756 = vadd.f32 0.0, %v3755
        %v3757 = vpop.f32.mrf.mxu0
        %v3758 = vadd.f32 0.0, %v3757
        %3759 = vmatprep.mubr.f32.mxu0 %v3589
        %3760 = vmatmul.mubr.f32.gmra.mxu0 %v3588
        %v3761 = vpop.f32.mrf.mxu0
        %v3762 = vadd.f32 0.0, %v3761
        %v3763 = vpop.f32.mrf.mxu0
        %v3764 = vadd.f32 0.0, %v3763
        %3765 = vdwg.mxu0
        %3766 = vmatprep.subr.mxu0 %v3688
        %3767 = vmatpush1.msra.mxu0 %v3687
        %3768 = vmatprep.subr.mxu0 %v3686
        %3769 = vmatpush1.msra.mxu0 %v3685
        %3770 = vmatprep.subr.mxu0 %v3684
        %3771 = vmatpush1.msra.mxu0 %v3683
        %3772 = vmatprep.subr.mxu0 %v3682
        %3773 = vmatpush1.msra.mxu0 %v3681
        %3774 = vmatprep.subr.mxu0 %v3680
        %3775 = vmatpush1.msra.mxu0 %v3679
        %3776 = vmatprep.subr.mxu0 %v3678
        %3777 = vmatpush1.msra.mxu0 %v3677
        %3778 = vmatprep.subr.mxu0 %v3676
        %3779 = vmatpush1.msra.mxu0 %v3675
        %3780 = vmatprep.subr.mxu0 %v3674
        %3781 = vmatpush1.msra.mxu0 %v3673
        %3782 = vmatprep.subr.mxu0 %v3672
        %3783 = vmatpush1.msra.mxu0 %v3671
        %3784 = vmatprep.subr.mxu0 %v3670
        %3785 = vmatpush1.msra.mxu0 %v3669
        %3786 = vmatprep.subr.mxu0 %v3668
        %3787 = vmatpush1.msra.mxu0 %v3667
        %3788 = vmatprep.subr.mxu0 %v3666
        %3789 = vmatpush1.msra.mxu0 %v3665
        %3790 = vmatprep.subr.mxu0 %v3664
        %3791 = vmatpush1.msra.mxu0 %v3663
        %3792 = vmatprep.subr.mxu0 %v3662
        %3793 = vmatpush1.msra.mxu0 %v3661
        %3794 = vmatprep.subr.mxu0 %v3660
        %3795 = vmatpush1.msra.mxu0 %v3659
        %3796 = vmatprep.subr.mxu0 %v3658
        %3797 = vmatpush1.msra.mxu0 %v3657
        %3798 = vmatprep.subr.mxu0 0.0
        %3799 = vmatpush2.msra.mxu0 0.0
        %3800 = vmatprep.subr.mxu0 0.0
        %3801 = vmatpush2.msra.mxu0 0.0
        %3802 = vmatprep.subr.mxu0 0.0
        %3803 = vmatpush2.msra.mxu0 0.0
        %3804 = vmatprep.subr.mxu0 0.0
        %3805 = vmatpush2.msra.mxu0 0.0
        %3806 = vmatprep.subr.mxu0 0.0
        %3807 = vmatpush2.msra.mxu0 0.0
        %3808 = vmatprep.subr.mxu0 0.0
        %3809 = vmatpush2.msra.mxu0 0.0
        %3810 = vmatprep.subr.mxu0 0.0
        %3811 = vmatpush2.msra.mxu0 0.0
        %3812 = vmatprep.subr.mxu0 0.0
        %3813 = vmatpush2.msra.mxu0 0.0
        %3814 = vmatprep.subr.mxu0 0.0
        %3815 = vmatpush2.msra.mxu0 0.0
        %3816 = vmatprep.subr.mxu0 0.0
        %3817 = vmatpush2.msra.mxu0 0.0
        %3818 = vmatprep.subr.mxu0 0.0
        %3819 = vmatpush2.msra.mxu0 0.0
        %3820 = vmatprep.subr.mxu0 0.0
        %3821 = vmatpush2.msra.mxu0 0.0
        %3822 = vmatprep.subr.mxu0 0.0
        %3823 = vmatpush2.msra.mxu0 0.0
        %3824 = vmatprep.subr.mxu0 0.0
        %3825 = vmatpush2.msra.mxu0 0.0
        %3826 = vmatprep.subr.mxu0 0.0
        %3827 = vmatpush2.msra.mxu0 0.0
        %3828 = vmatprep.subr.mxu0 0.0
        %3829 = vmatpush2.msra.mxu0 0.0
        %3830 = vmatprep.mubr.f32.mxu0 0.0
        %3831 = vmatmul.mubr.f32.gmra.mxu0 %v3587
        %v3832 = vpop.f32.mrf.mxu0
        %v3833 = vadd.f32 %v3756, %v3832
        %v3834 = vpop.f32.mrf.mxu0
        %v3835 = vadd.f32 %v3758, %v3834
        %3836 = vmatprep.mubr.f32.mxu0 0.0
        %3837 = vmatmul.mubr.f32.gmra.mxu0 %v3590
        %v3838 = vpop.f32.mrf.mxu0
        %v3839 = vadd.f32 %v3762, %v3838
        %v3840 = vpop.f32.mrf.mxu0
        %v3841 = vadd.f32 %v3764, %v3840
        %3842 = vdwg.mxu0
        %s3843 = scalar_lea.vmem %s7, 768
        %v3844 = vld [vmem:[%s3843] sm:$0xff]
        %v3845 = vld [vmem:[%s3843 + $0x8] sm:$0xff]
        %v3846 = vld [vmem:[%s3843 + $0x10] sm:$0xff]
        %v3847 = vld [vmem:[%s3843 + $0x18] sm:$0xff]
        %v3848 = vld [vmem:[%s3843 + $0x20] sm:$0xff]
        %v3849 = vld [vmem:[%s3843 + $0x28] sm:$0xff]
        %v3850 = vld [vmem:[%s3843 + $0x30] sm:$0xff]
        %v3851 = vld [vmem:[%s3843 + $0x38] sm:$0xff]
        %v3852 = vld [vmem:[%s3843 + $0x40] sm:$0xff]
        %v3853 = vld [vmem:[%s3843 + $0x48] sm:$0xff]
        %v3854 = vld [vmem:[%s3843 + $0x50] sm:$0xff]
        %v3855 = vld [vmem:[%s3843 + $0x58] sm:$0xff]
        %v3856 = vld [vmem:[%s3843 + $0x60] sm:$0xff]
        %v3857 = vld [vmem:[%s3843 + $0x68] sm:$0xff]
        %v3858 = vld [vmem:[%s3843 + $0x70] sm:$0xff]
        %v3859 = vld [vmem:[%s3843 + $0x78] sm:$0xff]
        %v3860 = vld [vmem:[%s3843 + $0x80] sm:$0xff]
        %v3861 = vld [vmem:[%s3843 + $0x88] sm:$0xff]
        %v3862 = vld [vmem:[%s3843 + $0x90] sm:$0xff]
        %v3863 = vld [vmem:[%s3843 + $0x98] sm:$0xff]
        %v3864 = vld [vmem:[%s3843 + $0xa0] sm:$0xff]
        %v3865 = vld [vmem:[%s3843 + $0xa8] sm:$0xff]
        %v3866 = vld [vmem:[%s3843 + $0xb0] sm:$0xff]
        %v3867 = vld [vmem:[%s3843 + $0xb8] sm:$0xff]
        %v3868 = vld [vmem:[%s3843 + $0xc0] sm:$0xff]
        %v3869 = vld [vmem:[%s3843 + $0xc8] sm:$0xff]
        %v3870 = vld [vmem:[%s3843 + $0xd0] sm:$0xff]
        %v3871 = vld [vmem:[%s3843 + $0xd8] sm:$0xff]
        %v3872 = vld [vmem:[%s3843 + $0xe0] sm:$0xff]
        %v3873 = vld [vmem:[%s3843 + $0xe8] sm:$0xff]
        %v3874 = vld [vmem:[%s3843 + $0xf0] sm:$0xff]
        %v3875 = vld [vmem:[%s3843 + $0xf8] sm:$0xff]
        %v3876 = vld [vmem:[%s3843 + $0x100] sm:$0xff]
        %v3877 = vld [vmem:[%s3843 + $0x108] sm:$0xff]
        %v3878 = vld [vmem:[%s3843 + $0x110] sm:$0xff]
        %v3879 = vld [vmem:[%s3843 + $0x118] sm:$0xff]
        %v3880 = vld [vmem:[%s3843 + $0x120] sm:$0xff]
        %v3881 = vld [vmem:[%s3843 + $0x128] sm:$0xff]
        %v3882 = vld [vmem:[%s3843 + $0x130] sm:$0xff]
        %v3883 = vld [vmem:[%s3843 + $0x138] sm:$0xff]
        %v3884 = vld [vmem:[%s3843 + $0x140] sm:$0xff]
        %v3885 = vld [vmem:[%s3843 + $0x148] sm:$0xff]
        %v3886 = vld [vmem:[%s3843 + $0x150] sm:$0xff]
        %v3887 = vld [vmem:[%s3843 + $0x158] sm:$0xff]
        %v3888 = vld [vmem:[%s3843 + $0x160] sm:$0xff]
        %v3889 = vld [vmem:[%s3843 + $0x168] sm:$0xff]
        %v3890 = vld [vmem:[%s3843 + $0x170] sm:$0xff]
        %v3891 = vld [vmem:[%s3843 + $0x178] sm:$0xff]
        %v3892 = vld [vmem:[%s3843 + $0x180] sm:$0xff]
        %v3893 = vld [vmem:[%s3843 + $0x188] sm:$0xff]
        %v3894 = vld [vmem:[%s3843 + $0x190] sm:$0xff]
        %v3895 = vld [vmem:[%s3843 + $0x198] sm:$0xff]
        %v3896 = vld [vmem:[%s3843 + $0x1a0] sm:$0xff]
        %v3897 = vld [vmem:[%s3843 + $0x1a8] sm:$0xff]
        %v3898 = vld [vmem:[%s3843 + $0x1b0] sm:$0xff]
        %v3899 = vld [vmem:[%s3843 + $0x1b8] sm:$0xff]
        %v3900 = vld [vmem:[%s3843 + $0x1c0] sm:$0xff]
        %v3901 = vld [vmem:[%s3843 + $0x1c8] sm:$0xff]
        %v3902 = vld [vmem:[%s3843 + $0x1d0] sm:$0xff]
        %v3903 = vld [vmem:[%s3843 + $0x1d8] sm:$0xff]
        %v3904 = vld [vmem:[%s3843 + $0x1e0] sm:$0xff]
        %v3905 = vld [vmem:[%s3843 + $0x1e8] sm:$0xff]
        %v3906 = vld [vmem:[%s3843 + $0x1f0] sm:$0xff]
        %v3907 = vld [vmem:[%s3843 + $0x1f8] sm:$0xff]
        %v3908 = vld [vmem:[%s3843 + $0x200] sm:$0xff]
        %v3909 = vld [vmem:[%s3843 + $0x208] sm:$0xff]
        %v3910 = vld [vmem:[%s3843 + $0x210] sm:$0xff]
        %v3911 = vld [vmem:[%s3843 + $0x218] sm:$0xff]
        %v3912 = vld [vmem:[%s3843 + $0x220] sm:$0xff]
        %v3913 = vld [vmem:[%s3843 + $0x228] sm:$0xff]
        %v3914 = vld [vmem:[%s3843 + $0x230] sm:$0xff]
        %v3915 = vld [vmem:[%s3843 + $0x238] sm:$0xff]
        %v3916 = vld [vmem:[%s3843 + $0x240] sm:$0xff]
        %v3917 = vld [vmem:[%s3843 + $0x248] sm:$0xff]
        %v3918 = vld [vmem:[%s3843 + $0x250] sm:$0xff]
        %v3919 = vld [vmem:[%s3843 + $0x258] sm:$0xff]
        %v3920 = vld [vmem:[%s3843 + $0x260] sm:$0xff]
        %v3921 = vld [vmem:[%s3843 + $0x268] sm:$0xff]
        %v3922 = vld [vmem:[%s3843 + $0x270] sm:$0xff]
        %v3923 = vld [vmem:[%s3843 + $0x278] sm:$0xff]
        %v3924 = vld [vmem:[%s3843 + $0x280] sm:$0xff]
        %v3925 = vld [vmem:[%s3843 + $0x288] sm:$0xff]
        %v3926 = vld [vmem:[%s3843 + $0x290] sm:$0xff]
        %v3927 = vld [vmem:[%s3843 + $0x298] sm:$0xff]
        %v3928 = vld [vmem:[%s3843 + $0x2a0] sm:$0xff]
        %v3929 = vld [vmem:[%s3843 + $0x2a8] sm:$0xff]
        %v3930 = vld [vmem:[%s3843 + $0x2b0] sm:$0xff]
        %v3931 = vld [vmem:[%s3843 + $0x2b8] sm:$0xff]
        %v3932 = vld [vmem:[%s3843 + $0x2c0] sm:$0xff]
        %v3933 = vld [vmem:[%s3843 + $0x2c8] sm:$0xff]
        %v3934 = vld [vmem:[%s3843 + $0x2d0] sm:$0xff]
        %v3935 = vld [vmem:[%s3843 + $0x2d8] sm:$0xff]
        %v3936 = vld [vmem:[%s3843 + $0x2e0] sm:$0xff]
        %v3937 = vld [vmem:[%s3843 + $0x2e8] sm:$0xff]
        %v3938 = vld [vmem:[%s3843 + $0x2f0] sm:$0xff]
        %v3939 = vld [vmem:[%s3843 + $0x2f8] sm:$0xff]
        %3940 = vmatprep.subr.mxu0 %v3875
        %3941 = vmatpush1.msra.mxu0 %v3874
        %3942 = vmatprep.subr.mxu0 %v3873
        %3943 = vmatpush1.msra.mxu0 %v3872
        %3944 = vmatprep.subr.mxu0 %v3871
        %3945 = vmatpush1.msra.mxu0 %v3870
        %3946 = vmatprep.subr.mxu0 %v3869
        %3947 = vmatpush1.msra.mxu0 %v3868
        %3948 = vmatprep.subr.mxu0 %v3867
        %3949 = vmatpush1.msra.mxu0 %v3866
        %3950 = vmatprep.subr.mxu0 %v3865
        %3951 = vmatpush1.msra.mxu0 %v3864
        %3952 = vmatprep.subr.mxu0 %v3863
        %3953 = vmatpush1.msra.mxu0 %v3862
        %3954 = vmatprep.subr.mxu0 %v3861
        %3955 = vmatpush1.msra.mxu0 %v3860
        %3956 = vmatprep.subr.mxu0 %v3859
        %3957 = vmatpush1.msra.mxu0 %v3858
        %3958 = vmatprep.subr.mxu0 %v3857
        %3959 = vmatpush1.msra.mxu0 %v3856
        %3960 = vmatprep.subr.mxu0 %v3855
        %3961 = vmatpush1.msra.mxu0 %v3854
        %3962 = vmatprep.subr.mxu0 %v3853
        %3963 = vmatpush1.msra.mxu0 %v3852
        %3964 = vmatprep.subr.mxu0 %v3851
        %3965 = vmatpush1.msra.mxu0 %v3850
        %3966 = vmatprep.subr.mxu0 %v3849
        %3967 = vmatpush1.msra.mxu0 %v3848
        %3968 = vmatprep.subr.mxu0 %v3847
        %3969 = vmatpush1.msra.mxu0 %v3846
        %3970 = vmatprep.subr.mxu0 %v3845
        %3971 = vmatpush1.msra.mxu0 %v3844
        %3972 = vmatprep.subr.mxu0 %v3907
        %3973 = vmatpush2.msra.mxu0 %v3906
        %3974 = vmatprep.subr.mxu0 %v3905
        %3975 = vmatpush2.msra.mxu0 %v3904
        %3976 = vmatprep.subr.mxu0 %v3903
        %3977 = vmatpush2.msra.mxu0 %v3902
        %3978 = vmatprep.subr.mxu0 %v3901
        %3979 = vmatpush2.msra.mxu0 %v3900
        %3980 = vmatprep.subr.mxu0 %v3899
        %3981 = vmatpush2.msra.mxu0 %v3898
        %3982 = vmatprep.subr.mxu0 %v3897
        %3983 = vmatpush2.msra.mxu0 %v3896
        %3984 = vmatprep.subr.mxu0 %v3895
        %3985 = vmatpush2.msra.mxu0 %v3894
        %3986 = vmatprep.subr.mxu0 %v3893
        %3987 = vmatpush2.msra.mxu0 %v3892
        %3988 = vmatprep.subr.mxu0 %v3891
        %3989 = vmatpush2.msra.mxu0 %v3890
        %3990 = vmatprep.subr.mxu0 %v3889
        %3991 = vmatpush2.msra.mxu0 %v3888
        %3992 = vmatprep.subr.mxu0 %v3887
        %3993 = vmatpush2.msra.mxu0 %v3886
        %3994 = vmatprep.subr.mxu0 %v3885
        %3995 = vmatpush2.msra.mxu0 %v3884
        %3996 = vmatprep.subr.mxu0 %v3883
        %3997 = vmatpush2.msra.mxu0 %v3882
        %3998 = vmatprep.subr.mxu0 %v3881
        %3999 = vmatpush2.msra.mxu0 %v3880
        %4000 = vmatprep.subr.mxu0 %v3879
        %4001 = vmatpush2.msra.mxu0 %v3878
        %4002 = vmatprep.subr.mxu0 %v3877
        %4003 = vmatpush2.msra.mxu0 %v3876
        %4004 = vmatprep.mubr.f32.mxu0 %v3586
        %4005 = vmatmul.mubr.f32.gmra.mxu0 %v3585
        %v4006 = vpop.f32.mrf.mxu0
        %v4007 = vadd.f32 0.0, %v4006
        %v4008 = vpop.f32.mrf.mxu0
        %v4009 = vadd.f32 0.0, %v4008
        %4010 = vmatprep.mubr.f32.mxu0 %v3589
        %4011 = vmatmul.mubr.f32.gmra.mxu0 %v3588
        %v4012 = vpop.f32.mrf.mxu0
        %v4013 = vadd.f32 0.0, %v4012
        %v4014 = vpop.f32.mrf.mxu0
        %v4015 = vadd.f32 0.0, %v4014
        %4016 = vdwg.mxu0
        %4017 = vmatprep.subr.mxu0 %v3939
        %4018 = vmatpush1.msra.mxu0 %v3938
        %4019 = vmatprep.subr.mxu0 %v3937
        %4020 = vmatpush1.msra.mxu0 %v3936
        %4021 = vmatprep.subr.mxu0 %v3935
        %4022 = vmatpush1.msra.mxu0 %v3934
        %4023 = vmatprep.subr.mxu0 %v3933
        %4024 = vmatpush1.msra.mxu0 %v3932
        %4025 = vmatprep.subr.mxu0 %v3931
        %4026 = vmatpush1.msra.mxu0 %v3930
        %4027 = vmatprep.subr.mxu0 %v3929
        %4028 = vmatpush1.msra.mxu0 %v3928
        %4029 = vmatprep.subr.mxu0 %v3927
        %4030 = vmatpush1.msra.mxu0 %v3926
        %4031 = vmatprep.subr.mxu0 %v3925
        %4032 = vmatpush1.msra.mxu0 %v3924
        %4033 = vmatprep.subr.mxu0 %v3923
        %4034 = vmatpush1.msra.mxu0 %v3922
        %4035 = vmatprep.subr.mxu0 %v3921
        %4036 = vmatpush1.msra.mxu0 %v3920
        %4037 = vmatprep.subr.mxu0 %v3919
        %4038 = vmatpush1.msra.mxu0 %v3918
        %4039 = vmatprep.subr.mxu0 %v3917
        %4040 = vmatpush1.msra.mxu0 %v3916
        %4041 = vmatprep.subr.mxu0 %v3915
        %4042 = vmatpush1.msra.mxu0 %v3914
        %4043 = vmatprep.subr.mxu0 %v3913
        %4044 = vmatpush1.msra.mxu0 %v3912
        %4045 = vmatprep.subr.mxu0 %v3911
        %4046 = vmatpush1.msra.mxu0 %v3910
        %4047 = vmatprep.subr.mxu0 %v3909
        %4048 = vmatpush1.msra.mxu0 %v3908
        %4049 = vmatprep.subr.mxu0 0.0
        %4050 = vmatpush2.msra.mxu0 0.0
        %4051 = vmatprep.subr.mxu0 0.0
        %4052 = vmatpush2.msra.mxu0 0.0
        %4053 = vmatprep.subr.mxu0 0.0
        %4054 = vmatpush2.msra.mxu0 0.0
        %4055 = vmatprep.subr.mxu0 0.0
        %4056 = vmatpush2.msra.mxu0 0.0
        %4057 = vmatprep.subr.mxu0 0.0
        %4058 = vmatpush2.msra.mxu0 0.0
        %4059 = vmatprep.subr.mxu0 0.0
        %4060 = vmatpush2.msra.mxu0 0.0
        %4061 = vmatprep.subr.mxu0 0.0
        %4062 = vmatpush2.msra.mxu0 0.0
        %4063 = vmatprep.subr.mxu0 0.0
        %4064 = vmatpush2.msra.mxu0 0.0
        %4065 = vmatprep.subr.mxu0 0.0
        %4066 = vmatpush2.msra.mxu0 0.0
        %4067 = vmatprep.subr.mxu0 0.0
        %4068 = vmatpush2.msra.mxu0 0.0
        %4069 = vmatprep.subr.mxu0 0.0
        %4070 = vmatpush2.msra.mxu0 0.0
        %4071 = vmatprep.subr.mxu0 0.0
        %4072 = vmatpush2.msra.mxu0 0.0
        %4073 = vmatprep.subr.mxu0 0.0
        %4074 = vmatpush2.msra.mxu0 0.0
        %4075 = vmatprep.subr.mxu0 0.0
        %4076 = vmatpush2.msra.mxu0 0.0
        %4077 = vmatprep.subr.mxu0 0.0
        %4078 = vmatpush2.msra.mxu0 0.0
        %4079 = vmatprep.subr.mxu0 0.0
        %4080 = vmatpush2.msra.mxu0 0.0
        %4081 = vmatprep.mubr.f32.mxu0 0.0
        %4082 = vmatmul.mubr.f32.gmra.mxu0 %v3587
        %v4083 = vpop.f32.mrf.mxu0
        %v4084 = vadd.f32 %v4007, %v4083
        %v4085 = vpop.f32.mrf.mxu0
        %v4086 = vadd.f32 %v4009, %v4085
        %4087 = vmatprep.mubr.f32.mxu0 0.0
        %4088 = vmatmul.mubr.f32.gmra.mxu0 %v3590
        %v4089 = vpop.f32.mrf.mxu0
        %v4090 = vadd.f32 %v4013, %v4089
        %v4091 = vpop.f32.mrf.mxu0
        %v4092 = vadd.f32 %v4015, %v4091
        %4093 = vdwg.mxu0
        %v4094 = vmax.f32 %v3833, %v4084
        %v4095 = vmax.f32 %v3835, %v4086
        %v4096 = vmax.f32 %v3839, %v4090
        %v4097 = vmax.f32 %v3841, %v4092
        %v4098 = vld [vmem:[%s8] sm:$0x3f]
        %vm4099 = vcmask 97280
        %v4101 = vsel %vm4099, %v4098, 0
        %v4104 = vsel %vm587, %v4096, 0
        %v4107 = vsel %vm587, %v4097, 0
        %4109 = vmatprep.subr.mxu0 0.0
        %4110 = vmatpush1.msra.mxu0 0.0
        %4111 = vmatprep.subr.mxu0 0.0
        %4112 = vmatpush1.msra.mxu0 0.0
        %4113 = vmatprep.subr.mxu0 0.0
        %4114 = vmatpush1.msra.mxu0 0.0
        %4115 = vmatprep.subr.mxu0 0.0
        %4116 = vmatpush1.msra.mxu0 0.0
        %4117 = vmatprep.subr.mxu0 0.0
        %4118 = vmatpush1.msra.mxu0 0.0
        %4119 = vmatprep.subr.mxu0 0.0
        %4120 = vmatpush1.msra.mxu0 0.0
        %4121 = vmatprep.subr.mxu0 0.0
        %4122 = vmatpush1.msra.mxu0 0.0
        %4123 = vmatprep.subr.mxu0 0.0
        %4124 = vmatpush1.msra.mxu0 0.0
        %4125 = vmatprep.subr.mxu0 0.0
        %4126 = vmatpush1.msra.mxu0 0.0
        %4127 = vmatprep.subr.mxu0 0.0
        %4128 = vmatpush1.msra.mxu0 0.0
        %4129 = vmatprep.subr.mxu0 0.0
        %4130 = vmatpush1.msra.mxu0 0.0
        %4131 = vmatprep.subr.mxu0 0.0
        %4132 = vmatpush1.msra.mxu0 0.0
        %4133 = vmatprep.subr.mxu0 0.0
        %4134 = vmatpush1.msra.mxu0 0.0
        %4135 = vmatprep.subr.mxu0 0.0
        %4136 = vmatpush1.msra.mxu0 0.0
        %4137 = vmatprep.subr.mxu0 %v4107
        %4138 = vmatpush1.msra.mxu0 %v4104
        %4139 = vmatprep.subr.mxu0 %v4095
        %4140 = vmatpush1.msra.mxu0 %v4094
        %4141 = vmatprep.subr.mxu0 0.0
        %4142 = vmatpush2.msra.mxu0 0.0
        %4143 = vmatprep.subr.mxu0 0.0
        %4144 = vmatpush2.msra.mxu0 0.0
        %4145 = vmatprep.subr.mxu0 0.0
        %4146 = vmatpush2.msra.mxu0 0.0
        %4147 = vmatprep.subr.mxu0 0.0
        %4148 = vmatpush2.msra.mxu0 0.0
        %4149 = vmatprep.subr.mxu0 0.0
        %4150 = vmatpush2.msra.mxu0 0.0
        %4151 = vmatprep.subr.mxu0 0.0
        %4152 = vmatpush2.msra.mxu0 0.0
        %4153 = vmatprep.subr.mxu0 0.0
        %4154 = vmatpush2.msra.mxu0 0.0
        %4155 = vmatprep.subr.mxu0 0.0
        %4156 = vmatpush2.msra.mxu0 0.0
        %4157 = vmatprep.subr.mxu0 0.0
        %4158 = vmatpush2.msra.mxu0 0.0
        %4159 = vmatprep.subr.mxu0 0.0
        %4160 = vmatpush2.msra.mxu0 0.0
        %4161 = vmatprep.subr.mxu0 0.0
        %4162 = vmatpush2.msra.mxu0 0.0
        %4163 = vmatprep.subr.mxu0 0.0
        %4164 = vmatpush2.msra.mxu0 0.0
        %4165 = vmatprep.subr.mxu0 0.0
        %4166 = vmatpush2.msra.mxu0 0.0
        %4167 = vmatprep.subr.mxu0 0.0
        %4168 = vmatpush2.msra.mxu0 0.0
        %4169 = vmatprep.subr.mxu0 0.0
        %4170 = vmatpush2.msra.mxu0 0.0
        %4171 = vmatprep.subr.mxu0 0.0
        %4172 = vmatpush2.msra.mxu0 0.0
        %4173 = vmatprep.mubr.f32.mxu0 0.0
        %4174 = vmatmul.mubr.f32.gmra.mxu0 %v4101
        %v4175 = vpop.f32.mrf.mxu0
        %v4176 = vadd.f32 0.0, %v4175
        %v4177 = vpop.f32.mrf.mxu0
        %v4178 = vadd.f32 0.0, %v4177
        %4179 = vdwg.mxu0
        %s4180 = scalar_lea.vmem %s8, 8
        %v4181 = vld [vmem:[%s4180] sm:$0x3f]
        %v4183 = vsel %vm4099, %v4181, 0
        %4185 = vmatprep.subr.mxu0 0.0
        %4186 = vmatpush1.msra.mxu0 0.0
        %4187 = vmatprep.subr.mxu0 0.0
        %4188 = vmatpush1.msra.mxu0 0.0
        %4189 = vmatprep.subr.mxu0 0.0
        %4190 = vmatpush1.msra.mxu0 0.0
        %4191 = vmatprep.subr.mxu0 0.0
        %4192 = vmatpush1.msra.mxu0 0.0
        %4193 = vmatprep.subr.mxu0 0.0
        %4194 = vmatpush1.msra.mxu0 0.0
        %4195 = vmatprep.subr.mxu0 0.0
        %4196 = vmatpush1.msra.mxu0 0.0
        %4197 = vmatprep.subr.mxu0 0.0
        %4198 = vmatpush1.msra.mxu0 0.0
        %4199 = vmatprep.subr.mxu0 0.0
        %4200 = vmatpush1.msra.mxu0 0.0
        %4201 = vmatprep.subr.mxu0 0.0
        %4202 = vmatpush1.msra.mxu0 0.0
        %4203 = vmatprep.subr.mxu0 0.0
        %4204 = vmatpush1.msra.mxu0 0.0
        %4205 = vmatprep.subr.mxu0 0.0
        %4206 = vmatpush1.msra.mxu0 0.0
        %4207 = vmatprep.subr.mxu0 0.0
        %4208 = vmatpush1.msra.mxu0 0.0
        %4209 = vmatprep.subr.mxu0 0.0
        %4210 = vmatpush1.msra.mxu0 0.0
        %4211 = vmatprep.subr.mxu0 0.0
        %4212 = vmatpush1.msra.mxu0 0.0
        %4213 = vmatprep.subr.mxu0 %v4107
        %4214 = vmatpush1.msra.mxu0 %v4104
        %4215 = vmatprep.subr.mxu0 %v4095
        %4216 = vmatpush1.msra.mxu0 %v4094
        %4217 = vmatprep.subr.mxu0 0.0
        %4218 = vmatpush2.msra.mxu0 0.0
        %4219 = vmatprep.subr.mxu0 0.0
        %4220 = vmatpush2.msra.mxu0 0.0
        %4221 = vmatprep.subr.mxu0 0.0
        %4222 = vmatpush2.msra.mxu0 0.0
        %4223 = vmatprep.subr.mxu0 0.0
        %4224 = vmatpush2.msra.mxu0 0.0
        %4225 = vmatprep.subr.mxu0 0.0
        %4226 = vmatpush2.msra.mxu0 0.0
        %4227 = vmatprep.subr.mxu0 0.0
        %4228 = vmatpush2.msra.mxu0 0.0
        %4229 = vmatprep.subr.mxu0 0.0
        %4230 = vmatpush2.msra.mxu0 0.0
        %4231 = vmatprep.subr.mxu0 0.0
        %4232 = vmatpush2.msra.mxu0 0.0
        %4233 = vmatprep.subr.mxu0 0.0
        %4234 = vmatpush2.msra.mxu0 0.0
        %4235 = vmatprep.subr.mxu0 0.0
        %4236 = vmatpush2.msra.mxu0 0.0
        %4237 = vmatprep.subr.mxu0 0.0
        %4238 = vmatpush2.msra.mxu0 0.0
        %4239 = vmatprep.subr.mxu0 0.0
        %4240 = vmatpush2.msra.mxu0 0.0
        %4241 = vmatprep.subr.mxu0 0.0
        %4242 = vmatpush2.msra.mxu0 0.0
        %4243 = vmatprep.subr.mxu0 0.0
        %4244 = vmatpush2.msra.mxu0 0.0
        %4245 = vmatprep.subr.mxu0 0.0
        %4246 = vmatpush2.msra.mxu0 0.0
        %4247 = vmatprep.subr.mxu0 0.0
        %4248 = vmatpush2.msra.mxu0 0.0
        %4249 = vmatprep.mubr.f32.mxu0 0.0
        %4250 = vmatmul.mubr.f32.gmra.mxu0 %v4183
        %v4251 = vpop.f32.mrf.mxu0
        %v4252 = vadd.f32 0.0, %v4251
        %v4253 = vpop.f32.mrf.mxu0
        %v4254 = vadd.f32 0.0, %v4253
        %4255 = vdwg.mxu0
        %v4256 = vmax.f32 %v4176, %v4252
        %v4257 = vmax.f32 %v4178, %v4254
        %v4260 = vrot.slane %v4256, 7
        %v4261 = vrot.slane %v4257, 7
        %4264 = vst [vmem:[#allocation3] sm:$0x7e] %v4260
        %vm4265 = vcmask 522241
        %4266 = vst.msk [vmem:[#allocation3 + $0x8] sm:$0x7e] %vm4265, %v4261
        %v4267 = vld [vmem:[#allocation3] sm:$0xf]
        %v4268 = vld [vmem:[#allocation3 + $0x8] sm:$0xf]
        %v4269 = vld [vmem:[%s9] sm:$0xff]
        %v4270 = vld [vmem:[%s9 + $0x8] sm:$0xff]
        %v4271 = vld [vmem:[%s9 + $0x10] sm:$0xff]
        %v4272 = vld [vmem:[%s9 + $0x18] sm:$0xff]
        %v4273 = vld [vmem:[%s9 + $0x20] sm:$0xff]
        %v4274 = vld [vmem:[%s9 + $0x28] sm:$0xff]
        %v4275 = vld [vmem:[%s9 + $0x30] sm:$0xff]
        %v4276 = vld [vmem:[%s9 + $0x38] sm:$0xff]
        %v4277 = vld [vmem:[%s9 + $0x40] sm:$0xff]
        %v4278 = vld [vmem:[%s9 + $0x48] sm:$0xff]
        %v4279 = vld [vmem:[%s9 + $0x50] sm:$0xff]
        %v4280 = vld [vmem:[%s9 + $0x58] sm:$0xff]
        %v4281 = vld [vmem:[%s9 + $0x60] sm:$0xff]
        %v4282 = vld [vmem:[%s9 + $0x68] sm:$0xff]
        %v4283 = vld [vmem:[%s9 + $0x70] sm:$0xff]
        %v4284 = vld [vmem:[%s9 + $0x78] sm:$0xff]
        %v4285 = vld [vmem:[%s9 + $0x80] sm:$0xff]
        %v4286 = vld [vmem:[%s9 + $0x88] sm:$0xff]
        %v4287 = vld [vmem:[%s9 + $0x90] sm:$0xff]
        %v4288 = vld [vmem:[%s9 + $0x98] sm:$0xff]
        %v4289 = vld [vmem:[%s9 + $0xa0] sm:$0xff]
        %v4290 = vld [vmem:[%s9 + $0xa8] sm:$0xff]
        %v4291 = vld [vmem:[%s9 + $0xb0] sm:$0xff]
        %v4292 = vld [vmem:[%s9 + $0xb8] sm:$0xff]
        %v4293 = vld [vmem:[#allocation3] sm:$0x1e]
        %v4294 = vld [vmem:[#allocation3 + $0x8] sm:$0x1e]
        %s4295 = scalar_lea.vmem %s9, 192
        %v4296 = vld [vmem:[%s4295] sm:$0xff]
        %v4297 = vld [vmem:[%s4295 + $0x8] sm:$0xff]
        %v4298 = vld [vmem:[%s4295 + $0x10] sm:$0xff]
        %v4299 = vld [vmem:[%s4295 + $0x18] sm:$0xff]
        %v4300 = vld [vmem:[%s4295 + $0x20] sm:$0xff]
        %v4301 = vld [vmem:[%s4295 + $0x28] sm:$0xff]
        %v4302 = vld [vmem:[%s4295 + $0x30] sm:$0xff]
        %v4303 = vld [vmem:[%s4295 + $0x38] sm:$0xff]
        %v4304 = vld [vmem:[%s4295 + $0x40] sm:$0xff]
        %v4305 = vld [vmem:[%s4295 + $0x48] sm:$0xff]
        %v4306 = vld [vmem:[%s4295 + $0x50] sm:$0xff]
        %v4307 = vld [vmem:[%s4295 + $0x58] sm:$0xff]
        %v4308 = vld [vmem:[%s4295 + $0x60] sm:$0xff]
        %v4309 = vld [vmem:[%s4295 + $0x68] sm:$0xff]
        %v4310 = vld [vmem:[%s4295 + $0x70] sm:$0xff]
        %v4311 = vld [vmem:[%s4295 + $0x78] sm:$0xff]
        %v4312 = vld [vmem:[%s4295 + $0x80] sm:$0xff]
        %v4313 = vld [vmem:[%s4295 + $0x88] sm:$0xff]
        %v4314 = vld [vmem:[%s4295 + $0x90] sm:$0xff]
        %v4315 = vld [vmem:[%s4295 + $0x98] sm:$0xff]
        %v4316 = vld [vmem:[%s4295 + $0xa0] sm:$0xff]
        %v4317 = vld [vmem:[%s4295 + $0xa8] sm:$0xff]
        %v4318 = vld [vmem:[%s4295 + $0xb0] sm:$0xff]
        %v4319 = vld [vmem:[%s4295 + $0xb8] sm:$0xff]
        %v4322 = vrot.slane %v4293, 1
        %v4323 = vrot.slane %v4294, 1
        %v4325 = vsel %vm1595, %v4323, 0
        %4327 = vmatprep.subr.mxu0 0.0
        %4328 = vmatpush1.msra.mxu0 %v4311
        %4329 = vmatprep.subr.mxu0 0.0
        %4330 = vmatpush1.msra.mxu0 %v4310
        %4331 = vmatprep.subr.mxu0 0.0
        %4332 = vmatpush1.msra.mxu0 %v4309
        %4333 = vmatprep.subr.mxu0 0.0
        %4334 = vmatpush1.msra.mxu0 %v4308
        %4335 = vmatprep.subr.mxu0 0.0
        %4336 = vmatpush1.msra.mxu0 %v4307
        %4337 = vmatprep.subr.mxu0 0.0
        %4338 = vmatpush1.msra.mxu0 %v4306
        %4339 = vmatprep.subr.mxu0 0.0
        %4340 = vmatpush1.msra.mxu0 %v4305
        %4341 = vmatprep.subr.mxu0 0.0
        %4342 = vmatpush1.msra.mxu0 %v4304
        %4343 = vmatprep.subr.mxu0 0.0
        %4344 = vmatpush1.msra.mxu0 %v4303
        %4345 = vmatprep.subr.mxu0 0.0
        %4346 = vmatpush1.msra.mxu0 %v4302
        %4347 = vmatprep.subr.mxu0 0.0
        %4348 = vmatpush1.msra.mxu0 %v4301
        %4349 = vmatprep.subr.mxu0 0.0
        %4350 = vmatpush1.msra.mxu0 %v4300
        %4351 = vmatprep.subr.mxu0 0.0
        %4352 = vmatpush1.msra.mxu0 %v4299
        %4353 = vmatprep.subr.mxu0 0.0
        %4354 = vmatpush1.msra.mxu0 %v4298
        %4355 = vmatprep.subr.mxu0 0.0
        %4356 = vmatpush1.msra.mxu0 %v4297
        %4357 = vmatprep.subr.mxu0 0.0
        %4358 = vmatpush1.msra.mxu0 %v4296
        %4359 = vmatprep.subr.mxu0 0.0
        %4360 = vmatpush2.msra.mxu0 0.0
        %4361 = vmatprep.subr.mxu0 0.0
        %4362 = vmatpush2.msra.mxu0 0.0
        %4363 = vmatprep.subr.mxu0 0.0
        %4364 = vmatpush2.msra.mxu0 0.0
        %4365 = vmatprep.subr.mxu0 0.0
        %4366 = vmatpush2.msra.mxu0 0.0
        %4367 = vmatprep.subr.mxu0 0.0
        %4368 = vmatpush2.msra.mxu0 0.0
        %4369 = vmatprep.subr.mxu0 0.0
        %4370 = vmatpush2.msra.mxu0 0.0
        %4371 = vmatprep.subr.mxu0 0.0
        %4372 = vmatpush2.msra.mxu0 0.0
        %4373 = vmatprep.subr.mxu0 0.0
        %4374 = vmatpush2.msra.mxu0 0.0
        %4375 = vmatprep.subr.mxu0 0.0
        %4376 = vmatpush2.msra.mxu0 %v4319
        %4377 = vmatprep.subr.mxu0 0.0
        %4378 = vmatpush2.msra.mxu0 %v4318
        %4379 = vmatprep.subr.mxu0 0.0
        %4380 = vmatpush2.msra.mxu0 %v4317
        %4381 = vmatprep.subr.mxu0 0.0
        %4382 = vmatpush2.msra.mxu0 %v4316
        %4383 = vmatprep.subr.mxu0 0.0
        %4384 = vmatpush2.msra.mxu0 %v4315
        %4385 = vmatprep.subr.mxu0 0.0
        %4386 = vmatpush2.msra.mxu0 %v4314
        %4387 = vmatprep.subr.mxu0 0.0
        %4388 = vmatpush2.msra.mxu0 %v4313
        %4389 = vmatprep.subr.mxu0 0.0
        %4390 = vmatpush2.msra.mxu0 %v4312
        %4391 = vmatprep.mubr.f32.mxu0 %v4325
        %4392 = vmatmul.mubr.f32.gmra.mxu0 %v4322
        %v4393 = vpop.f32.mrf.mxu0
        %v4394 = vadd.f32 0.0, %v4393
        %v4395 = vpop.f32.mrf.mxu0
        %4396 = vdwg.mxu0
        %v4398 = vsel %vm1595, %v4268, 0
        %4400 = vmatprep.subr.mxu0 0.0
        %4401 = vmatpush1.msra.mxu0 %v4284
        %4402 = vmatprep.subr.mxu0 0.0
        %4403 = vmatpush1.msra.mxu0 %v4283
        %4404 = vmatprep.subr.mxu0 0.0
        %4405 = vmatpush1.msra.mxu0 %v4282
        %4406 = vmatprep.subr.mxu0 0.0
        %4407 = vmatpush1.msra.mxu0 %v4281
        %4408 = vmatprep.subr.mxu0 0.0
        %4409 = vmatpush1.msra.mxu0 %v4280
        %4410 = vmatprep.subr.mxu0 0.0
        %4411 = vmatpush1.msra.mxu0 %v4279
        %4412 = vmatprep.subr.mxu0 0.0
        %4413 = vmatpush1.msra.mxu0 %v4278
        %4414 = vmatprep.subr.mxu0 0.0
        %4415 = vmatpush1.msra.mxu0 %v4277
        %4416 = vmatprep.subr.mxu0 0.0
        %4417 = vmatpush1.msra.mxu0 %v4276
        %4418 = vmatprep.subr.mxu0 0.0
        %4419 = vmatpush1.msra.mxu0 %v4275
        %4420 = vmatprep.subr.mxu0 0.0
        %4421 = vmatpush1.msra.mxu0 %v4274
        %4422 = vmatprep.subr.mxu0 0.0
        %4423 = vmatpush1.msra.mxu0 %v4273
        %4424 = vmatprep.subr.mxu0 0.0
        %4425 = vmatpush1.msra.mxu0 %v4272
        %4426 = vmatprep.subr.mxu0 0.0
        %4427 = vmatpush1.msra.mxu0 %v4271
        %4428 = vmatprep.subr.mxu0 0.0
        %4429 = vmatpush1.msra.mxu0 %v4270
        %4430 = vmatprep.subr.mxu0 0.0
        %4431 = vmatpush1.msra.mxu0 %v4269
        %4432 = vmatprep.subr.mxu0 0.0
        %4433 = vmatpush2.msra.mxu0 0.0
        %4434 = vmatprep.subr.mxu0 0.0
        %4435 = vmatpush2.msra.mxu0 0.0
        %4436 = vmatprep.subr.mxu0 0.0
        %4437 = vmatpush2.msra.mxu0 0.0
        %4438 = vmatprep.subr.mxu0 0.0
        %4439 = vmatpush2.msra.mxu0 0.0
        %4440 = vmatprep.subr.mxu0 0.0
        %4441 = vmatpush2.msra.mxu0 0.0
        %4442 = vmatprep.subr.mxu0 0.0
        %4443 = vmatpush2.msra.mxu0 0.0
        %4444 = vmatprep.subr.mxu0 0.0
        %4445 = vmatpush2.msra.mxu0 0.0
        %4446 = vmatprep.subr.mxu0 0.0
        %4447 = vmatpush2.msra.mxu0 0.0
        %4448 = vmatprep.subr.mxu0 0.0
        %4449 = vmatpush2.msra.mxu0 %v4292
        %4450 = vmatprep.subr.mxu0 0.0
        %4451 = vmatpush2.msra.mxu0 %v4291
        %4452 = vmatprep.subr.mxu0 0.0
        %4453 = vmatpush2.msra.mxu0 %v4290
        %4454 = vmatprep.subr.mxu0 0.0
        %4455 = vmatpush2.msra.mxu0 %v4289
        %4456 = vmatprep.subr.mxu0 0.0
        %4457 = vmatpush2.msra.mxu0 %v4288
        %4458 = vmatprep.subr.mxu0 0.0
        %4459 = vmatpush2.msra.mxu0 %v4287
        %4460 = vmatprep.subr.mxu0 0.0
        %4461 = vmatpush2.msra.mxu0 %v4286
        %4462 = vmatprep.subr.mxu0 0.0
        %4463 = vmatpush2.msra.mxu0 %v4285
        %4464 = vmatprep.mubr.f32.mxu0 %v4398
        %4465 = vmatmul.mubr.f32.gmra.mxu0 %v4267
        %v4466 = vpop.f32.mrf.mxu0
        %v4467 = vadd.f32 %v4394, %v4466
        %v4468 = vpop.f32.mrf.mxu0
        %4469 = vdwg.mxu0
        %v4470 = vld [vmem:[#allocation3] sm:$0x3c]
        %v4471 = vld [vmem:[#allocation3 + $0x8] sm:$0x3c]
        %s4472 = scalar_lea.vmem %s9, 384
        %v4473 = vld [vmem:[%s4472] sm:$0xff]
        %v4474 = vld [vmem:[%s4472 + $0x8] sm:$0xff]
        %v4475 = vld [vmem:[%s4472 + $0x10] sm:$0xff]
        %v4476 = vld [vmem:[%s4472 + $0x18] sm:$0xff]
        %v4477 = vld [vmem:[%s4472 + $0x20] sm:$0xff]
        %v4478 = vld [vmem:[%s4472 + $0x28] sm:$0xff]
        %v4479 = vld [vmem:[%s4472 + $0x30] sm:$0xff]
        %v4480 = vld [vmem:[%s4472 + $0x38] sm:$0xff]
        %v4481 = vld [vmem:[%s4472 + $0x40] sm:$0xff]
        %v4482 = vld [vmem:[%s4472 + $0x48] sm:$0xff]
        %v4483 = vld [vmem:[%s4472 + $0x50] sm:$0xff]
        %v4484 = vld [vmem:[%s4472 + $0x58] sm:$0xff]
        %v4485 = vld [vmem:[%s4472 + $0x60] sm:$0xff]
        %v4486 = vld [vmem:[%s4472 + $0x68] sm:$0xff]
        %v4487 = vld [vmem:[%s4472 + $0x70] sm:$0xff]
        %v4488 = vld [vmem:[%s4472 + $0x78] sm:$0xff]
        %v4489 = vld [vmem:[%s4472 + $0x80] sm:$0xff]
        %v4490 = vld [vmem:[%s4472 + $0x88] sm:$0xff]
        %v4491 = vld [vmem:[%s4472 + $0x90] sm:$0xff]
        %v4492 = vld [vmem:[%s4472 + $0x98] sm:$0xff]
        %v4493 = vld [vmem:[%s4472 + $0xa0] sm:$0xff]
        %v4494 = vld [vmem:[%s4472 + $0xa8] sm:$0xff]
        %v4495 = vld [vmem:[%s4472 + $0xb0] sm:$0xff]
        %v4496 = vld [vmem:[%s4472 + $0xb8] sm:$0xff]
        %v4499 = vrot.slane %v4470, 2
        %v4500 = vrot.slane %v4471, 2
        %v4502 = vsel %vm1595, %v4500, 0
        %4504 = vmatprep.subr.mxu0 0.0
        %4505 = vmatpush1.msra.mxu0 %v4488
        %4506 = vmatprep.subr.mxu0 0.0
        %4507 = vmatpush1.msra.mxu0 %v4487
        %4508 = vmatprep.subr.mxu0 0.0
        %4509 = vmatpush1.msra.mxu0 %v4486
        %4510 = vmatprep.subr.mxu0 0.0
        %4511 = vmatpush1.msra.mxu0 %v4485
        %4512 = vmatprep.subr.mxu0 0.0
        %4513 = vmatpush1.msra.mxu0 %v4484
        %4514 = vmatprep.subr.mxu0 0.0
        %4515 = vmatpush1.msra.mxu0 %v4483
        %4516 = vmatprep.subr.mxu0 0.0
        %4517 = vmatpush1.msra.mxu0 %v4482
        %4518 = vmatprep.subr.mxu0 0.0
        %4519 = vmatpush1.msra.mxu0 %v4481
        %4520 = vmatprep.subr.mxu0 0.0
        %4521 = vmatpush1.msra.mxu0 %v4480
        %4522 = vmatprep.subr.mxu0 0.0
        %4523 = vmatpush1.msra.mxu0 %v4479
        %4524 = vmatprep.subr.mxu0 0.0
        %4525 = vmatpush1.msra.mxu0 %v4478
        %4526 = vmatprep.subr.mxu0 0.0
        %4527 = vmatpush1.msra.mxu0 %v4477
        %4528 = vmatprep.subr.mxu0 0.0
        %4529 = vmatpush1.msra.mxu0 %v4476
        %4530 = vmatprep.subr.mxu0 0.0
        %4531 = vmatpush1.msra.mxu0 %v4475
        %4532 = vmatprep.subr.mxu0 0.0
        %4533 = vmatpush1.msra.mxu0 %v4474
        %4534 = vmatprep.subr.mxu0 0.0
        %4535 = vmatpush1.msra.mxu0 %v4473
        %4536 = vmatprep.subr.mxu0 0.0
        %4537 = vmatpush2.msra.mxu0 0.0
        %4538 = vmatprep.subr.mxu0 0.0
        %4539 = vmatpush2.msra.mxu0 0.0
        %4540 = vmatprep.subr.mxu0 0.0
        %4541 = vmatpush2.msra.mxu0 0.0
        %4542 = vmatprep.subr.mxu0 0.0
        %4543 = vmatpush2.msra.mxu0 0.0
        %4544 = vmatprep.subr.mxu0 0.0
        %4545 = vmatpush2.msra.mxu0 0.0
        %4546 = vmatprep.subr.mxu0 0.0
        %4547 = vmatpush2.msra.mxu0 0.0
        %4548 = vmatprep.subr.mxu0 0.0
        %4549 = vmatpush2.msra.mxu0 0.0
        %4550 = vmatprep.subr.mxu0 0.0
        %4551 = vmatpush2.msra.mxu0 0.0
        %4552 = vmatprep.subr.mxu0 0.0
        %4553 = vmatpush2.msra.mxu0 %v4496
        %4554 = vmatprep.subr.mxu0 0.0
        %4555 = vmatpush2.msra.mxu0 %v4495
        %4556 = vmatprep.subr.mxu0 0.0
        %4557 = vmatpush2.msra.mxu0 %v4494
        %4558 = vmatprep.subr.mxu0 0.0
        %4559 = vmatpush2.msra.mxu0 %v4493
        %4560 = vmatprep.subr.mxu0 0.0
        %4561 = vmatpush2.msra.mxu0 %v4492
        %4562 = vmatprep.subr.mxu0 0.0
        %4563 = vmatpush2.msra.mxu0 %v4491
        %4564 = vmatprep.subr.mxu0 0.0
        %4565 = vmatpush2.msra.mxu0 %v4490
        %4566 = vmatprep.subr.mxu0 0.0
        %4567 = vmatpush2.msra.mxu0 %v4489
        %4568 = vmatprep.mubr.f32.mxu0 %v4502
        %4569 = vmatmul.mubr.f32.gmra.mxu0 %v4499
        %v4570 = vpop.f32.mrf.mxu0
        %v4571 = vadd.f32 0.0, %v4570
        %v4572 = vpop.f32.mrf.mxu0
        %4573 = vdwg.mxu0
        %v4574 = vadd.f32 %v4467, %v4571
        %v4575 = vld [vmem:[#allocation3] sm:$0x78]
        %v4576 = vld [vmem:[#allocation3 + $0x8] sm:$0x78]
        %s4577 = scalar_lea.vmem %s9, 576
        %v4578 = vld [vmem:[%s4577] sm:$0xff]
        %v4579 = vld [vmem:[%s4577 + $0x8] sm:$0xff]
        %v4580 = vld [vmem:[%s4577 + $0x10] sm:$0xff]
        %v4581 = vld [vmem:[%s4577 + $0x18] sm:$0xff]
        %v4582 = vld [vmem:[%s4577 + $0x20] sm:$0xff]
        %v4583 = vld [vmem:[%s4577 + $0x28] sm:$0xff]
        %v4584 = vld [vmem:[%s4577 + $0x30] sm:$0xff]
        %v4585 = vld [vmem:[%s4577 + $0x38] sm:$0xff]
        %v4586 = vld [vmem:[%s4577 + $0x40] sm:$0xff]
        %v4587 = vld [vmem:[%s4577 + $0x48] sm:$0xff]
        %v4588 = vld [vmem:[%s4577 + $0x50] sm:$0xff]
        %v4589 = vld [vmem:[%s4577 + $0x58] sm:$0xff]
        %v4590 = vld [vmem:[%s4577 + $0x60] sm:$0xff]
        %v4591 = vld [vmem:[%s4577 + $0x68] sm:$0xff]
        %v4592 = vld [vmem:[%s4577 + $0x70] sm:$0xff]
        %v4593 = vld [vmem:[%s4577 + $0x78] sm:$0xff]
        %v4594 = vld [vmem:[%s4577 + $0x80] sm:$0xff]
        %v4595 = vld [vmem:[%s4577 + $0x88] sm:$0xff]
        %v4596 = vld [vmem:[%s4577 + $0x90] sm:$0xff]
        %v4597 = vld [vmem:[%s4577 + $0x98] sm:$0xff]
        %v4598 = vld [vmem:[%s4577 + $0xa0] sm:$0xff]
        %v4599 = vld [vmem:[%s4577 + $0xa8] sm:$0xff]
        %v4600 = vld [vmem:[%s4577 + $0xb0] sm:$0xff]
        %v4601 = vld [vmem:[%s4577 + $0xb8] sm:$0xff]
        %v4604 = vrot.slane %v4575, 3
        %v4605 = vrot.slane %v4576, 3
        %v4607 = vsel %vm1595, %v4605, 0
        %4609 = vmatprep.subr.mxu0 0.0
        %4610 = vmatpush1.msra.mxu0 %v4593
        %4611 = vmatprep.subr.mxu0 0.0
        %4612 = vmatpush1.msra.mxu0 %v4592
        %4613 = vmatprep.subr.mxu0 0.0
        %4614 = vmatpush1.msra.mxu0 %v4591
        %4615 = vmatprep.subr.mxu0 0.0
        %4616 = vmatpush1.msra.mxu0 %v4590
        %4617 = vmatprep.subr.mxu0 0.0
        %4618 = vmatpush1.msra.mxu0 %v4589
        %4619 = vmatprep.subr.mxu0 0.0
        %4620 = vmatpush1.msra.mxu0 %v4588
        %4621 = vmatprep.subr.mxu0 0.0
        %4622 = vmatpush1.msra.mxu0 %v4587
        %4623 = vmatprep.subr.mxu0 0.0
        %4624 = vmatpush1.msra.mxu0 %v4586
        %4625 = vmatprep.subr.mxu0 0.0
        %4626 = vmatpush1.msra.mxu0 %v4585
        %4627 = vmatprep.subr.mxu0 0.0
        %4628 = vmatpush1.msra.mxu0 %v4584
        %4629 = vmatprep.subr.mxu0 0.0
        %4630 = vmatpush1.msra.mxu0 %v4583
        %4631 = vmatprep.subr.mxu0 0.0
        %4632 = vmatpush1.msra.mxu0 %v4582
        %4633 = vmatprep.subr.mxu0 0.0
        %4634 = vmatpush1.msra.mxu0 %v4581
        %4635 = vmatprep.subr.mxu0 0.0
        %4636 = vmatpush1.msra.mxu0 %v4580
        %4637 = vmatprep.subr.mxu0 0.0
        %4638 = vmatpush1.msra.mxu0 %v4579
        %4639 = vmatprep.subr.mxu0 0.0
        %4640 = vmatpush1.msra.mxu0 %v4578
        %4641 = vmatprep.subr.mxu0 0.0
        %4642 = vmatpush2.msra.mxu0 0.0
        %4643 = vmatprep.subr.mxu0 0.0
        %4644 = vmatpush2.msra.mxu0 0.0
        %4645 = vmatprep.subr.mxu0 0.0
        %4646 = vmatpush2.msra.mxu0 0.0
        %4647 = vmatprep.subr.mxu0 0.0
        %4648 = vmatpush2.msra.mxu0 0.0
        %4649 = vmatprep.subr.mxu0 0.0
        %4650 = vmatpush2.msra.mxu0 0.0
        %4651 = vmatprep.subr.mxu0 0.0
        %4652 = vmatpush2.msra.mxu0 0.0
        %4653 = vmatprep.subr.mxu0 0.0
        %4654 = vmatpush2.msra.mxu0 0.0
        %4655 = vmatprep.subr.mxu0 0.0
        %4656 = vmatpush2.msra.mxu0 0.0
        %4657 = vmatprep.subr.mxu0 0.0
        %4658 = vmatpush2.msra.mxu0 %v4601
        %4659 = vmatprep.subr.mxu0 0.0
        %4660 = vmatpush2.msra.mxu0 %v4600
        %4661 = vmatprep.subr.mxu0 0.0
        %4662 = vmatpush2.msra.mxu0 %v4599
        %4663 = vmatprep.subr.mxu0 0.0
        %4664 = vmatpush2.msra.mxu0 %v4598
        %4665 = vmatprep.subr.mxu0 0.0
        %4666 = vmatpush2.msra.mxu0 %v4597
        %4667 = vmatprep.subr.mxu0 0.0
        %4668 = vmatpush2.msra.mxu0 %v4596
        %4669 = vmatprep.subr.mxu0 0.0
        %4670 = vmatpush2.msra.mxu0 %v4595
        %4671 = vmatprep.subr.mxu0 0.0
        %4672 = vmatpush2.msra.mxu0 %v4594
        %4673 = vmatprep.mubr.f32.mxu0 %v4607
        %4674 = vmatmul.mubr.f32.gmra.mxu0 %v4604
        %v4675 = vpop.f32.mrf.mxu0
        %v4676 = vadd.f32 0.0, %v4675
        %v4677 = vpop.f32.mrf.mxu0
        %4678 = vdwg.mxu0
        %v4679 = vadd.f32 %v4574, %v4676
        %v4680 = vld [vmem:[#allocation3] sm:$0xf0]
        %v4681 = vld [vmem:[#allocation3 + $0x8] sm:$0xf0]
        %s4682 = scalar_lea.vmem %s9, 768
        %v4683 = vld [vmem:[%s4682] sm:$0xff]
        %v4684 = vld [vmem:[%s4682 + $0x8] sm:$0xff]
        %v4685 = vld [vmem:[%s4682 + $0x10] sm:$0xff]
        %v4686 = vld [vmem:[%s4682 + $0x18] sm:$0xff]
        %v4687 = vld [vmem:[%s4682 + $0x20] sm:$0xff]
        %v4688 = vld [vmem:[%s4682 + $0x28] sm:$0xff]
        %v4689 = vld [vmem:[%s4682 + $0x30] sm:$0xff]
        %v4690 = vld [vmem:[%s4682 + $0x38] sm:$0xff]
        %v4691 = vld [vmem:[%s4682 + $0x40] sm:$0xff]
        %v4692 = vld [vmem:[%s4682 + $0x48] sm:$0xff]
        %v4693 = vld [vmem:[%s4682 + $0x50] sm:$0xff]
        %v4694 = vld [vmem:[%s4682 + $0x58] sm:$0xff]
        %v4695 = vld [vmem:[%s4682 + $0x60] sm:$0xff]
        %v4696 = vld [vmem:[%s4682 + $0x68] sm:$0xff]
        %v4697 = vld [vmem:[%s4682 + $0x70] sm:$0xff]
        %v4698 = vld [vmem:[%s4682 + $0x78] sm:$0xff]
        %v4699 = vld [vmem:[%s4682 + $0x80] sm:$0xff]
        %v4700 = vld [vmem:[%s4682 + $0x88] sm:$0xff]
        %v4701 = vld [vmem:[%s4682 + $0x90] sm:$0xff]
        %v4702 = vld [vmem:[%s4682 + $0x98] sm:$0xff]
        %v4703 = vld [vmem:[%s4682 + $0xa0] sm:$0xff]
        %v4704 = vld [vmem:[%s4682 + $0xa8] sm:$0xff]
        %v4705 = vld [vmem:[%s4682 + $0xb0] sm:$0xff]
        %v4706 = vld [vmem:[%s4682 + $0xb8] sm:$0xff]
        %v4709 = vrot.slane %v4680, 4
        %v4710 = vrot.slane %v4681, 4
        %v4712 = vsel %vm1595, %v4710, 0
        %4714 = vmatprep.subr.mxu0 0.0
        %4715 = vmatpush1.msra.mxu0 %v4698
        %4716 = vmatprep.subr.mxu0 0.0
        %4717 = vmatpush1.msra.mxu0 %v4697
        %4718 = vmatprep.subr.mxu0 0.0
        %4719 = vmatpush1.msra.mxu0 %v4696
        %4720 = vmatprep.subr.mxu0 0.0
        %4721 = vmatpush1.msra.mxu0 %v4695
        %4722 = vmatprep.subr.mxu0 0.0
        %4723 = vmatpush1.msra.mxu0 %v4694
        %4724 = vmatprep.subr.mxu0 0.0
        %4725 = vmatpush1.msra.mxu0 %v4693
        %4726 = vmatprep.subr.mxu0 0.0
        %4727 = vmatpush1.msra.mxu0 %v4692
        %4728 = vmatprep.subr.mxu0 0.0
        %4729 = vmatpush1.msra.mxu0 %v4691
        %4730 = vmatprep.subr.mxu0 0.0
        %4731 = vmatpush1.msra.mxu0 %v4690
        %4732 = vmatprep.subr.mxu0 0.0
        %4733 = vmatpush1.msra.mxu0 %v4689
        %4734 = vmatprep.subr.mxu0 0.0
        %4735 = vmatpush1.msra.mxu0 %v4688
        %4736 = vmatprep.subr.mxu0 0.0
        %4737 = vmatpush1.msra.mxu0 %v4687
        %4738 = vmatprep.subr.mxu0 0.0
        %4739 = vmatpush1.msra.mxu0 %v4686
        %4740 = vmatprep.subr.mxu0 0.0
        %4741 = vmatpush1.msra.mxu0 %v4685
        %4742 = vmatprep.subr.mxu0 0.0
        %4743 = vmatpush1.msra.mxu0 %v4684
        %4744 = vmatprep.subr.mxu0 0.0
        %4745 = vmatpush1.msra.mxu0 %v4683
        %4746 = vmatprep.subr.mxu0 0.0
        %4747 = vmatpush2.msra.mxu0 0.0
        %4748 = vmatprep.subr.mxu0 0.0
        %4749 = vmatpush2.msra.mxu0 0.0
        %4750 = vmatprep.subr.mxu0 0.0
        %4751 = vmatpush2.msra.mxu0 0.0
        %4752 = vmatprep.subr.mxu0 0.0
        %4753 = vmatpush2.msra.mxu0 0.0
        %4754 = vmatprep.subr.mxu0 0.0
        %4755 = vmatpush2.msra.mxu0 0.0
        %4756 = vmatprep.subr.mxu0 0.0
        %4757 = vmatpush2.msra.mxu0 0.0
        %4758 = vmatprep.subr.mxu0 0.0
        %4759 = vmatpush2.msra.mxu0 0.0
        %4760 = vmatprep.subr.mxu0 0.0
        %4761 = vmatpush2.msra.mxu0 0.0
        %4762 = vmatprep.subr.mxu0 0.0
        %4763 = vmatpush2.msra.mxu0 %v4706
        %4764 = vmatprep.subr.mxu0 0.0
        %4765 = vmatpush2.msra.mxu0 %v4705
        %4766 = vmatprep.subr.mxu0 0.0
        %4767 = vmatpush2.msra.mxu0 %v4704
        %4768 = vmatprep.subr.mxu0 0.0
        %4769 = vmatpush2.msra.mxu0 %v4703
        %4770 = vmatprep.subr.mxu0 0.0
        %4771 = vmatpush2.msra.mxu0 %v4702
        %4772 = vmatprep.subr.mxu0 0.0
        %4773 = vmatpush2.msra.mxu0 %v4701
        %4774 = vmatprep.subr.mxu0 0.0
        %4775 = vmatpush2.msra.mxu0 %v4700
        %4776 = vmatprep.subr.mxu0 0.0
        %4777 = vmatpush2.msra.mxu0 %v4699
        %4778 = vmatprep.mubr.f32.mxu0 %v4712
        %4779 = vmatmul.mubr.f32.gmra.mxu0 %v4709
        %v4780 = vpop.f32.mrf.mxu0
        %v4781 = vadd.f32 0.0, %v4780
        %v4782 = vpop.f32.mrf.mxu0
        %4783 = vdwg.mxu0
        %v4784 = vadd.f32 %v4679, %v4781
        %v4785 = vld [vmem:[%s10] sm:$0x1]
        %v4787 = vlaneseq
        %v4788 = vshrl.u32 %v4787, 7
        %v4789 = vsub.s32 0, %v4788
        %v4790 = vrot.slane %v4785, %v4789
        %v4792 = vadd.f32 %v4784, %v4790
        %v4793 = vmax.f32 %v4792, 0.0
        %v4794 = vld [vmem:[%s11] sm:$0xff]
        %v4795 = vld [vmem:[%s11 + $0x8] sm:$0xff]
        %v4796 = vld [vmem:[%s11 + $0x10] sm:$0xff]
        %v4797 = vld [vmem:[%s11 + $0x18] sm:$0xff]
        %v4798 = vld [vmem:[%s11 + $0x20] sm:$0xff]
        %v4799 = vld [vmem:[%s11 + $0x28] sm:$0xff]
        %s4800 = scalar_lea.vmem %s11, 48
        %v4801 = vld [vmem:[%s4800] sm:$0xff]
        %v4802 = vld [vmem:[%s4800 + $0x8] sm:$0xff]
        %v4803 = vld [vmem:[%s4800 + $0x10] sm:$0xff]
        %v4804 = vld [vmem:[%s4800 + $0x18] sm:$0xff]
        %v4805 = vld [vmem:[%s4800 + $0x20] sm:$0xff]
        %v4806 = vld [vmem:[%s4800 + $0x28] sm:$0xff]
        %v4808 = vrot.slane %v4793, 1
        %vm4809 = vcmask 392192
        %v4810 = vsel %vm4809, %v4808, 0
        %4812 = vmatprep.subr.mxu0 0.0
        %4813 = vmatpush1.msra.mxu0 0.0
        %4814 = vmatprep.subr.mxu0 0.0
        %4815 = vmatpush1.msra.mxu0 0.0
        %4816 = vmatprep.subr.mxu0 0.0
        %4817 = vmatpush1.msra.mxu0 0.0
        %4818 = vmatprep.subr.mxu0 0.0
        %4819 = vmatpush1.msra.mxu0 0.0
        %4820 = vmatprep.subr.mxu0 0.0
        %4821 = vmatpush1.msra.mxu0 0.0
        %4822 = vmatprep.subr.mxu0 0.0
        %4823 = vmatpush1.msra.mxu0 0.0
        %4824 = vmatprep.subr.mxu0 0.0
        %4825 = vmatpush1.msra.mxu0 0.0
        %4826 = vmatprep.subr.mxu0 0.0
        %4827 = vmatpush1.msra.mxu0 0.0
        %4828 = vmatprep.subr.mxu0 0.0
        %4829 = vmatpush1.msra.mxu0 0.0
        %4830 = vmatprep.subr.mxu0 0.0
        %4831 = vmatpush1.msra.mxu0 0.0
        %4832 = vmatprep.subr.mxu0 0.0
        %4833 = vmatpush1.msra.mxu0 %v4806
        %4834 = vmatprep.subr.mxu0 0.0
        %4835 = vmatpush1.msra.mxu0 %v4805
        %4836 = vmatprep.subr.mxu0 0.0
        %4837 = vmatpush1.msra.mxu0 %v4804
        %4838 = vmatprep.subr.mxu0 0.0
        %4839 = vmatpush1.msra.mxu0 %v4803
        %4840 = vmatprep.subr.mxu0 0.0
        %4841 = vmatpush1.msra.mxu0 %v4802
        %4842 = vmatprep.subr.mxu0 0.0
        %4843 = vmatpush1.msra.mxu0 %v4801
        %4844 = vmatprep.subr.mxu0 0.0
        %4845 = vmatpush2.msra.mxu0 0.0
        %4846 = vmatprep.subr.mxu0 0.0
        %4847 = vmatpush2.msra.mxu0 0.0
        %4848 = vmatprep.subr.mxu0 0.0
        %4849 = vmatpush2.msra.mxu0 0.0
        %4850 = vmatprep.subr.mxu0 0.0
        %4851 = vmatpush2.msra.mxu0 0.0
        %4852 = vmatprep.subr.mxu0 0.0
        %4853 = vmatpush2.msra.mxu0 0.0
        %4854 = vmatprep.subr.mxu0 0.0
        %4855 = vmatpush2.msra.mxu0 0.0
        %4856 = vmatprep.subr.mxu0 0.0
        %4857 = vmatpush2.msra.mxu0 0.0
        %4858 = vmatprep.subr.mxu0 0.0
        %4859 = vmatpush2.msra.mxu0 0.0
        %4860 = vmatprep.subr.mxu0 0.0
        %4861 = vmatpush2.msra.mxu0 0.0
        %4862 = vmatprep.subr.mxu0 0.0
        %4863 = vmatpush2.msra.mxu0 0.0
        %4864 = vmatprep.subr.mxu0 0.0
        %4865 = vmatpush2.msra.mxu0 0.0
        %4866 = vmatprep.subr.mxu0 0.0
        %4867 = vmatpush2.msra.mxu0 0.0
        %4868 = vmatprep.subr.mxu0 0.0
        %4869 = vmatpush2.msra.mxu0 0.0
        %4870 = vmatprep.subr.mxu0 0.0
        %4871 = vmatpush2.msra.mxu0 0.0
        %4872 = vmatprep.subr.mxu0 0.0
        %4873 = vmatpush2.msra.mxu0 0.0
        %4874 = vmatprep.subr.mxu0 0.0
        %4875 = vmatpush2.msra.mxu0 0.0
        %4876 = vmatprep.mubr.f32.mxu0 0.0
        %4877 = vmatmul.mubr.f32.gmra.mxu0 %v4810
        %v4878 = vpop.f32.mrf.mxu0
        %v4879 = vadd.f32 0.0, %v4878
        %v4880 = vpop.f32.mrf.mxu0
        %4881 = vdwg.mxu0
        %v4882 = vsel %vm4809, %v4793, 0
        %4884 = vmatprep.subr.mxu0 0.0
        %4885 = vmatpush1.msra.mxu0 0.0
        %4886 = vmatprep.subr.mxu0 0.0
        %4887 = vmatpush1.msra.mxu0 0.0
        %4888 = vmatprep.subr.mxu0 0.0
        %4889 = vmatpush1.msra.mxu0 0.0
        %4890 = vmatprep.subr.mxu0 0.0
        %4891 = vmatpush1.msra.mxu0 0.0
        %4892 = vmatprep.subr.mxu0 0.0
        %4893 = vmatpush1.msra.mxu0 0.0
        %4894 = vmatprep.subr.mxu0 0.0
        %4895 = vmatpush1.msra.mxu0 0.0
        %4896 = vmatprep.subr.mxu0 0.0
        %4897 = vmatpush1.msra.mxu0 0.0
        %4898 = vmatprep.subr.mxu0 0.0
        %4899 = vmatpush1.msra.mxu0 0.0
        %4900 = vmatprep.subr.mxu0 0.0
        %4901 = vmatpush1.msra.mxu0 0.0
        %4902 = vmatprep.subr.mxu0 0.0
        %4903 = vmatpush1.msra.mxu0 0.0
        %4904 = vmatprep.subr.mxu0 0.0
        %4905 = vmatpush1.msra.mxu0 %v4799
        %4906 = vmatprep.subr.mxu0 0.0
        %4907 = vmatpush1.msra.mxu0 %v4798
        %4908 = vmatprep.subr.mxu0 0.0
        %4909 = vmatpush1.msra.mxu0 %v4797
        %4910 = vmatprep.subr.mxu0 0.0
        %4911 = vmatpush1.msra.mxu0 %v4796
        %4912 = vmatprep.subr.mxu0 0.0
        %4913 = vmatpush1.msra.mxu0 %v4795
        %4914 = vmatprep.subr.mxu0 0.0
        %4915 = vmatpush1.msra.mxu0 %v4794
        %4916 = vmatprep.subr.mxu0 0.0
        %4917 = vmatpush2.msra.mxu0 0.0
        %4918 = vmatprep.subr.mxu0 0.0
        %4919 = vmatpush2.msra.mxu0 0.0
        %4920 = vmatprep.subr.mxu0 0.0
        %4921 = vmatpush2.msra.mxu0 0.0
        %4922 = vmatprep.subr.mxu0 0.0
        %4923 = vmatpush2.msra.mxu0 0.0
        %4924 = vmatprep.subr.mxu0 0.0
        %4925 = vmatpush2.msra.mxu0 0.0
        %4926 = vmatprep.subr.mxu0 0.0
        %4927 = vmatpush2.msra.mxu0 0.0
        %4928 = vmatprep.subr.mxu0 0.0
        %4929 = vmatpush2.msra.mxu0 0.0
        %4930 = vmatprep.subr.mxu0 0.0
        %4931 = vmatpush2.msra.mxu0 0.0
        %4932 = vmatprep.subr.mxu0 0.0
        %4933 = vmatpush2.msra.mxu0 0.0
        %4934 = vmatprep.subr.mxu0 0.0
        %4935 = vmatpush2.msra.mxu0 0.0
        %4936 = vmatprep.subr.mxu0 0.0
        %4937 = vmatpush2.msra.mxu0 0.0
        %4938 = vmatprep.subr.mxu0 0.0
        %4939 = vmatpush2.msra.mxu0 0.0
        %4940 = vmatprep.subr.mxu0 0.0
        %4941 = vmatpush2.msra.mxu0 0.0
        %4942 = vmatprep.subr.mxu0 0.0
        %4943 = vmatpush2.msra.mxu0 0.0
        %4944 = vmatprep.subr.mxu0 0.0
        %4945 = vmatpush2.msra.mxu0 0.0
        %4946 = vmatprep.subr.mxu0 0.0
        %4947 = vmatpush2.msra.mxu0 0.0
        %4948 = vmatprep.mubr.f32.mxu0 0.0
        %4949 = vmatmul.mubr.f32.gmra.mxu0 %v4882
        %v4950 = vpop.f32.mrf.mxu0
        %v4951 = vadd.f32 %v4879, %v4950
        %v4952 = vpop.f32.mrf.mxu0
        %4953 = vdwg.mxu0
        %s4954 = scalar_lea.vmem %s11, 96
        %v4955 = vld [vmem:[%s4954] sm:$0xff]
        %v4956 = vld [vmem:[%s4954 + $0x8] sm:$0xff]
        %v4957 = vld [vmem:[%s4954 + $0x10] sm:$0xff]
        %v4958 = vld [vmem:[%s4954 + $0x18] sm:$0xff]
        %v4959 = vld [vmem:[%s4954 + $0x20] sm:$0xff]
        %v4960 = vld [vmem:[%s4954 + $0x28] sm:$0xff]
        %v4961 = vrot.slane %v4793, 2
        %v4962 = vsel %vm4809, %v4961, 0
        %4964 = vmatprep.subr.mxu0 0.0
        %4965 = vmatpush1.msra.mxu0 0.0
        %4966 = vmatprep.subr.mxu0 0.0
        %4967 = vmatpush1.msra.mxu0 0.0
        %4968 = vmatprep.subr.mxu0 0.0
        %4969 = vmatpush1.msra.mxu0 0.0
        %4970 = vmatprep.subr.mxu0 0.0
        %4971 = vmatpush1.msra.mxu0 0.0
        %4972 = vmatprep.subr.mxu0 0.0
        %4973 = vmatpush1.msra.mxu0 0.0
        %4974 = vmatprep.subr.mxu0 0.0
        %4975 = vmatpush1.msra.mxu0 0.0
        %4976 = vmatprep.subr.mxu0 0.0
        %4977 = vmatpush1.msra.mxu0 0.0
        %4978 = vmatprep.subr.mxu0 0.0
        %4979 = vmatpush1.msra.mxu0 0.0
        %4980 = vmatprep.subr.mxu0 0.0
        %4981 = vmatpush1.msra.mxu0 0.0
        %4982 = vmatprep.subr.mxu0 0.0
        %4983 = vmatpush1.msra.mxu0 0.0
        %4984 = vmatprep.subr.mxu0 0.0
        %4985 = vmatpush1.msra.mxu0 %v4960
        %4986 = vmatprep.subr.mxu0 0.0
        %4987 = vmatpush1.msra.mxu0 %v4959
        %4988 = vmatprep.subr.mxu0 0.0
        %4989 = vmatpush1.msra.mxu0 %v4958
        %4990 = vmatprep.subr.mxu0 0.0
        %4991 = vmatpush1.msra.mxu0 %v4957
        %4992 = vmatprep.subr.mxu0 0.0
        %4993 = vmatpush1.msra.mxu0 %v4956
        %4994 = vmatprep.subr.mxu0 0.0
        %4995 = vmatpush1.msra.mxu0 %v4955
        %4996 = vmatprep.subr.mxu0 0.0
        %4997 = vmatpush2.msra.mxu0 0.0
        %4998 = vmatprep.subr.mxu0 0.0
        %4999 = vmatpush2.msra.mxu0 0.0
        %5000 = vmatprep.subr.mxu0 0.0
        %5001 = vmatpush2.msra.mxu0 0.0
        %5002 = vmatprep.subr.mxu0 0.0
        %5003 = vmatpush2.msra.mxu0 0.0
        %5004 = vmatprep.subr.mxu0 0.0
        %5005 = vmatpush2.msra.mxu0 0.0
        %5006 = vmatprep.subr.mxu0 0.0
        %5007 = vmatpush2.msra.mxu0 0.0
        %5008 = vmatprep.subr.mxu0 0.0
        %5009 = vmatpush2.msra.mxu0 0.0
        %5010 = vmatprep.subr.mxu0 0.0
        %5011 = vmatpush2.msra.mxu0 0.0
        %5012 = vmatprep.subr.mxu0 0.0
        %5013 = vmatpush2.msra.mxu0 0.0
        %5014 = vmatprep.subr.mxu0 0.0
        %5015 = vmatpush2.msra.mxu0 0.0
        %5016 = vmatprep.subr.mxu0 0.0
        %5017 = vmatpush2.msra.mxu0 0.0
        %5018 = vmatprep.subr.mxu0 0.0
        %5019 = vmatpush2.msra.mxu0 0.0
        %5020 = vmatprep.subr.mxu0 0.0
        %5021 = vmatpush2.msra.mxu0 0.0
        %5022 = vmatprep.subr.mxu0 0.0
        %5023 = vmatpush2.msra.mxu0 0.0
        %5024 = vmatprep.subr.mxu0 0.0
        %5025 = vmatpush2.msra.mxu0 0.0
        %5026 = vmatprep.subr.mxu0 0.0
        %5027 = vmatpush2.msra.mxu0 0.0
        %5028 = vmatprep.mubr.f32.mxu0 0.0
        %5029 = vmatmul.mubr.f32.gmra.mxu0 %v4962
        %v5030 = vpop.f32.mrf.mxu0
        %v5031 = vadd.f32 0.0, %v5030
        %v5032 = vpop.f32.mrf.mxu0
        %5033 = vdwg.mxu0
        %v5034 = vadd.f32 %v4951, %v5031
        %s5035 = scalar_lea.vmem %s11, 144
        %v5036 = vld [vmem:[%s5035] sm:$0xff]
        %v5037 = vld [vmem:[%s5035 + $0x8] sm:$0xff]
        %v5038 = vld [vmem:[%s5035 + $0x10] sm:$0xff]
        %v5039 = vld [vmem:[%s5035 + $0x18] sm:$0xff]
        %v5040 = vld [vmem:[%s5035 + $0x20] sm:$0xff]
        %v5041 = vld [vmem:[%s5035 + $0x28] sm:$0xff]
        %v5042 = vrot.slane %v4793, 3
        %v5043 = vsel %vm4809, %v5042, 0
        %5045 = vmatprep.subr.mxu0 0.0
        %5046 = vmatpush1.msra.mxu0 0.0
        %5047 = vmatprep.subr.mxu0 0.0
        %5048 = vmatpush1.msra.mxu0 0.0
        %5049 = vmatprep.subr.mxu0 0.0
        %5050 = vmatpush1.msra.mxu0 0.0
        %5051 = vmatprep.subr.mxu0 0.0
        %5052 = vmatpush1.msra.mxu0 0.0
        %5053 = vmatprep.subr.mxu0 0.0
        %5054 = vmatpush1.msra.mxu0 0.0
        %5055 = vmatprep.subr.mxu0 0.0
        %5056 = vmatpush1.msra.mxu0 0.0
        %5057 = vmatprep.subr.mxu0 0.0
        %5058 = vmatpush1.msra.mxu0 0.0
        %5059 = vmatprep.subr.mxu0 0.0
        %5060 = vmatpush1.msra.mxu0 0.0
        %5061 = vmatprep.subr.mxu0 0.0
        %5062 = vmatpush1.msra.mxu0 0.0
        %5063 = vmatprep.subr.mxu0 0.0
        %5064 = vmatpush1.msra.mxu0 0.0
        %5065 = vmatprep.subr.mxu0 0.0
        %5066 = vmatpush1.msra.mxu0 %v5041
        %5067 = vmatprep.subr.mxu0 0.0
        %5068 = vmatpush1.msra.mxu0 %v5040
        %5069 = vmatprep.subr.mxu0 0.0
        %5070 = vmatpush1.msra.mxu0 %v5039
        %5071 = vmatprep.subr.mxu0 0.0
        %5072 = vmatpush1.msra.mxu0 %v5038
        %5073 = vmatprep.subr.mxu0 0.0
        %5074 = vmatpush1.msra.mxu0 %v5037
        %5075 = vmatprep.subr.mxu0 0.0
        %5076 = vmatpush1.msra.mxu0 %v5036
        %5077 = vmatprep.subr.mxu0 0.0
        %5078 = vmatpush2.msra.mxu0 0.0
        %5079 = vmatprep.subr.mxu0 0.0
        %5080 = vmatpush2.msra.mxu0 0.0
        %5081 = vmatprep.subr.mxu0 0.0
        %5082 = vmatpush2.msra.mxu0 0.0
        %5083 = vmatprep.subr.mxu0 0.0
        %5084 = vmatpush2.msra.mxu0 0.0
        %5085 = vmatprep.subr.mxu0 0.0
        %5086 = vmatpush2.msra.mxu0 0.0
        %5087 = vmatprep.subr.mxu0 0.0
        %5088 = vmatpush2.msra.mxu0 0.0
        %5089 = vmatprep.subr.mxu0 0.0
        %5090 = vmatpush2.msra.mxu0 0.0
        %5091 = vmatprep.subr.mxu0 0.0
        %5092 = vmatpush2.msra.mxu0 0.0
        %5093 = vmatprep.subr.mxu0 0.0
        %5094 = vmatpush2.msra.mxu0 0.0
        %5095 = vmatprep.subr.mxu0 0.0
        %5096 = vmatpush2.msra.mxu0 0.0
        %5097 = vmatprep.subr.mxu0 0.0
        %5098 = vmatpush2.msra.mxu0 0.0
        %5099 = vmatprep.subr.mxu0 0.0
        %5100 = vmatpush2.msra.mxu0 0.0
        %5101 = vmatprep.subr.mxu0 0.0
        %5102 = vmatpush2.msra.mxu0 0.0
        %5103 = vmatprep.subr.mxu0 0.0
        %5104 = vmatpush2.msra.mxu0 0.0
        %5105 = vmatprep.subr.mxu0 0.0
        %5106 = vmatpush2.msra.mxu0 0.0
        %5107 = vmatprep.subr.mxu0 0.0
        %5108 = vmatpush2.msra.mxu0 0.0
        %5109 = vmatprep.mubr.f32.mxu0 0.0
        %5110 = vmatmul.mubr.f32.gmra.mxu0 %v5043
        %v5111 = vpop.f32.mrf.mxu0
        %v5112 = vadd.f32 0.0, %v5111
        %v5113 = vpop.f32.mrf.mxu0
        %5114 = vdwg.mxu0
        %v5115 = vadd.f32 %v5034, %v5112
        %v5116 = vld [vmem:[%s12] sm:$0x1]
        %v5117 = vadd.f32 %v5115, %v5116
        %v5118 = vmax.f32 %v5117, 0.0
        %v5119 = vld [vmem:[%s13] sm:$0xff]
        %v5120 = vld [vmem:[%s13 + $0x8] sm:$0xff]
        %v5121 = vld [vmem:[%s13 + $0x10] sm:$0xff]
        %v5122 = vld [vmem:[%s13 + $0x18] sm:$0xff]
        %v5123 = vld [vmem:[%s13 + $0x20] sm:$0xff]
        %v5124 = vld [vmem:[%s13 + $0x28] sm:$0xff]
        %v5125 = vld [vmem:[%s13 + $0x30] sm:$0x3]
        %v5126 = vld [vmem:[%s14] sm:$0x1]
        %vm5127 = vcmask 408576
        %v5129 = vsel %vm5127, %v5118, 0
        %v5132 = vsel %vm2310, %v5125, 0
        %5134 = vmatprep.subr.mxu0 0.0
        %5135 = vmatpush1.msra.mxu0 0.0
        %5136 = vmatprep.subr.mxu0 0.0
        %5137 = vmatpush1.msra.mxu0 0.0
        %5138 = vmatprep.subr.mxu0 0.0
        %5139 = vmatpush1.msra.mxu0 0.0
        %5140 = vmatprep.subr.mxu0 0.0
        %5141 = vmatpush1.msra.mxu0 0.0
        %5142 = vmatprep.subr.mxu0 0.0
        %5143 = vmatpush1.msra.mxu0 0.0
        %5144 = vmatprep.subr.mxu0 0.0
        %5145 = vmatpush1.msra.mxu0 0.0
        %5146 = vmatprep.subr.mxu0 0.0
        %5147 = vmatpush1.msra.mxu0 0.0
        %5148 = vmatprep.subr.mxu0 0.0
        %5149 = vmatpush1.msra.mxu0 0.0
        %5150 = vmatprep.subr.mxu0 0.0
        %5151 = vmatpush1.msra.mxu0 0.0
        %5152 = vmatprep.subr.mxu0 0.0
        %5153 = vmatpush1.msra.mxu0 %v5132
        %5154 = vmatprep.subr.mxu0 0.0
        %5155 = vmatpush1.msra.mxu0 %v5124
        %5156 = vmatprep.subr.mxu0 0.0
        %5157 = vmatpush1.msra.mxu0 %v5123
        %5158 = vmatprep.subr.mxu0 0.0
        %5159 = vmatpush1.msra.mxu0 %v5122
        %5160 = vmatprep.subr.mxu0 0.0
        %5161 = vmatpush1.msra.mxu0 %v5121
        %5162 = vmatprep.subr.mxu0 0.0
        %5163 = vmatpush1.msra.mxu0 %v5120
        %5164 = vmatprep.subr.mxu0 0.0
        %5165 = vmatpush1.msra.mxu0 %v5119
        %5166 = vmatprep.subr.mxu0 0.0
        %5167 = vmatpush2.msra.mxu0 0.0
        %5168 = vmatprep.subr.mxu0 0.0
        %5169 = vmatpush2.msra.mxu0 0.0
        %5170 = vmatprep.subr.mxu0 0.0
        %5171 = vmatpush2.msra.mxu0 0.0
        %5172 = vmatprep.subr.mxu0 0.0
        %5173 = vmatpush2.msra.mxu0 0.0
        %5174 = vmatprep.subr.mxu0 0.0
        %5175 = vmatpush2.msra.mxu0 0.0
        %5176 = vmatprep.subr.mxu0 0.0
        %5177 = vmatpush2.msra.mxu0 0.0
        %5178 = vmatprep.subr.mxu0 0.0
        %5179 = vmatpush2.msra.mxu0 0.0
        %5180 = vmatprep.subr.mxu0 0.0
        %5181 = vmatpush2.msra.mxu0 0.0
        %5182 = vmatprep.subr.mxu0 0.0
        %5183 = vmatpush2.msra.mxu0 0.0
        %5184 = vmatprep.subr.mxu0 0.0
        %5185 = vmatpush2.msra.mxu0 0.0
        %5186 = vmatprep.subr.mxu0 0.0
        %5187 = vmatpush2.msra.mxu0 0.0
        %5188 = vmatprep.subr.mxu0 0.0
        %5189 = vmatpush2.msra.mxu0 0.0
        %5190 = vmatprep.subr.mxu0 0.0
        %5191 = vmatpush2.msra.mxu0 0.0
        %5192 = vmatprep.subr.mxu0 0.0
        %5193 = vmatpush2.msra.mxu0 0.0
        %5194 = vmatprep.subr.mxu0 0.0
        %5195 = vmatpush2.msra.mxu0 0.0
        %5196 = vmatprep.subr.mxu0 0.0
        %5197 = vmatpush2.msra.mxu0 0.0
        %5198 = vmatprep.mubr.f32.mxu0 0.0
        %5199 = vmatmul.mubr.f32.gmra.mxu0 %v5129
        %v5200 = vpop.f32.mrf.mxu0
        %v5201 = vadd.f32 %v5126, %v5200
        %v5202 = vpop.f32.mrf.mxu0
        %5203 = vdwg.mxu0
        %v5204 = vmax.f32 %v5201, 0.0
        %v5205 = vld [vmem:[%s15] sm:$0xff]
        %v5206 = vld [vmem:[%s15 + $0x8] sm:$0xff]
        %v5207 = vld [vmem:[%s15 + $0x10] sm:$0xff]
        %v5208 = vld [vmem:[%s15 + $0x18] sm:$0xff]
        %v5209 = vld [vmem:[%s15 + $0x20] sm:$0xff]
        %v5210 = vld [vmem:[%s15 + $0x28] sm:$0xff]
        %v5211 = vld [vmem:[%s15 + $0x30] sm:$0xff]
        %v5212 = vld [vmem:[%s15 + $0x38] sm:$0xff]
        %v5213 = vld [vmem:[%s15 + $0x40] sm:$0xff]
        %v5214 = vld [vmem:[%s15 + $0x48] sm:$0xff]
        %v5215 = vld [vmem:[%s15 + $0x50] sm:$0xff]
        %v5216 = vld [vmem:[%s15 + $0x58] sm:$0xff]
        %v5217 = vld [vmem:[%s15 + $0x60] sm:$0xf]
        %v5218 = vld [vmem:[%s16] sm:$0x1]
        %vm5219 = vcmask 818176
        %v5221 = vsel %vm5219, %v5204, 0
        %v5224 = vsel %vm587, %v5217, 0
        %5226 = vmatprep.subr.mxu0 0.0
        %5227 = vmatpush1.msra.mxu0 0.0
        %5228 = vmatprep.subr.mxu0 0.0
        %5229 = vmatpush1.msra.mxu0 0.0
        %5230 = vmatprep.subr.mxu0 0.0
        %5231 = vmatpush1.msra.mxu0 0.0
        %5232 = vmatprep.subr.mxu0 0.0
        %5233 = vmatpush1.msra.mxu0 %v5224
        %5234 = vmatprep.subr.mxu0 0.0
        %5235 = vmatpush1.msra.mxu0 %v5216
        %5236 = vmatprep.subr.mxu0 0.0
        %5237 = vmatpush1.msra.mxu0 %v5215
        %5238 = vmatprep.subr.mxu0 0.0
        %5239 = vmatpush1.msra.mxu0 %v5214
        %5240 = vmatprep.subr.mxu0 0.0
        %5241 = vmatpush1.msra.mxu0 %v5213
        %5242 = vmatprep.subr.mxu0 0.0
        %5243 = vmatpush1.msra.mxu0 %v5212
        %5244 = vmatprep.subr.mxu0 0.0
        %5245 = vmatpush1.msra.mxu0 %v5211
        %5246 = vmatprep.subr.mxu0 0.0
        %5247 = vmatpush1.msra.mxu0 %v5210
        %5248 = vmatprep.subr.mxu0 0.0
        %5249 = vmatpush1.msra.mxu0 %v5209
        %5250 = vmatprep.subr.mxu0 0.0
        %5251 = vmatpush1.msra.mxu0 %v5208
        %5252 = vmatprep.subr.mxu0 0.0
        %5253 = vmatpush1.msra.mxu0 %v5207
        %5254 = vmatprep.subr.mxu0 0.0
        %5255 = vmatpush1.msra.mxu0 %v5206
        %5256 = vmatprep.subr.mxu0 0.0
        %5257 = vmatpush1.msra.mxu0 %v5205
        %5258 = vmatprep.subr.mxu0 0.0
        %5259 = vmatpush2.msra.mxu0 0.0
        %5260 = vmatprep.subr.mxu0 0.0
        %5261 = vmatpush2.msra.mxu0 0.0
        %5262 = vmatprep.subr.mxu0 0.0
        %5263 = vmatpush2.msra.mxu0 0.0
        %5264 = vmatprep.subr.mxu0 0.0
        %5265 = vmatpush2.msra.mxu0 0.0
        %5266 = vmatprep.subr.mxu0 0.0
        %5267 = vmatpush2.msra.mxu0 0.0
        %5268 = vmatprep.subr.mxu0 0.0
        %5269 = vmatpush2.msra.mxu0 0.0
        %5270 = vmatprep.subr.mxu0 0.0
        %5271 = vmatpush2.msra.mxu0 0.0
        %5272 = vmatprep.subr.mxu0 0.0
        %5273 = vmatpush2.msra.mxu0 0.0
        %5274 = vmatprep.subr.mxu0 0.0
        %5275 = vmatpush2.msra.mxu0 0.0
        %5276 = vmatprep.subr.mxu0 0.0
        %5277 = vmatpush2.msra.mxu0 0.0
        %5278 = vmatprep.subr.mxu0 0.0
        %5279 = vmatpush2.msra.mxu0 0.0
        %5280 = vmatprep.subr.mxu0 0.0
        %5281 = vmatpush2.msra.mxu0 0.0
        %5282 = vmatprep.subr.mxu0 0.0
        %5283 = vmatpush2.msra.mxu0 0.0
        %5284 = vmatprep.subr.mxu0 0.0
        %5285 = vmatpush2.msra.mxu0 0.0
        %5286 = vmatprep.subr.mxu0 0.0
        %5287 = vmatpush2.msra.mxu0 0.0
        %5288 = vmatprep.subr.mxu0 0.0
        %5289 = vmatpush2.msra.mxu0 0.0
        %5290 = vmatprep.mubr.f32.mxu0 0.0
        %5291 = vmatmul.mubr.f32.gmra.mxu0 %v5221
        %v5292 = vpop.f32.mrf.mxu0
        %v5293 = vadd.f32 %v5218, %v5292
        %v5294 = vpop.f32.mrf.mxu0
        %5295 = vdwg.mxu0
        %vm5296 = vcmask 73728
        %5297 = vst.msk [vmem:[%s540] sm:$0x1] %vm5296, %v5293
        %s5298 = sand.u32 %s401, 1
        %s5299 = scalar_lea.sflag [#allocation5], %s5298
        %s5300 = sand.u32 %s401, 1
        %s5301 = scalar_lea.vmem [#allocation4], %s5300
        // Predicated region
        $region89: #{model_c_forward.1} parent=87 // pred_check
          %p5302 = pneg %p411
        $region90: #{model_c_forward.1} parent=87 // pred_check_branch
          %5304 = sbr.rel (%p5302) target = $region92
        $region91: #{model_c_forward.1} parent=87 // pred_region
          %s5306 = ssub.s32 16, 16
          %5307 = vsyncadd %s5299, %s5306
          %s5308 = smul.addr %s31, 16
          %s5309 = scalar_lea.hbm %s17, %s5308
          %s5311 = sshll.u32 %s5301, 4
          %s5312 = int_to_ptr.vmem [resolvable:$true] %s5311
          %5314 = dma.vmem_to_hbm [thread:$0]  %s5312, 16, %s5309, %s5299
        $region92: #{model_c_forward.1} parent=87 // pred_fallthru
          _
      $region88: #{model_c_forward.1} parent=5 // pred_fallthru
        _
      %p5315 = scmp.le.s32.totalorder 2, %s26
      // Predicated region
      $region93: #{model_c_forward.1} parent=5 // pred_check
        %p5316 = pneg %p5315
      $region94: #{model_c_forward.1} parent=5 // pred_check_branch
        %5318 = sbr.rel (%p5316) target = $region96
      $region95: #{model_c_forward.1} parent=5 // pred_region
        %s5319 = ssub.s32 %s26, 2
        // Predicated region
        $region97: #{model_c_forward.1} parent=95 // pred_check
          %p5320 = pneg %p417
        $region98: #{model_c_forward.1} parent=95 // pred_check_branch
          %5322 = sbr.rel (%p5320) target = $region100
        $region99: #{model_c_forward.1} parent=95 // pred_region
          %s5323 = sand.u32 %s402, 1
          %s5324 = scalar_lea.sflag [#allocation5], %s5323
          %s5325 = sand.u32 %s402, 1
          %s5326 = scalar_lea.vmem [#allocation4], %s5325
          %5327 = dma.done %s5324, 16
        $region100: #{model_c_forward.1} parent=95 // pred_fallthru
          _
      $region96: #{model_c_forward.1} parent=5 // pred_fallthru
        _
    $region6: #{model_c_forward.1} parent=1 // loop_footer
      %s30 = sadd.s32 1, %s26
    $region7: #{model_c_forward.1} parent=1 // loop_footer_branch
      %25 = sbr.rel target = $region3
    $region8: #{model_c_forward.1} parent=1 // loop_exit
      _
    %5328 = vsyncpa [#allocation5], 1
    %s5329 = scalar_lea.sflag [#allocation5], 1
    %5330 = vsyncpa %s5329, 1

</llo_original>
